<compile_context>
chip_gen: v7x
topology: tpu7x:2x2x1
jax: 0.10.0
libtpu: 0.0.40
codegen_flags: <defaults>
</compile_context>

<pallas_src>
import functools

import jax
import jax.numpy as jnp
from jax import lax
from jax.experimental import pallas as pl
from jax.experimental.pallas import tpu as pltpu


def _lstm_kernel(x_ref,        # (T*Bt, I)   time-major, flattened batch tile (f32)
                 wih0_ref,     # (I, 4H)     bf16, gate cols [i|f|o|g]
                 whh0_ref,     # (H, 4H)     bf16
                 b0_ref,       # (1, 4H)     f32  (= b_ih0 + b_hh0, permuted)
                 wih1_ref,     # (H, 4H)     bf16
                 whh1_ref,     # (H, 4H)     bf16
                 b1_ref,       # (1, 4H)     f32
                 fcw_ref,      # (H, Opad)   bf16
                 fcb_ref,      # (1, Opad)   f32
                 out_ref,      # (Bt, Opad)  f32
                 gx_ref,       # scratch (T*Bt, 4H) f32: layer-0 input projections
                 *, hidden_size, seq_len, batch, unroll):
    """2-layer LSTM (interleaved recurrence) + final Linear."""
    H = hidden_size
    T = seq_len
    B = batch                      # padded batch-tile rows (multiple of 8)
    wdt = wih0_ref.dtype           # matmul operand dtype (bf16); accumulation stays f32

    # ---- Stage 1: hoisted layer-0 input projection for ALL timesteps (one big
    # MXU matmul), bias folded in so the recurrence has no per-step broadcast.
    # TODO(synk): for very large T, chunk this projection over time (double-buffered
    # gx scratch) so the recurrence starts after the first chunk and the scratch
    # stays within v7x's 64 MiB VMEM.
    gx_ref[...] = (jnp.dot(x_ref[...].astype(wdt), wih0_ref[...],
                           preferred_element_type=jnp.float32)
                   + b0_ref[...])

    def gate_act(gates, c):
        # Gate layout (permuted offline): [i | f | o | g] -> one contiguous
        # sigmoid over the first 3H lanes, one tanh over the last H lanes.
        ifo = jax.nn.sigmoid(gates[:, :3 * H])
        g_g = jnp.tanh(gates[:, 3 * H:])
        i_g = ifo[:, :H]
        f_g = ifo[:, H:2 * H]
        o_g = ifo[:, 2 * H:]
        c_new = f_g * c + i_g * g_g
        h_new = o_g * jnp.tanh(c_new)
        return h_new, c_new

    zeros = jnp.zeros((B, H), jnp.float32)
    # Hoist the (1,4H)->(B,4H) layer-1 bias broadcast once (a few vregs), not per step.
    b1 = jnp.broadcast_to(b1_ref[...], (B, 4 * H))

    # ---- Stage 2: interleaved layer-0 / layer-1 recurrence.
    # Layer-1 step t depends only on h0_t and (h1,c1)_{t-1}; with the loop
    # unrolled the scheduler overlaps it with layer-0 step t+1.
    # Weights are streamed from VMEM refs inside each dot (no pinned vregs).
    # TODO(synk): pltpu.matmul_push_rhs/acc_lhs could keep W_hh resident in the
    # MXU across steps; kept on jnp.dot for portability across v5e/v6e/v7x.
    def step(t, carry):
        h0, c0, h1, c1 = carry
        row = pl.multiple_of(t * B, B)          # tile-aligned (B is a multiple of 8)
        g0 = gx_ref[pl.ds(row, B), :] + jnp.dot(
            h0.astype(wdt), whh0_ref[...], preferred_element_type=jnp.float32)
        h0, c0 = gate_act(g0, c0)
        h0w = h0.astype(wdt)
        g1 = (jnp.dot(h0w, wih1_ref[...], preferred_element_type=jnp.float32)
              + jnp.dot(h1.astype(wdt), whh1_ref[...],
                        preferred_element_type=jnp.float32)
              + b1)
        h1, c1 = gate_act(g1, c1)
        return h0, c0, h1, c1

    _, _, h1, _ = lax.fori_loop(0, T, step, (zeros, zeros, zeros, zeros),
                                unroll=unroll)

    # ---- Stage 3: final Linear on hn[-1]; lane-dense padded output block.
    out_ref[...] = (jnp.dot(h1.astype(wdt), fcw_ref[...],
                            preferred_element_type=jnp.float32)
                    + fcb_ref[...]).astype(out_ref.dtype)


def _permute_gates(w, H):
    """Reorder PyTorch gate columns [i|f|g|o] -> [i|f|o|g] (contiguous sigmoids)."""
    i = w[..., 0 * H:1 * H]
    f = w[..., 1 * H:2 * H]
    g = w[..., 2 * H:3 * H]
    o = w[..., 3 * H:4 * H]
    return jnp.concatenate([i, f, o, g], axis=-1)


def _vmem_limit_bytes(T, Bt, I, H, Op, matmul_dtype):
    """Size the scoped-VMEM limit from actual buffers, capped by device capacity."""
    f32 = 4
    wb = jnp.dtype(matmul_dtype).itemsize
    in_bytes = (T * Bt * I * f32                               # x tile (f32)
                + (I * 4 * H + 3 * H * 4 * H + H * Op) * wb    # matmul weights
                + (2 * 4 * H + Op) * f32)                      # biases
    out_bytes = Bt * Op * f32
    scratch_bytes = T * Bt * 4 * H * f32                       # gx scratch
    # 2x on gridded inputs/outputs (BlockSpec double-buffering) + fixed slack.
    budget = 2 * (in_bytes + out_bytes) + scratch_bytes + (4 << 20)
    try:
        cap = int(pltpu.get_tpu_info().vmem_capacity_bytes)    # 128 MiB v5e/v6e, 64 MiB v7x
    except Exception:
        cap = 64 << 20
    # Leave 8 MiB headroom for Mosaic internal scratch; never ask for less than 32 MiB.
    return int(min(max(budget, 32 << 20), cap - (8 << 20)))


def lstm_position_predictor(x, params, *, hidden_size, matmul_dtype=jnp.bfloat16):
    """x: (B, T, I) float32 -> (B, output_size) float32."""
    B, T, I = x.shape
    H = hidden_size
    O = params["fc_w_t"].shape[1]

    # Batch tiling: pad to a sublane multiple; split into 2 batch tiles over a
    # "parallel" grid axis (-> v7x's 2 TensorCores) only when batch is big enough.
    if B > 8:
        Bp = ((B + 15) // 16) * 16
        nbt = 2
    else:
        Bp, nbt = 8, 1
    Bt = Bp // nbt

    Op = max(128, ((O + 127) // 128) * 128)        # lane-dense output block

    # Time-major batch tiles flattened to (nbt, T*Bt, I) outside the kernel.
    xp = jnp.pad(x, ((0, Bp - B), (0, 0), (0, 0)))             # (Bp, T, I)
    xp = xp.reshape(nbt, Bt, T, I).transpose(0, 2, 1, 3)       # (nbt, T, Bt, I)
    x_tiles = xp.reshape(nbt, T * Bt, I)

    # Gate columns permuted offline to [i|f|o|g]; matmul weights cast to bf16
    # (activations, biases and accumulation stay f32 via preferred_element_type).
    wih0 = _permute_gates(params["w_ih0_t"], H).astype(matmul_dtype)
    whh0 = _permute_gates(params["w_hh0_t"], H).astype(matmul_dtype)
    b0 = _permute_gates(params["b0"], H)
    wih1 = _permute_gates(params["w_ih1_t"], H).astype(matmul_dtype)
    whh1 = _permute_gates(params["w_hh1_t"], H).astype(matmul_dtype)
    b1 = _permute_gates(params["b1"], H)
    fcw = jnp.pad(params["fc_w_t"], ((0, 0), (0, Op - O))).astype(matmul_dtype)
    fcb = jnp.pad(params["fc_b"], ((0, 0), (0, Op - O)))

    def full(a):  # whole-array VMEM-resident block (constant index -> no re-DMA)
        return pl.BlockSpec(a.shape, lambda b: (0,) * a.ndim)

    in_specs = [
        pl.BlockSpec((None, T * Bt, I), lambda b: (b, 0, 0)),  # per-tile x
        full(wih0), full(whh0), full(b0),
        full(wih1), full(whh1), full(b1),
        full(fcw), full(fcb),
    ]
    out_specs = pl.BlockSpec((None, Bt, Op), lambda b: (b, 0, 0))

    # Bound the unroll factor for long sequences (avoid vreg/instruction blowup).
    unroll = True if T <= 32 else 8

    out_tiles = pl.pallas_call(
        functools.partial(_lstm_kernel, hidden_size=H, seq_len=T, batch=Bt,
                          unroll=unroll),
        grid=(nbt,),
        out_shape=jax.ShapeDtypeStruct((nbt, Bt, Op), jnp.float32),
        in_specs=in_specs,
        out_specs=out_specs,
        scratch_shapes=[
            pltpu.VMEM((T * Bt, 4 * H), jnp.float32),   # layer-0 gate projections
        ],
        compiler_params=pltpu.CompilerParams(
            dimension_semantics=("parallel",),
            vmem_limit_bytes=_vmem_limit_bytes(T, Bt, I, H, Op, matmul_dtype)),
    )(x_tiles, wih0, whh0, b0, wih1, whh1, b1, fcw, fcb)

    return out_tiles.reshape(Bp, Op)[:B, :O]


def init_params(key, input_size, hidden_size, output_size):
    """Deterministic init mirroring PyTorch shapes (uniform +-1/sqrt(H)), PyTorch gate order."""
    H = hidden_size
    k = 1.0 / jnp.sqrt(jnp.float32(H))
    keys = jax.random.split(key, 10)

    def u(kk, shape):
        return jax.random.uniform(kk, shape, jnp.float32, -k, k)

    w_ih0 = u(keys[0], (4 * H, input_size))
    w_hh0 = u(keys[1], (4 * H, H))
    b_ih0 = u(keys[2], (4 * H,))
    b_hh0 = u(keys[3], (4 * H,))
    w_ih1 = u(keys[4], (4 * H, H))
    w_hh1 = u(keys[5], (4 * H, H))
    b_ih1 = u(keys[6], (4 * H,))
    b_hh1 = u(keys[7], (4 * H,))
    fc_w = u(keys[8], (output_size, H))
    fc_b = u(keys[9], (output_size,))

    return {
        "w_ih0_t": w_ih0.T,                       # (I, 4H)
        "w_hh0_t": w_hh0.T,                       # (H, 4H)
        "b0": (b_ih0 + b_hh0)[None, :],           # (1, 4H)
        "w_ih1_t": w_ih1.T,                       # (H, 4H)
        "w_hh1_t": w_hh1.T,                       # (H, 4H)
        "b1": (b_ih1 + b_hh1)[None, :],           # (1, 4H)
        "fc_w_t": fc_w.T,                         # (H, O)
        "fc_b": fc_b[None, :],                    # (1, O)
    }


def reference_forward(x, params, *, hidden_size, matmul_dtype=jnp.bfloat16):
    """Pure-JAX reference (eval semantics, same bf16 matmul operands, f32 accumulation)."""
    H = hidden_size
    B = x.shape[0]

    def mm(a, b):
        return jnp.dot(a.astype(matmul_dtype), b.astype(matmul_dtype),
                       preferred_element_type=jnp.float32)

    def cell(xt, h, c, wih, whh, b):
        gates = mm(xt, wih) + mm(h, whh) + b
        i_g = jax.nn.sigmoid(gates[:, 0 * H:1 * H])
        f_g = jax.nn.sigmoid(gates[:, 1 * H:2 * H])
        g_g = jnp.tanh(gates[:, 2 * H:3 * H])
        o_g = jax.nn.sigmoid(gates[:, 3 * H:4 * H])
        c_new = f_g * c + i_g * g_g
        return o_g * jnp.tanh(c_new), c_new

    zeros = jnp.zeros((B, H), jnp.float32)

    def scan_fn(carry, xt):
        h0, c0, h1, c1 = carry
        h0, c0 = cell(xt, h0, c0, params["w_ih0_t"], params["w_hh0_t"], params["b0"])
        h1, c1 = cell(h0, h1, c1, params["w_ih1_t"], params["w_hh1_t"], params["b1"])
        return (h0, c0, h1, c1), None

    (_, _, h1, _), _ = lax.scan(scan_fn, (zeros, zeros, zeros, zeros),
                                jnp.swapaxes(x, 0, 1))
    return mm(h1, params["fc_w_t"]) + params["fc_b"]


if __name__ == "__main__":
    batch, seq, input_size = 2, 8, 4
    hidden_size, output_size = 128, 2   # module defaults: hidden=128 (lane-aligned gates), out=2

    key = jax.random.PRNGKey(0)
    k_x, k_p = jax.random.split(key)
    x = jax.random.normal(k_x, (batch, seq, input_size), jnp.float32)
    params = init_params(k_p, input_size, hidden_size, output_size)

    out = lstm_position_predictor(x, params, hidden_size=hidden_size)
    out = jax.block_until_ready(out)

    ref = reference_forward(x, params, hidden_size=hidden_size)
    assert out.shape == (batch, output_size)
    assert jnp.allclose(out, ref, atol=2e-3, rtol=2e-3), (out, ref)

    print("KERNEL_OK")
</pallas_src>

<mosaic_0001>
module attributes {stable_mosaic.version = 11 : i64} {
  func.func @_lstm_kernel(%arg0: i32, %arg1: memref<1x64x4xf32, #tpu.memory_space<vmem>>, %arg2: memref<4x512xbf16, #tpu.memory_space<vmem>>, %arg3: memref<128x512xbf16, #tpu.memory_space<vmem>>, %arg4: memref<1x512xf32, #tpu.memory_space<vmem>>, %arg5: memref<128x512xbf16, #tpu.memory_space<vmem>>, %arg6: memref<128x512xbf16, #tpu.memory_space<vmem>>, %arg7: memref<1x512xf32, #tpu.memory_space<vmem>>, %arg8: memref<128x128xbf16, #tpu.memory_space<vmem>>, %arg9: memref<1x128xf32, #tpu.memory_space<vmem>>, %arg10: memref<1x8x128xf32, #tpu.memory_space<vmem>>, %arg11: memref<64x512xf32, #tpu.memory_space<vmem>>) attributes {dimension_semantics = [#tpu.dimension_semantics<parallel>], iteration_bounds = array<i64: 1>, scalar_prefetch = 0 : i64, scratch_operands = 1 : i64, tpu.core_type = #tpu.core_type<tc>, window_params = [{transform_indices = @transform_0, window_bounds = array<i64: 1, 64, 4>}, {pipeline_mode = #tpu.pipeline_mode<synchronous>, transform_indices = @transform_1, window_bounds = array<i64: 4, 512>}, {pipeline_mode = #tpu.pipeline_mode<synchronous>, transform_indices = @transform_2, window_bounds = array<i64: 128, 512>}, {pipeline_mode = #tpu.pipeline_mode<synchronous>, transform_indices = @transform_3, window_bounds = array<i64: 1, 512>}, {pipeline_mode = #tpu.pipeline_mode<synchronous>, transform_indices = @transform_4, window_bounds = array<i64: 128, 512>}, {pipeline_mode = #tpu.pipeline_mode<synchronous>, transform_indices = @transform_5, window_bounds = array<i64: 128, 512>}, {pipeline_mode = #tpu.pipeline_mode<synchronous>, transform_indices = @transform_6, window_bounds = array<i64: 1, 512>}, {pipeline_mode = #tpu.pipeline_mode<synchronous>, transform_indices = @transform_7, window_bounds = array<i64: 128, 128>}, {pipeline_mode = #tpu.pipeline_mode<synchronous>, transform_indices = @transform_8, window_bounds = array<i64: 1, 128>}, {transform_indices = @transform_9, window_bounds = array<i64: 1, 8, 128>}]} {
    %c0 = arith.constant 0 : index
    %c0_0 = arith.constant 0 : index
    %c0_1 = arith.constant 0 : index
    %0 = vector.load %arg1[%c0, %c0_0, %c0_1] : memref<1x64x4xf32, #tpu.memory_space<vmem>>, vector<1x64x4xf32>
    %1 = vector.shape_cast %0 : vector<1x64x4xf32> to vector<64x4xf32>
    %2 = arith.truncf %1 : vector<64x4xf32> to vector<64x4xbf16>
    %c0_2 = arith.constant 0 : index
    %c0_3 = arith.constant 0 : index
    %3 = vector.load %arg2[%c0_2, %c0_3] : memref<4x512xbf16, #tpu.memory_space<vmem>>, vector<4x512xbf16>
    %cst = arith.constant dense<0.000000e+00> : vector<64x512xf32>
    %4 = tpu.matmul %2, %3, %cst {dimension_numbers = #tpu.dot_dimension_numbers<[1], [0], [0], [1], [0, 0, 1, 1], [], []>} : vector<64x4xbf16>, vector<4x512xbf16>, vector<64x512xf32> -> vector<64x512xf32>
    %c0_4 = arith.constant 0 : index
    %c0_5 = arith.constant 0 : index
    %5 = vector.load %arg4[%c0_4, %c0_5] : memref<1x512xf32, #tpu.memory_space<vmem>>, vector<1x512xf32>
    %6 = vector.broadcast %5 : vector<1x512xf32> to vector<64x512xf32>
    %7 = arith.addf %4, %6 : vector<64x512xf32>
    %c0_6 = arith.constant 0 : index
    %c0_7 = arith.constant 0 : index
    %8 = vector.load %arg11[%c0_6, %c0_7] : memref<64x512xf32, #tpu.memory_space<vmem>>, vector<64x512xf32>
    tpu.vector_store %arg11[%c0_6, %c0_7], %7 {strides = array<i32>} : memref<64x512xf32, #tpu.memory_space<vmem>>, vector<64x512xf32>,
    %cst_8 = arith.constant 0.000000e+00 : f32
    %9 = vector.broadcast %cst_8 : f32 to vector<8x128xf32>
    %c0_9 = arith.constant 0 : index
    %c0_10 = arith.constant 0 : index
    %10 = vector.load %arg7[%c0_9, %c0_10] : memref<1x512xf32, #tpu.memory_space<vmem>>, vector<1x512xf32>
    %11 = vector.shape_cast %10 : vector<1x512xf32> to vector<1x512xf32>
    %12 = vector.broadcast %11 : vector<1x512xf32> to vector<8x512xf32>
    %c0_i32 = arith.constant 0 : i32
    %c8_i32 = arith.constant 8 : i32
    %13 = arith.muli %c0_i32, %c8_i32 : i32
    %14 = tpu.assume_multiple %13, 8 : i32
    %15 = arith.index_cast %14 : i32 to index
    %c0_11 = arith.constant 0 : index
    %16 = vector.load %arg11[%15, %c0_11] : memref<64x512xf32, #tpu.memory_space<vmem>>, vector<8x512xf32>
    %17 = arith.truncf %9 : vector<8x128xf32> to vector<8x128xbf16>
    %c0_12 = arith.constant 0 : index
    %c0_13 = arith.constant 0 : index
    %18 = vector.load %arg3[%c0_12, %c0_13] : memref<128x512xbf16, #tpu.memory_space<vmem>>, vector<128x512xbf16>
    %cst_14 = arith.constant dense<0.000000e+00> : vector<8x512xf32>
    %19 = tpu.matmul %17, %18, %cst_14 {dimension_numbers = #tpu.dot_dimension_numbers<[1], [0], [0], [1], [0, 0, 1, 1], [], []>} : vector<8x128xbf16>, vector<128x512xbf16>, vector<8x512xf32> -> vector<8x512xf32>
    %20 = arith.addf %16, %19 : vector<8x512xf32>
    %21 = vector.extract_strided_slice %20 {offsets = [0, 0], sizes = [8, 384], strides = [1, 1]} : vector<8x512xf32> to vector<8x384xf32>
    %22 = arith.negf %21 : vector<8x384xf32>
    %23 = math.exp %22 : vector<8x384xf32>
    %cst_15 = arith.constant 1.000000e+00 : f32
    %24 = vector.broadcast %cst_15 : f32 to vector<8x384xf32>
    %25 = arith.addf %24, %23 : vector<8x384xf32>
    %26 = arith.divf %24, %25 : vector<8x384xf32>
    %27 = vector.extract_strided_slice %20 {offsets = [0, 384], sizes = [8, 128], strides = [1, 1]} : vector<8x512xf32> to vector<8x128xf32>
    %28 = math.tanh %27 : vector<8x128xf32>
    %29 = vector.extract_strided_slice %26 {offsets = [0, 0], sizes = [8, 128], strides = [1, 1]} : vector<8x384xf32> to vector<8x128xf32>
    %30 = vector.extract_strided_slice %26 {offsets = [0, 128], sizes = [8, 128], strides = [1, 1]} : vector<8x384xf32> to vector<8x128xf32>
    %31 = vector.extract_strided_slice %26 {offsets = [0, 256], sizes = [8, 128], strides = [1, 1]} : vector<8x384xf32> to vector<8x128xf32>
    %32 = arith.mulf %30, %9 : vector<8x128xf32>
    %33 = arith.mulf %29, %28 : vector<8x128xf32>
    %34 = arith.addf %32, %33 : vector<8x128xf32>
    %35 = math.tanh %34 : vector<8x128xf32>
    %36 = arith.mulf %31, %35 : vector<8x128xf32>
    %37 = arith.truncf %36 : vector<8x128xf32> to vector<8x128xbf16>
    %c0_16 = arith.constant 0 : index
    %c0_17 = arith.constant 0 : index
    %38 = vector.load %arg5[%c0_16, %c0_17] : memref<128x512xbf16, #tpu.memory_space<vmem>>, vector<128x512xbf16>
    %cst_18 = arith.constant dense<0.000000e+00> : vector<8x512xf32>
    %39 = tpu.matmul %37, %38, %cst_18 {dimension_numbers = #tpu.dot_dimension_numbers<[1], [0], [0], [1], [0, 0, 1, 1], [], []>} : vector<8x128xbf16>, vector<128x512xbf16>, vector<8x512xf32> -> vector<8x512xf32>
    %40 = arith.truncf %9 : vector<8x128xf32> to vector<8x128xbf16>
    %c0_19 = arith.constant 0 : index
    %c0_20 = arith.constant 0 : index
    %41 = vector.load %arg6[%c0_19, %c0_20] : memref<128x512xbf16, #tpu.memory_space<vmem>>, vector<128x512xbf16>
    %cst_21 = arith.constant dense<0.000000e+00> : vector<8x512xf32>
    %42 = tpu.matmul %40, %41, %cst_21 {dimension_numbers = #tpu.dot_dimension_numbers<[1], [0], [0], [1], [0, 0, 1, 1], [], []>} : vector<8x128xbf16>, vector<128x512xbf16>, vector<8x512xf32> -> vector<8x512xf32>
    %43 = arith.addf %39, %42 : vector<8x512xf32>
    %44 = arith.addf %43, %12 : vector<8x512xf32>
    %45 = vector.extract_strided_slice %44 {offsets = [0, 0], sizes = [8, 384], strides = [1, 1]} : vector<8x512xf32> to vector<8x384xf32>
    %46 = arith.negf %45 : vector<8x384xf32>
    %47 = math.exp %46 : vector<8x384xf32>
    %cst_22 = arith.constant 1.000000e+00 : f32
    %48 = vector.broadcast %cst_22 : f32 to vector<8x384xf32>
    %49 = arith.addf %48, %47 : vector<8x384xf32>
    %50 = arith.divf %48, %49 : vector<8x384xf32>
    %51 = vector.extract_strided_slice %44 {offsets = [0, 384], sizes = [8, 128], strides = [1, 1]} : vector<8x512xf32> to vector<8x128xf32>
    %52 = math.tanh %51 : vector<8x128xf32>
    %53 = vector.extract_strided_slice %50 {offsets = [0, 0], sizes = [8, 128], strides = [1, 1]} : vector<8x384xf32> to vector<8x128xf32>
    %54 = vector.extract_strided_slice %50 {offsets = [0, 128], sizes = [8, 128], strides = [1, 1]} : vector<8x384xf32> to vector<8x128xf32>
    %55 = vector.extract_strided_slice %50 {offsets = [0, 256], sizes = [8, 128], strides = [1, 1]} : vector<8x384xf32> to vector<8x128xf32>
    %56 = arith.mulf %54, %9 : vector<8x128xf32>
    %57 = arith.mulf %53, %52 : vector<8x128xf32>
    %58 = arith.addf %56, %57 : vector<8x128xf32>
    %59 = math.tanh %58 : vector<8x128xf32>
    %60 = arith.mulf %55, %59 : vector<8x128xf32>
    %c1_i32 = arith.constant 1 : i32
    %c8_i32_23 = arith.constant 8 : i32
    %61 = arith.muli %c1_i32, %c8_i32_23 : i32
    %62 = tpu.assume_multiple %61, 8 : i32
    %63 = arith.index_cast %62 : i32 to index
    %c0_24 = arith.constant 0 : index
    %64 = vector.load %arg11[%63, %c0_24] : memref<64x512xf32, #tpu.memory_space<vmem>>, vector<8x512xf32>
    %65 = arith.truncf %36 : vector<8x128xf32> to vector<8x128xbf16>
    %c0_25 = arith.constant 0 : index
    %c0_26 = arith.constant 0 : index
    %66 = vector.load %arg3[%c0_25, %c0_26] : memref<128x512xbf16, #tpu.memory_space<vmem>>, vector<128x512xbf16>
    %cst_27 = arith.constant dense<0.000000e+00> : vector<8x512xf32>
    %67 = tpu.matmul %65, %66, %cst_27 {dimension_numbers = #tpu.dot_dimension_numbers<[1], [0], [0], [1], [0, 0, 1, 1], [], []>} : vector<8x128xbf16>, vector<128x512xbf16>, vector<8x512xf32> -> vector<8x512xf32>
    %68 = arith.addf %64, %67 : vector<8x512xf32>
    %69 = vector.extract_strided_slice %68 {offsets = [0, 0], sizes = [8, 384], strides = [1, 1]} : vector<8x512xf32> to vector<8x384xf32>
    %70 = arith.negf %69 : vector<8x384xf32>
    %71 = math.exp %70 : vector<8x384xf32>
    %cst_28 = arith.constant 1.000000e+00 : f32
    %72 = vector.broadcast %cst_28 : f32 to vector<8x384xf32>
    %73 = arith.addf %72, %71 : vector<8x384xf32>
    %74 = arith.divf %72, %73 : vector<8x384xf32>
    %75 = vector.extract_strided_slice %68 {offsets = [0, 384], sizes = [8, 128], strides = [1, 1]} : vector<8x512xf32> to vector<8x128xf32>
    %76 = math.tanh %75 : vector<8x128xf32>
    %77 = vector.extract_strided_slice %74 {offsets = [0, 0], sizes = [8, 128], strides = [1, 1]} : vector<8x384xf32> to vector<8x128xf32>
    %78 = vector.extract_strided_slice %74 {offsets = [0, 128], sizes = [8, 128], strides = [1, 1]} : vector<8x384xf32> to vector<8x128xf32>
    %79 = vector.extract_strided_slice %74 {offsets = [0, 256], sizes = [8, 128], strides = [1, 1]} : vector<8x384xf32> to vector<8x128xf32>
    %80 = arith.mulf %78, %34 : vector<8x128xf32>
    %81 = arith.mulf %77, %76 : vector<8x128xf32>
    %82 = arith.addf %80, %81 : vector<8x128xf32>
    %83 = math.tanh %82 : vector<8x128xf32>
    %84 = arith.mulf %79, %83 : vector<8x128xf32>
    %85 = arith.truncf %84 : vector<8x128xf32> to vector<8x128xbf16>
    %c0_29 = arith.constant 0 : index
    %c0_30 = arith.constant 0 : index
    %86 = vector.load %arg5[%c0_29, %c0_30] : memref<128x512xbf16, #tpu.memory_space<vmem>>, vector<128x512xbf16>
    %cst_31 = arith.constant dense<0.000000e+00> : vector<8x512xf32>
    %87 = tpu.matmul %85, %86, %cst_31 {dimension_numbers = #tpu.dot_dimension_numbers<[1], [0], [0], [1], [0, 0, 1, 1], [], []>} : vector<8x128xbf16>, vector<128x512xbf16>, vector<8x512xf32> -> vector<8x512xf32>
    %88 = arith.truncf %60 : vector<8x128xf32> to vector<8x128xbf16>
    %c0_32 = arith.constant 0 : index
    %c0_33 = arith.constant 0 : index
    %89 = vector.load %arg6[%c0_32, %c0_33] : memref<128x512xbf16, #tpu.memory_space<vmem>>, vector<128x512xbf16>
    %cst_34 = arith.constant dense<0.000000e+00> : vector<8x512xf32>
    %90 = tpu.matmul %88, %89, %cst_34 {dimension_numbers = #tpu.dot_dimension_numbers<[1], [0], [0], [1], [0, 0, 1, 1], [], []>} : vector<8x128xbf16>, vector<128x512xbf16>, vector<8x512xf32> -> vector<8x512xf32>
    %91 = arith.addf %87, %90 : vector<8x512xf32>
    %92 = arith.addf %91, %12 : vector<8x512xf32>
    %93 = vector.extract_strided_slice %92 {offsets = [0, 0], sizes = [8, 384], strides = [1, 1]} : vector<8x512xf32> to vector<8x384xf32>
    %94 = arith.negf %93 : vector<8x384xf32>
    %95 = math.exp %94 : vector<8x384xf32>
    %cst_35 = arith.constant 1.000000e+00 : f32
    %96 = vector.broadcast %cst_35 : f32 to vector<8x384xf32>
    %97 = arith.addf %96, %95 : vector<8x384xf32>
    %98 = arith.divf %96, %97 : vector<8x384xf32>
    %99 = vector.extract_strided_slice %92 {offsets = [0, 384], sizes = [8, 128], strides = [1, 1]} : vector<8x512xf32> to vector<8x128xf32>
    %100 = math.tanh %99 : vector<8x128xf32>
    %101 = vector.extract_strided_slice %98 {offsets = [0, 0], sizes = [8, 128], strides = [1, 1]} : vector<8x384xf32> to vector<8x128xf32>
    %102 = vector.extract_strided_slice %98 {offsets = [0, 128], sizes = [8, 128], strides = [1, 1]} : vector<8x384xf32> to vector<8x128xf32>
    %103 = vector.extract_strided_slice %98 {offsets = [0, 256], sizes = [8, 128], strides = [1, 1]} : vector<8x384xf32> to vector<8x128xf32>
    %104 = arith.mulf %102, %58 : vector<8x128xf32>
    %105 = arith.mulf %101, %100 : vector<8x128xf32>
    %106 = arith.addf %104, %105 : vector<8x128xf32>
    %107 = math.tanh %106 : vector<8x128xf32>
    %108 = arith.mulf %103, %107 : vector<8x128xf32>
    %c2_i32 = arith.constant 2 : i32
    %c8_i32_36 = arith.constant 8 : i32
    %109 = arith.muli %c2_i32, %c8_i32_36 : i32
    %110 = tpu.assume_multiple %109, 8 : i32
    %111 = arith.index_cast %110 : i32 to index
    %c0_37 = arith.constant 0 : index
    %112 = vector.load %arg11[%111, %c0_37] : memref<64x512xf32, #tpu.memory_space<vmem>>, vector<8x512xf32>
    %113 = arith.truncf %84 : vector<8x128xf32> to vector<8x128xbf16>
    %c0_38 = arith.constant 0 : index
    %c0_39 = arith.constant 0 : index
    %114 = vector.load %arg3[%c0_38, %c0_39] : memref<128x512xbf16, #tpu.memory_space<vmem>>, vector<128x512xbf16>
    %cst_40 = arith.constant dense<0.000000e+00> : vector<8x512xf32>
    %115 = tpu.matmul %113, %114, %cst_40 {dimension_numbers = #tpu.dot_dimension_numbers<[1], [0], [0], [1], [0, 0, 1, 1], [], []>} : vector<8x128xbf16>, vector<128x512xbf16>, vector<8x512xf32> -> vector<8x512xf32>
    %116 = arith.addf %112, %115 : vector<8x512xf32>
    %117 = vector.extract_strided_slice %116 {offsets = [0, 0], sizes = [8, 384], strides = [1, 1]} : vector<8x512xf32> to vector<8x384xf32>
    %118 = arith.negf %117 : vector<8x384xf32>
    %119 = math.exp %118 : vector<8x384xf32>
    %cst_41 = arith.constant 1.000000e+00 : f32
    %120 = vector.broadcast %cst_41 : f32 to vector<8x384xf32>
    %121 = arith.addf %120, %119 : vector<8x384xf32>
    %122 = arith.divf %120, %121 : vector<8x384xf32>
    %123 = vector.extract_strided_slice %116 {offsets = [0, 384], sizes = [8, 128], strides = [1, 1]} : vector<8x512xf32> to vector<8x128xf32>
    %124 = math.tanh %123 : vector<8x128xf32>
    %125 = vector.extract_strided_slice %122 {offsets = [0, 0], sizes = [8, 128], strides = [1, 1]} : vector<8x384xf32> to vector<8x128xf32>
    %126 = vector.extract_strided_slice %122 {offsets = [0, 128], sizes = [8, 128], strides = [1, 1]} : vector<8x384xf32> to vector<8x128xf32>
    %127 = vector.extract_strided_slice %122 {offsets = [0, 256], sizes = [8, 128], strides = [1, 1]} : vector<8x384xf32> to vector<8x128xf32>
    %128 = arith.mulf %126, %82 : vector<8x128xf32>
    %129 = arith.mulf %125, %124 : vector<8x128xf32>
    %130 = arith.addf %128, %129 : vector<8x128xf32>
    %131 = math.tanh %130 : vector<8x128xf32>
    %132 = arith.mulf %127, %131 : vector<8x128xf32>
    %133 = arith.truncf %132 : vector<8x128xf32> to vector<8x128xbf16>
    %c0_42 = arith.constant 0 : index
    %c0_43 = arith.constant 0 : index
    %134 = vector.load %arg5[%c0_42, %c0_43] : memref<128x512xbf16, #tpu.memory_space<vmem>>, vector<128x512xbf16>
    %cst_44 = arith.constant dense<0.000000e+00> : vector<8x512xf32>
    %135 = tpu.matmul %133, %134, %cst_44 {dimension_numbers = #tpu.dot_dimension_numbers<[1], [0], [0], [1], [0, 0, 1, 1], [], []>} : vector<8x128xbf16>, vector<128x512xbf16>, vector<8x512xf32> -> vector<8x512xf32>
    %136 = arith.truncf %108 : vector<8x128xf32> to vector<8x128xbf16>
    %c0_45 = arith.constant 0 : index
    %c0_46 = arith.constant 0 : index
    %137 = vector.load %arg6[%c0_45, %c0_46] : memref<128x512xbf16, #tpu.memory_space<vmem>>, vector<128x512xbf16>
    %cst_47 = arith.constant dense<0.000000e+00> : vector<8x512xf32>
    %138 = tpu.matmul %136, %137, %cst_47 {dimension_numbers = #tpu.dot_dimension_numbers<[1], [0], [0], [1], [0, 0, 1, 1], [], []>} : vector<8x128xbf16>, vector<128x512xbf16>, vector<8x512xf32> -> vector<8x512xf32>
    %139 = arith.addf %135, %138 : vector<8x512xf32>
    %140 = arith.addf %139, %12 : vector<8x512xf32>
    %141 = vector.extract_strided_slice %140 {offsets = [0, 0], sizes = [8, 384], strides = [1, 1]} : vector<8x512xf32> to vector<8x384xf32>
    %142 = arith.negf %141 : vector<8x384xf32>
    %143 = math.exp %142 : vector<8x384xf32>
    %cst_48 = arith.constant 1.000000e+00 : f32
    %144 = vector.broadcast %cst_48 : f32 to vector<8x384xf32>
    %145 = arith.addf %144, %143 : vector<8x384xf32>
    %146 = arith.divf %144, %145 : vector<8x384xf32>
    %147 = vector.extract_strided_slice %140 {offsets = [0, 384], sizes = [8, 128], strides = [1, 1]} : vector<8x512xf32> to vector<8x128xf32>
    %148 = math.tanh %147 : vector<8x128xf32>
    %149 = vector.extract_strided_slice %146 {offsets = [0, 0], sizes = [8, 128], strides = [1, 1]} : vector<8x384xf32> to vector<8x128xf32>
    %150 = vector.extract_strided_slice %146 {offsets = [0, 128], sizes = [8, 128], strides = [1, 1]} : vector<8x384xf32> to vector<8x128xf32>
    %151 = vector.extract_strided_slice %146 {offsets = [0, 256], sizes = [8, 128], strides = [1, 1]} : vector<8x384xf32> to vector<8x128xf32>
    %152 = arith.mulf %150, %106 : vector<8x128xf32>
    %153 = arith.mulf %149, %148 : vector<8x128xf32>
    %154 = arith.addf %152, %153 : vector<8x128xf32>
    %155 = math.tanh %154 : vector<8x128xf32>
    %156 = arith.mulf %151, %155 : vector<8x128xf32>
    %c3_i32 = arith.constant 3 : i32
    %c8_i32_49 = arith.constant 8 : i32
    %157 = arith.muli %c3_i32, %c8_i32_49 : i32
    %158 = tpu.assume_multiple %157, 8 : i32
    %159 = arith.index_cast %158 : i32 to index
    %c0_50 = arith.constant 0 : index
    %160 = vector.load %arg11[%159, %c0_50] : memref<64x512xf32, #tpu.memory_space<vmem>>, vector<8x512xf32>
    %161 = arith.truncf %132 : vector<8x128xf32> to vector<8x128xbf16>
    %c0_51 = arith.constant 0 : index
    %c0_52 = arith.constant 0 : index
    %162 = vector.load %arg3[%c0_51, %c0_52] : memref<128x512xbf16, #tpu.memory_space<vmem>>, vector<128x512xbf16>
    %cst_53 = arith.constant dense<0.000000e+00> : vector<8x512xf32>
    %163 = tpu.matmul %161, %162, %cst_53 {dimension_numbers = #tpu.dot_dimension_numbers<[1], [0], [0], [1], [0, 0, 1, 1], [], []>} : vector<8x128xbf16>, vector<128x512xbf16>, vector<8x512xf32> -> vector<8x512xf32>
    %164 = arith.addf %160, %163 : vector<8x512xf32>
    %165 = vector.extract_strided_slice %164 {offsets = [0, 0], sizes = [8, 384], strides = [1, 1]} : vector<8x512xf32> to vector<8x384xf32>
    %166 = arith.negf %165 : vector<8x384xf32>
    %167 = math.exp %166 : vector<8x384xf32>
    %cst_54 = arith.constant 1.000000e+00 : f32
    %168 = vector.broadcast %cst_54 : f32 to vector<8x384xf32>
    %169 = arith.addf %168, %167 : vector<8x384xf32>
    %170 = arith.divf %168, %169 : vector<8x384xf32>
    %171 = vector.extract_strided_slice %164 {offsets = [0, 384], sizes = [8, 128], strides = [1, 1]} : vector<8x512xf32> to vector<8x128xf32>
    %172 = math.tanh %171 : vector<8x128xf32>
    %173 = vector.extract_strided_slice %170 {offsets = [0, 0], sizes = [8, 128], strides = [1, 1]} : vector<8x384xf32> to vector<8x128xf32>
    %174 = vector.extract_strided_slice %170 {offsets = [0, 128], sizes = [8, 128], strides = [1, 1]} : vector<8x384xf32> to vector<8x128xf32>
    %175 = vector.extract_strided_slice %170 {offsets = [0, 256], sizes = [8, 128], strides = [1, 1]} : vector<8x384xf32> to vector<8x128xf32>
    %176 = arith.mulf %174, %130 : vector<8x128xf32>
    %177 = arith.mulf %173, %172 : vector<8x128xf32>
    %178 = arith.addf %176, %177 : vector<8x128xf32>
    %179 = math.tanh %178 : vector<8x128xf32>
    %180 = arith.mulf %175, %179 : vector<8x128xf32>
    %181 = arith.truncf %180 : vector<8x128xf32> to vector<8x128xbf16>
    %c0_55 = arith.constant 0 : index
    %c0_56 = arith.constant 0 : index
    %182 = vector.load %arg5[%c0_55, %c0_56] : memref<128x512xbf16, #tpu.memory_space<vmem>>, vector<128x512xbf16>
    %cst_57 = arith.constant dense<0.000000e+00> : vector<8x512xf32>
    %183 = tpu.matmul %181, %182, %cst_57 {dimension_numbers = #tpu.dot_dimension_numbers<[1], [0], [0], [1], [0, 0, 1, 1], [], []>} : vector<8x128xbf16>, vector<128x512xbf16>, vector<8x512xf32> -> vector<8x512xf32>
    %184 = arith.truncf %156 : vector<8x128xf32> to vector<8x128xbf16>
    %c0_58 = arith.constant 0 : index
    %c0_59 = arith.constant 0 : index
    %185 = vector.load %arg6[%c0_58, %c0_59] : memref<128x512xbf16, #tpu.memory_space<vmem>>, vector<128x512xbf16>
    %cst_60 = arith.constant dense<0.000000e+00> : vector<8x512xf32>
    %186 = tpu.matmul %184, %185, %cst_60 {dimension_numbers = #tpu.dot_dimension_numbers<[1], [0], [0], [1], [0, 0, 1, 1], [], []>} : vector<8x128xbf16>, vector<128x512xbf16>, vector<8x512xf32> -> vector<8x512xf32>
    %187 = arith.addf %183, %186 : vector<8x512xf32>
    %188 = arith.addf %187, %12 : vector<8x512xf32>
    %189 = vector.extract_strided_slice %188 {offsets = [0, 0], sizes = [8, 384], strides = [1, 1]} : vector<8x512xf32> to vector<8x384xf32>
    %190 = arith.negf %189 : vector<8x384xf32>
    %191 = math.exp %190 : vector<8x384xf32>
    %cst_61 = arith.constant 1.000000e+00 : f32
    %192 = vector.broadcast %cst_61 : f32 to vector<8x384xf32>
    %193 = arith.addf %192, %191 : vector<8x384xf32>
    %194 = arith.divf %192, %193 : vector<8x384xf32>
    %195 = vector.extract_strided_slice %188 {offsets = [0, 384], sizes = [8, 128], strides = [1, 1]} : vector<8x512xf32> to vector<8x128xf32>
    %196 = math.tanh %195 : vector<8x128xf32>
    %197 = vector.extract_strided_slice %194 {offsets = [0, 0], sizes = [8, 128], strides = [1, 1]} : vector<8x384xf32> to vector<8x128xf32>
    %198 = vector.extract_strided_slice %194 {offsets = [0, 128], sizes = [8, 128], strides = [1, 1]} : vector<8x384xf32> to vector<8x128xf32>
    %199 = vector.extract_strided_slice %194 {offsets = [0, 256], sizes = [8, 128], strides = [1, 1]} : vector<8x384xf32> to vector<8x128xf32>
    %200 = arith.mulf %198, %154 : vector<8x128xf32>
    %201 = arith.mulf %197, %196 : vector<8x128xf32>
    %202 = arith.addf %200, %201 : vector<8x128xf32>
    %203 = math.tanh %202 : vector<8x128xf32>
    %204 = arith.mulf %199, %203 : vector<8x128xf32>
    %c4_i32 = arith.constant 4 : i32
    %c8_i32_62 = arith.constant 8 : i32
    %205 = arith.muli %c4_i32, %c8_i32_62 : i32
    %206 = tpu.assume_multiple %205, 8 : i32
    %207 = arith.index_cast %206 : i32 to index
    %c0_63 = arith.constant 0 : index
    %208 = vector.load %arg11[%207, %c0_63] : memref<64x512xf32, #tpu.memory_space<vmem>>, vector<8x512xf32>
    %209 = arith.truncf %180 : vector<8x128xf32> to vector<8x128xbf16>
    %c0_64 = arith.constant 0 : index
    %c0_65 = arith.constant 0 : index
    %210 = vector.load %arg3[%c0_64, %c0_65] : memref<128x512xbf16, #tpu.memory_space<vmem>>, vector<128x512xbf16>
    %cst_66 = arith.constant dense<0.000000e+00> : vector<8x512xf32>
    %211 = tpu.matmul %209, %210, %cst_66 {dimension_numbers = #tpu.dot_dimension_numbers<[1], [0], [0], [1], [0, 0, 1, 1], [], []>} : vector<8x128xbf16>, vector<128x512xbf16>, vector<8x512xf32> -> vector<8x512xf32>
    %212 = arith.addf %208, %211 : vector<8x512xf32>
    %213 = vector.extract_strided_slice %212 {offsets = [0, 0], sizes = [8, 384], strides = [1, 1]} : vector<8x512xf32> to vector<8x384xf32>
    %214 = arith.negf %213 : vector<8x384xf32>
    %215 = math.exp %214 : vector<8x384xf32>
    %cst_67 = arith.constant 1.000000e+00 : f32
    %216 = vector.broadcast %cst_67 : f32 to vector<8x384xf32>
    %217 = arith.addf %216, %215 : vector<8x384xf32>
    %218 = arith.divf %216, %217 : vector<8x384xf32>
    %219 = vector.extract_strided_slice %212 {offsets = [0, 384], sizes = [8, 128], strides = [1, 1]} : vector<8x512xf32> to vector<8x128xf32>
    %220 = math.tanh %219 : vector<8x128xf32>
    %221 = vector.extract_strided_slice %218 {offsets = [0, 0], sizes = [8, 128], strides = [1, 1]} : vector<8x384xf32> to vector<8x128xf32>
    %222 = vector.extract_strided_slice %218 {offsets = [0, 128], sizes = [8, 128], strides = [1, 1]} : vector<8x384xf32> to vector<8x128xf32>
    %223 = vector.extract_strided_slice %218 {offsets = [0, 256], sizes = [8, 128], strides = [1, 1]} : vector<8x384xf32> to vector<8x128xf32>
    %224 = arith.mulf %222, %178 : vector<8x128xf32>
    %225 = arith.mulf %221, %220 : vector<8x128xf32>
    %226 = arith.addf %224, %225 : vector<8x128xf32>
    %227 = math.tanh %226 : vector<8x128xf32>
    %228 = arith.mulf %223, %227 : vector<8x128xf32>
    %229 = arith.truncf %228 : vector<8x128xf32> to vector<8x128xbf16>
    %c0_68 = arith.constant 0 : index
    %c0_69 = arith.constant 0 : index
    %230 = vector.load %arg5[%c0_68, %c0_69] : memref<128x512xbf16, #tpu.memory_space<vmem>>, vector<128x512xbf16>
    %cst_70 = arith.constant dense<0.000000e+00> : vector<8x512xf32>
    %231 = tpu.matmul %229, %230, %cst_70 {dimension_numbers = #tpu.dot_dimension_numbers<[1], [0], [0], [1], [0, 0, 1, 1], [], []>} : vector<8x128xbf16>, vector<128x512xbf16>, vector<8x512xf32> -> vector<8x512xf32>
    %232 = arith.truncf %204 : vector<8x128xf32> to vector<8x128xbf16>
    %c0_71 = arith.constant 0 : index
    %c0_72 = arith.constant 0 : index
    %233 = vector.load %arg6[%c0_71, %c0_72] : memref<128x512xbf16, #tpu.memory_space<vmem>>, vector<128x512xbf16>
    %cst_73 = arith.constant dense<0.000000e+00> : vector<8x512xf32>
    %234 = tpu.matmul %232, %233, %cst_73 {dimension_numbers = #tpu.dot_dimension_numbers<[1], [0], [0], [1], [0, 0, 1, 1], [], []>} : vector<8x128xbf16>, vector<128x512xbf16>, vector<8x512xf32> -> vector<8x512xf32>
    %235 = arith.addf %231, %234 : vector<8x512xf32>
    %236 = arith.addf %235, %12 : vector<8x512xf32>
    %237 = vector.extract_strided_slice %236 {offsets = [0, 0], sizes = [8, 384], strides = [1, 1]} : vector<8x512xf32> to vector<8x384xf32>
    %238 = arith.negf %237 : vector<8x384xf32>
    %239 = math.exp %238 : vector<8x384xf32>
    %cst_74 = arith.constant 1.000000e+00 : f32
    %240 = vector.broadcast %cst_74 : f32 to vector<8x384xf32>
    %241 = arith.addf %240, %239 : vector<8x384xf32>
    %242 = arith.divf %240, %241 : vector<8x384xf32>
    %243 = vector.extract_strided_slice %236 {offsets = [0, 384], sizes = [8, 128], strides = [1, 1]} : vector<8x512xf32> to vector<8x128xf32>
    %244 = math.tanh %243 : vector<8x128xf32>
    %245 = vector.extract_strided_slice %242 {offsets = [0, 0], sizes = [8, 128], strides = [1, 1]} : vector<8x384xf32> to vector<8x128xf32>
    %246 = vector.extract_strided_slice %242 {offsets = [0, 128], sizes = [8, 128], strides = [1, 1]} : vector<8x384xf32> to vector<8x128xf32>
    %247 = vector.extract_strided_slice %242 {offsets = [0, 256], sizes = [8, 128], strides = [1, 1]} : vector<8x384xf32> to vector<8x128xf32>
    %248 = arith.mulf %246, %202 : vector<8x128xf32>
    %249 = arith.mulf %245, %244 : vector<8x128xf32>
    %250 = arith.addf %248, %249 : vector<8x128xf32>
    %251 = math.tanh %250 : vector<8x128xf32>
    %252 = arith.mulf %247, %251 : vector<8x128xf32>
    %c5_i32 = arith.constant 5 : i32
    %c8_i32_75 = arith.constant 8 : i32
    %253 = arith.muli %c5_i32, %c8_i32_75 : i32
    %254 = tpu.assume_multiple %253, 8 : i32
    %255 = arith.index_cast %254 : i32 to index
    %c0_76 = arith.constant 0 : index
    %256 = vector.load %arg11[%255, %c0_76] : memref<64x512xf32, #tpu.memory_space<vmem>>, vector<8x512xf32>
    %257 = arith.truncf %228 : vector<8x128xf32> to vector<8x128xbf16>
    %c0_77 = arith.constant 0 : index
    %c0_78 = arith.constant 0 : index
    %258 = vector.load %arg3[%c0_77, %c0_78] : memref<128x512xbf16, #tpu.memory_space<vmem>>, vector<128x512xbf16>
    %cst_79 = arith.constant dense<0.000000e+00> : vector<8x512xf32>
    %259 = tpu.matmul %257, %258, %cst_79 {dimension_numbers = #tpu.dot_dimension_numbers<[1], [0], [0], [1], [0, 0, 1, 1], [], []>} : vector<8x128xbf16>, vector<128x512xbf16>, vector<8x512xf32> -> vector<8x512xf32>
    %260 = arith.addf %256, %259 : vector<8x512xf32>
    %261 = vector.extract_strided_slice %260 {offsets = [0, 0], sizes = [8, 384], strides = [1, 1]} : vector<8x512xf32> to vector<8x384xf32>
    %262 = arith.negf %261 : vector<8x384xf32>
    %263 = math.exp %262 : vector<8x384xf32>
    %cst_80 = arith.constant 1.000000e+00 : f32
    %264 = vector.broadcast %cst_80 : f32 to vector<8x384xf32>
    %265 = arith.addf %264, %263 : vector<8x384xf32>
    %266 = arith.divf %264, %265 : vector<8x384xf32>
    %267 = vector.extract_strided_slice %260 {offsets = [0, 384], sizes = [8, 128], strides = [1, 1]} : vector<8x512xf32> to vector<8x128xf32>
    %268 = math.tanh %267 : vector<8x128xf32>
    %269 = vector.extract_strided_slice %266 {offsets = [0, 0], sizes = [8, 128], strides = [1, 1]} : vector<8x384xf32> to vector<8x128xf32>
    %270 = vector.extract_strided_slice %266 {offsets = [0, 128], sizes = [8, 128], strides = [1, 1]} : vector<8x384xf32> to vector<8x128xf32>
    %271 = vector.extract_strided_slice %266 {offsets = [0, 256], sizes = [8, 128], strides = [1, 1]} : vector<8x384xf32> to vector<8x128xf32>
    %272 = arith.mulf %270, %226 : vector<8x128xf32>
    %273 = arith.mulf %269, %268 : vector<8x128xf32>
    %274 = arith.addf %272, %273 : vector<8x128xf32>
    %275 = math.tanh %274 : vector<8x128xf32>
    %276 = arith.mulf %271, %275 : vector<8x128xf32>
    %277 = arith.truncf %276 : vector<8x128xf32> to vector<8x128xbf16>
    %c0_81 = arith.constant 0 : index
    %c0_82 = arith.constant 0 : index
    %278 = vector.load %arg5[%c0_81, %c0_82] : memref<128x512xbf16, #tpu.memory_space<vmem>>, vector<128x512xbf16>
    %cst_83 = arith.constant dense<0.000000e+00> : vector<8x512xf32>
    %279 = tpu.matmul %277, %278, %cst_83 {dimension_numbers = #tpu.dot_dimension_numbers<[1], [0], [0], [1], [0, 0, 1, 1], [], []>} : vector<8x128xbf16>, vector<128x512xbf16>, vector<8x512xf32> -> vector<8x512xf32>
    %280 = arith.truncf %252 : vector<8x128xf32> to vector<8x128xbf16>
    %c0_84 = arith.constant 0 : index
    %c0_85 = arith.constant 0 : index
    %281 = vector.load %arg6[%c0_84, %c0_85] : memref<128x512xbf16, #tpu.memory_space<vmem>>, vector<128x512xbf16>
    %cst_86 = arith.constant dense<0.000000e+00> : vector<8x512xf32>
    %282 = tpu.matmul %280, %281, %cst_86 {dimension_numbers = #tpu.dot_dimension_numbers<[1], [0], [0], [1], [0, 0, 1, 1], [], []>} : vector<8x128xbf16>, vector<128x512xbf16>, vector<8x512xf32> -> vector<8x512xf32>
    %283 = arith.addf %279, %282 : vector<8x512xf32>
    %284 = arith.addf %283, %12 : vector<8x512xf32>
    %285 = vector.extract_strided_slice %284 {offsets = [0, 0], sizes = [8, 384], strides = [1, 1]} : vector<8x512xf32> to vector<8x384xf32>
    %286 = arith.negf %285 : vector<8x384xf32>
    %287 = math.exp %286 : vector<8x384xf32>
    %cst_87 = arith.constant 1.000000e+00 : f32
    %288 = vector.broadcast %cst_87 : f32 to vector<8x384xf32>
    %289 = arith.addf %288, %287 : vector<8x384xf32>
    %290 = arith.divf %288, %289 : vector<8x384xf32>
    %291 = vector.extract_strided_slice %284 {offsets = [0, 384], sizes = [8, 128], strides = [1, 1]} : vector<8x512xf32> to vector<8x128xf32>
    %292 = math.tanh %291 : vector<8x128xf32>
    %293 = vector.extract_strided_slice %290 {offsets = [0, 0], sizes = [8, 128], strides = [1, 1]} : vector<8x384xf32> to vector<8x128xf32>
    %294 = vector.extract_strided_slice %290 {offsets = [0, 128], sizes = [8, 128], strides = [1, 1]} : vector<8x384xf32> to vector<8x128xf32>
    %295 = vector.extract_strided_slice %290 {offsets = [0, 256], sizes = [8, 128], strides = [1, 1]} : vector<8x384xf32> to vector<8x128xf32>
    %296 = arith.mulf %294, %250 : vector<8x128xf32>
    %297 = arith.mulf %293, %292 : vector<8x128xf32>
    %298 = arith.addf %296, %297 : vector<8x128xf32>
    %299 = math.tanh %298 : vector<8x128xf32>
    %300 = arith.mulf %295, %299 : vector<8x128xf32>
    %c6_i32 = arith.constant 6 : i32
    %c8_i32_88 = arith.constant 8 : i32
    %301 = arith.muli %c6_i32, %c8_i32_88 : i32
    %302 = tpu.assume_multiple %301, 8 : i32
    %303 = arith.index_cast %302 : i32 to index
    %c0_89 = arith.constant 0 : index
    %304 = vector.load %arg11[%303, %c0_89] : memref<64x512xf32, #tpu.memory_space<vmem>>, vector<8x512xf32>
    %305 = arith.truncf %276 : vector<8x128xf32> to vector<8x128xbf16>
    %c0_90 = arith.constant 0 : index
    %c0_91 = arith.constant 0 : index
    %306 = vector.load %arg3[%c0_90, %c0_91] : memref<128x512xbf16, #tpu.memory_space<vmem>>, vector<128x512xbf16>
    %cst_92 = arith.constant dense<0.000000e+00> : vector<8x512xf32>
    %307 = tpu.matmul %305, %306, %cst_92 {dimension_numbers = #tpu.dot_dimension_numbers<[1], [0], [0], [1], [0, 0, 1, 1], [], []>} : vector<8x128xbf16>, vector<128x512xbf16>, vector<8x512xf32> -> vector<8x512xf32>
    %308 = arith.addf %304, %307 : vector<8x512xf32>
    %309 = vector.extract_strided_slice %308 {offsets = [0, 0], sizes = [8, 384], strides = [1, 1]} : vector<8x512xf32> to vector<8x384xf32>
    %310 = arith.negf %309 : vector<8x384xf32>
    %311 = math.exp %310 : vector<8x384xf32>
    %cst_93 = arith.constant 1.000000e+00 : f32
    %312 = vector.broadcast %cst_93 : f32 to vector<8x384xf32>
    %313 = arith.addf %312, %311 : vector<8x384xf32>
    %314 = arith.divf %312, %313 : vector<8x384xf32>
    %315 = vector.extract_strided_slice %308 {offsets = [0, 384], sizes = [8, 128], strides = [1, 1]} : vector<8x512xf32> to vector<8x128xf32>
    %316 = math.tanh %315 : vector<8x128xf32>
    %317 = vector.extract_strided_slice %314 {offsets = [0, 0], sizes = [8, 128], strides = [1, 1]} : vector<8x384xf32> to vector<8x128xf32>
    %318 = vector.extract_strided_slice %314 {offsets = [0, 128], sizes = [8, 128], strides = [1, 1]} : vector<8x384xf32> to vector<8x128xf32>
    %319 = vector.extract_strided_slice %314 {offsets = [0, 256], sizes = [8, 128], strides = [1, 1]} : vector<8x384xf32> to vector<8x128xf32>
    %320 = arith.mulf %318, %274 : vector<8x128xf32>
    %321 = arith.mulf %317, %316 : vector<8x128xf32>
    %322 = arith.addf %320, %321 : vector<8x128xf32>
    %323 = math.tanh %322 : vector<8x128xf32>
    %324 = arith.mulf %319, %323 : vector<8x128xf32>
    %325 = arith.truncf %324 : vector<8x128xf32> to vector<8x128xbf16>
    %c0_94 = arith.constant 0 : index
    %c0_95 = arith.constant 0 : index
    %326 = vector.load %arg5[%c0_94, %c0_95] : memref<128x512xbf16, #tpu.memory_space<vmem>>, vector<128x512xbf16>
    %cst_96 = arith.constant dense<0.000000e+00> : vector<8x512xf32>
    %327 = tpu.matmul %325, %326, %cst_96 {dimension_numbers = #tpu.dot_dimension_numbers<[1], [0], [0], [1], [0, 0, 1, 1], [], []>} : vector<8x128xbf16>, vector<128x512xbf16>, vector<8x512xf32> -> vector<8x512xf32>
    %328 = arith.truncf %300 : vector<8x128xf32> to vector<8x128xbf16>
    %c0_97 = arith.constant 0 : index
    %c0_98 = arith.constant 0 : index
    %329 = vector.load %arg6[%c0_97, %c0_98] : memref<128x512xbf16, #tpu.memory_space<vmem>>, vector<128x512xbf16>
    %cst_99 = arith.constant dense<0.000000e+00> : vector<8x512xf32>
    %330 = tpu.matmul %328, %329, %cst_99 {dimension_numbers = #tpu.dot_dimension_numbers<[1], [0], [0], [1], [0, 0, 1, 1], [], []>} : vector<8x128xbf16>, vector<128x512xbf16>, vector<8x512xf32> -> vector<8x512xf32>
    %331 = arith.addf %327, %330 : vector<8x512xf32>
    %332 = arith.addf %331, %12 : vector<8x512xf32>
    %333 = vector.extract_strided_slice %332 {offsets = [0, 0], sizes = [8, 384], strides = [1, 1]} : vector<8x512xf32> to vector<8x384xf32>
    %334 = arith.negf %333 : vector<8x384xf32>
    %335 = math.exp %334 : vector<8x384xf32>
    %cst_100 = arith.constant 1.000000e+00 : f32
    %336 = vector.broadcast %cst_100 : f32 to vector<8x384xf32>
    %337 = arith.addf %336, %335 : vector<8x384xf32>
    %338 = arith.divf %336, %337 : vector<8x384xf32>
    %339 = vector.extract_strided_slice %332 {offsets = [0, 384], sizes = [8, 128], strides = [1, 1]} : vector<8x512xf32> to vector<8x128xf32>
    %340 = math.tanh %339 : vector<8x128xf32>
    %341 = vector.extract_strided_slice %338 {offsets = [0, 0], sizes = [8, 128], strides = [1, 1]} : vector<8x384xf32> to vector<8x128xf32>
    %342 = vector.extract_strided_slice %338 {offsets = [0, 128], sizes = [8, 128], strides = [1, 1]} : vector<8x384xf32> to vector<8x128xf32>
    %343 = vector.extract_strided_slice %338 {offsets = [0, 256], sizes = [8, 128], strides = [1, 1]} : vector<8x384xf32> to vector<8x128xf32>
    %344 = arith.mulf %342, %298 : vector<8x128xf32>
    %345 = arith.mulf %341, %340 : vector<8x128xf32>
    %346 = arith.addf %344, %345 : vector<8x128xf32>
    %347 = math.tanh %346 : vector<8x128xf32>
    %348 = arith.mulf %343, %347 : vector<8x128xf32>
    %c7_i32 = arith.constant 7 : i32
    %c8_i32_101 = arith.constant 8 : i32
    %349 = arith.muli %c7_i32, %c8_i32_101 : i32
    %350 = tpu.assume_multiple %349, 8 : i32
    %351 = arith.index_cast %350 : i32 to index
    %c0_102 = arith.constant 0 : index
    %352 = vector.load %arg11[%351, %c0_102] : memref<64x512xf32, #tpu.memory_space<vmem>>, vector<8x512xf32>
    %353 = arith.truncf %324 : vector<8x128xf32> to vector<8x128xbf16>
    %c0_103 = arith.constant 0 : index
    %c0_104 = arith.constant 0 : index
    %354 = vector.load %arg3[%c0_103, %c0_104] : memref<128x512xbf16, #tpu.memory_space<vmem>>, vector<128x512xbf16>
    %cst_105 = arith.constant dense<0.000000e+00> : vector<8x512xf32>
    %355 = tpu.matmul %353, %354, %cst_105 {dimension_numbers = #tpu.dot_dimension_numbers<[1], [0], [0], [1], [0, 0, 1, 1], [], []>} : vector<8x128xbf16>, vector<128x512xbf16>, vector<8x512xf32> -> vector<8x512xf32>
    %356 = arith.addf %352, %355 : vector<8x512xf32>
    %357 = vector.extract_strided_slice %356 {offsets = [0, 0], sizes = [8, 384], strides = [1, 1]} : vector<8x512xf32> to vector<8x384xf32>
    %358 = arith.negf %357 : vector<8x384xf32>
    %359 = math.exp %358 : vector<8x384xf32>
    %cst_106 = arith.constant 1.000000e+00 : f32
    %360 = vector.broadcast %cst_106 : f32 to vector<8x384xf32>
    %361 = arith.addf %360, %359 : vector<8x384xf32>
    %362 = arith.divf %360, %361 : vector<8x384xf32>
    %363 = vector.extract_strided_slice %356 {offsets = [0, 384], sizes = [8, 128], strides = [1, 1]} : vector<8x512xf32> to vector<8x128xf32>
    %364 = math.tanh %363 : vector<8x128xf32>
    %365 = vector.extract_strided_slice %362 {offsets = [0, 0], sizes = [8, 128], strides = [1, 1]} : vector<8x384xf32> to vector<8x128xf32>
    %366 = vector.extract_strided_slice %362 {offsets = [0, 128], sizes = [8, 128], strides = [1, 1]} : vector<8x384xf32> to vector<8x128xf32>
    %367 = vector.extract_strided_slice %362 {offsets = [0, 256], sizes = [8, 128], strides = [1, 1]} : vector<8x384xf32> to vector<8x128xf32>
    %368 = arith.mulf %366, %322 : vector<8x128xf32>
    %369 = arith.mulf %365, %364 : vector<8x128xf32>
    %370 = arith.addf %368, %369 : vector<8x128xf32>
    %371 = math.tanh %370 : vector<8x128xf32>
    %372 = arith.mulf %367, %371 : vector<8x128xf32>
    %373 = arith.truncf %372 : vector<8x128xf32> to vector<8x128xbf16>
    %c0_107 = arith.constant 0 : index
    %c0_108 = arith.constant 0 : index
    %374 = vector.load %arg5[%c0_107, %c0_108] : memref<128x512xbf16, #tpu.memory_space<vmem>>, vector<128x512xbf16>
    %cst_109 = arith.constant dense<0.000000e+00> : vector<8x512xf32>
    %375 = tpu.matmul %373, %374, %cst_109 {dimension_numbers = #tpu.dot_dimension_numbers<[1], [0], [0], [1], [0, 0, 1, 1], [], []>} : vector<8x128xbf16>, vector<128x512xbf16>, vector<8x512xf32> -> vector<8x512xf32>
    %376 = arith.truncf %348 : vector<8x128xf32> to vector<8x128xbf16>
    %c0_110 = arith.constant 0 : index
    %c0_111 = arith.constant 0 : index
    %377 = vector.load %arg6[%c0_110, %c0_111] : memref<128x512xbf16, #tpu.memory_space<vmem>>, vector<128x512xbf16>
    %cst_112 = arith.constant dense<0.000000e+00> : vector<8x512xf32>
    %378 = tpu.matmul %376, %377, %cst_112 {dimension_numbers = #tpu.dot_dimension_numbers<[1], [0], [0], [1], [0, 0, 1, 1], [], []>} : vector<8x128xbf16>, vector<128x512xbf16>, vector<8x512xf32> -> vector<8x512xf32>
    %379 = arith.addf %375, %378 : vector<8x512xf32>
    %380 = arith.addf %379, %12 : vector<8x512xf32>
    %381 = vector.extract_strided_slice %380 {offsets = [0, 0], sizes = [8, 384], strides = [1, 1]} : vector<8x512xf32> to vector<8x384xf32>
    %382 = arith.negf %381 : vector<8x384xf32>
    %383 = math.exp %382 : vector<8x384xf32>
    %cst_113 = arith.constant 1.000000e+00 : f32
    %384 = vector.broadcast %cst_113 : f32 to vector<8x384xf32>
    %385 = arith.addf %384, %383 : vector<8x384xf32>
    %386 = arith.divf %384, %385 : vector<8x384xf32>
    %387 = vector.extract_strided_slice %380 {offsets = [0, 384], sizes = [8, 128], strides = [1, 1]} : vector<8x512xf32> to vector<8x128xf32>
    %388 = math.tanh %387 : vector<8x128xf32>
    %389 = vector.extract_strided_slice %386 {offsets = [0, 0], sizes = [8, 128], strides = [1, 1]} : vector<8x384xf32> to vector<8x128xf32>
    %390 = vector.extract_strided_slice %386 {offsets = [0, 128], sizes = [8, 128], strides = [1, 1]} : vector<8x384xf32> to vector<8x128xf32>
    %391 = vector.extract_strided_slice %386 {offsets = [0, 256], sizes = [8, 128], strides = [1, 1]} : vector<8x384xf32> to vector<8x128xf32>
    %392 = arith.mulf %390, %346 : vector<8x128xf32>
    %393 = arith.mulf %389, %388 : vector<8x128xf32>
    %394 = arith.addf %392, %393 : vector<8x128xf32>
    %395 = math.tanh %394 : vector<8x128xf32>
    %396 = arith.mulf %391, %395 : vector<8x128xf32>
    %c8_i32_114 = arith.constant 8 : i32
    %397 = arith.truncf %396 : vector<8x128xf32> to vector<8x128xbf16>
    %c0_115 = arith.constant 0 : index
    %c0_116 = arith.constant 0 : index
    %398 = vector.load %arg8[%c0_115, %c0_116] : memref<128x128xbf16, #tpu.memory_space<vmem>>, vector<128x128xbf16>
    %cst_117 = arith.constant dense<0.000000e+00> : vector<8x128xf32>
    %399 = tpu.matmul %397, %398, %cst_117 {dimension_numbers = #tpu.dot_dimension_numbers<[1], [0], [0], [1], [0, 0, 1, 1], [], []>} : vector<8x128xbf16>, vector<128x128xbf16>, vector<8x128xf32> -> vector<8x128xf32>
    %c0_118 = arith.constant 0 : index
    %c0_119 = arith.constant 0 : index
    %400 = vector.load %arg9[%c0_118, %c0_119] : memref<1x128xf32, #tpu.memory_space<vmem>>, vector<1x128xf32>
    %401 = vector.broadcast %400 : vector<1x128xf32> to vector<8x128xf32>
    %402 = arith.addf %399, %401 : vector<8x128xf32>
    %c0_120 = arith.constant 0 : index
    %c0_121 = arith.constant 0 : index
    %c0_122 = arith.constant 0 : index
    %403 = vector.load %arg10[%c0_120, %c0_121, %c0_122] : memref<1x8x128xf32, #tpu.memory_space<vmem>>, vector<1x8x128xf32>
    %404 = vector.shape_cast %403 : vector<1x8x128xf32> to vector<8x128xf32>
    %405 = vector.shape_cast %402 : vector<8x128xf32> to vector<1x8x128xf32>
    tpu.vector_store %arg10[%c0_120, %c0_121, %c0_122], %405 {strides = array<i32>} : memref<1x8x128xf32, #tpu.memory_space<vmem>>, vector<1x8x128xf32>,
    return
  }
  func.func @transform_0(%arg0: i32) -> (i32, i32, i32) {
    %c0_i32 = arith.constant 0 : i32
    %c0_i32_0 = arith.constant 0 : i32
    %c0_i32_1 = arith.constant 0 : i32
    return %arg0, %c0_i32, %c0_i32_0 : i32, i32, i32
  }
  func.func @transform_1(%arg0: i32) -> (i32, i32) {
    %c0_i32 = arith.constant 0 : i32
    %c0_i32_0 = arith.constant 0 : i32
    %c0_i32_1 = arith.constant 0 : i32
    return %c0_i32, %c0_i32_0 : i32, i32
  }
  func.func @transform_2(%arg0: i32) -> (i32, i32) {
    %c0_i32 = arith.constant 0 : i32
    %c0_i32_0 = arith.constant 0 : i32
    %c0_i32_1 = arith.constant 0 : i32
    return %c0_i32, %c0_i32_0 : i32, i32
  }
  func.func @transform_3(%arg0: i32) -> (i32, i32) {
    %c0_i32 = arith.constant 0 : i32
    %c0_i32_0 = arith.constant 0 : i32
    %c0_i32_1 = arith.constant 0 : i32
    return %c0_i32, %c0_i32_0 : i32, i32
  }
  func.func @transform_4(%arg0: i32) -> (i32, i32) {
    %c0_i32 = arith.constant 0 : i32
    %c0_i32_0 = arith.constant 0 : i32
    %c0_i32_1 = arith.constant 0 : i32
    return %c0_i32, %c0_i32_0 : i32, i32
  }
  func.func @transform_5(%arg0: i32) -> (i32, i32) {
    %c0_i32 = arith.constant 0 : i32
    %c0_i32_0 = arith.constant 0 : i32
    %c0_i32_1 = arith.constant 0 : i32
    return %c0_i32, %c0_i32_0 : i32, i32
  }
  func.func @transform_6(%arg0: i32) -> (i32, i32) {
    %c0_i32 = arith.constant 0 : i32
    %c0_i32_0 = arith.constant 0 : i32
    %c0_i32_1 = arith.constant 0 : i32
    return %c0_i32, %c0_i32_0 : i32, i32
  }
  func.func @transform_7(%arg0: i32) -> (i32, i32) {
    %c0_i32 = arith.constant 0 : i32
    %c0_i32_0 = arith.constant 0 : i32
    %c0_i32_1 = arith.constant 0 : i32
    return %c0_i32, %c0_i32_0 : i32, i32
  }
  func.func @transform_8(%arg0: i32) -> (i32, i32) {
    %c0_i32 = arith.constant 0 : i32
    %c0_i32_0 = arith.constant 0 : i32
    %c0_i32_1 = arith.constant 0 : i32
    return %c0_i32, %c0_i32_0 : i32, i32
  }
  func.func @transform_9(%arg0: i32) -> (i32, i32, i32) {
    %c0_i32 = arith.constant 0 : i32
    %c0_i32_0 = arith.constant 0 : i32
    %c0_i32_1 = arith.constant 0 : i32
    return %arg0, %c0_i32, %c0_i32_0 : i32, i32, i32
  }
}

</mosaic_0001>

<llo_original>
// kernel: tpu_custom_call.1
$region0: #{tpu_custom_call.1}
  #allocation0 [shape = 'u32[]', space=smem, size = 0x4, offset = 0x4, fixed_abs, tag = 'smem constant byte address 0x4 - core index']
  #allocation1 [shape = 'u32[144,128]{1,0:T(1,128)}', space=vmem, size = 0x12000, scoped, tag = 'internal scratch']
  #allocation2 [shape = 'f32[64,512]{1,0:T(8,128)}', space=vmem, size = 0x20000, scoped, tag = 'scratch operand']
  %s0 = inlined_call_operand.vmem [shape: f32[1,64,4], index: 0, kind: input, shape index: {}]
  %s1 = inlined_call_operand.vmem [shape: bf16[4,512], index: 1, kind: input, shape index: {}]
  %s2 = inlined_call_operand.hbm [shape: bf16[128,512], index: 2, kind: input, shape index: {}]
  %s3 = inlined_call_operand.vmem [shape: f32[1,512], index: 3, kind: input, shape index: {}]
  %s4 = inlined_call_operand.hbm [shape: bf16[128,512], index: 4, kind: input, shape index: {}]
  %s5 = inlined_call_operand.hbm [shape: bf16[128,512], index: 5, kind: input, shape index: {}]
  %s6 = inlined_call_operand.vmem [shape: f32[1,512], index: 6, kind: input, shape index: {}]
  %s7 = inlined_call_operand.vmem [shape: bf16[128,128], index: 7, kind: input, shape index: {}]
  %s8 = inlined_call_operand.vmem [shape: f32[1,128], index: 8, kind: input, shape index: {}]
  %s9 = inlined_call_operand.hbm [shape: f32[1,8,128], index: 9, kind: output, shape index: {}]
  %s10 = sld [smem:[#allocation0]]
  $region58: #{tpu_custom_call.1} parent=0
    _
  %s12 = ssub.s32 1, %s10
  %s13 = scalar_select 0, %s12, %s10
  $region1: #{tpu_custom_call.1} parent=0
    #allocation3 [shape = 'u8[131072]{0}', space=vmem, size = 0x20000, scoped, tag = 'input window, operand 2, single buffered']
    #allocation4 [shape = 's32[1]{0}', space=sflag, size = 0x4, scoped, tag = 'scoped memory for tpu_custom_call.1']
    #allocation5 [shape = 's32[1]{0}', space=sflag, size = 0x4, scoped, tag = 'scoped memory for tpu_custom_call.1']
    #allocation6 [shape = 'u8[131072]{0}', space=vmem, size = 0x20000, scoped, tag = 'input window, operand 4, single buffered']
    #allocation7 [shape = 's32[1]{0}', space=sflag, size = 0x4, scoped, tag = 'scoped memory for tpu_custom_call.1']
    #allocation8 [shape = 'u8[131072]{0}', space=vmem, size = 0x20000, scoped, tag = 'input window, operand 5, single buffered']
    #allocation9 [shape = 'u8[4096]{0}', space=vmem, size = 0x1000, scoped, tag = 'output window, operand 0, single buffered']
    %14 = vsyncpa [#allocation4], 0
    %15 = vsyncpa [#allocation7], 0
    %16 = vsyncpa [#allocation5], 0
    // Predicated region
    $region2: #{tpu_custom_call.1} parent=1 // pred_check
      _
    $region3: #{tpu_custom_call.1} parent=1 // pred_check_branch
      %18 = sbr.rel (0) target = $region5
    $region4: #{tpu_custom_call.1} parent=1 // pred_region
      _
    $region5: #{tpu_custom_call.1} parent=1 // pred_fallthru
      _
    // Predicated region
    $region6: #{tpu_custom_call.1} parent=1 // pred_check
      _
    $region7: #{tpu_custom_call.1} parent=1 // pred_check_branch
      %20 = sbr.rel (0) target = $region9
    $region8: #{tpu_custom_call.1} parent=1 // pred_region
      _
    $region9: #{tpu_custom_call.1} parent=1 // pred_fallthru
      _
    // Predicated region
    $region10: #{tpu_custom_call.1} parent=1 // pred_check
      _
    $region11: #{tpu_custom_call.1} parent=1 // pred_check_branch
      %22 = sbr.rel (0) target = $region13
    $region12: #{tpu_custom_call.1} parent=1 // pred_region
      %s24 = ssub.s32 4096, 4096
      %25 = vsyncadd [#allocation4], %s24
      %s26 = sshll.u32 [#allocation3], 4
      %s27 = int_to_ptr.vmem [resolvable:$true] %s26
      %32 = dma.hbm_to_vmem [thread:$0]  %s2, 4096, %s27, [#allocation4], 256, 256, 16
    $region13: #{tpu_custom_call.1} parent=1 // pred_fallthru
      _
    // Predicated region
    $region14: #{tpu_custom_call.1} parent=1 // pred_check
      _
    $region15: #{tpu_custom_call.1} parent=1 // pred_check_branch
      %34 = sbr.rel (0) target = $region17
    $region16: #{tpu_custom_call.1} parent=1 // pred_region
      _
    $region17: #{tpu_custom_call.1} parent=1 // pred_fallthru
      _
    // Predicated region
    $region18: #{tpu_custom_call.1} parent=1 // pred_check
      _
    $region19: #{tpu_custom_call.1} parent=1 // pred_check_branch
      %36 = sbr.rel (0) target = $region21
    $region20: #{tpu_custom_call.1} parent=1 // pred_region
      %s38 = ssub.s32 4096, 4096
      %39 = vsyncadd [#allocation7], %s38
      %s40 = sshll.u32 [#allocation6], 4
      %s41 = int_to_ptr.vmem [resolvable:$true] %s40
      %46 = dma.hbm_to_vmem [thread:$0]  %s4, 4096, %s41, [#allocation7], 256, 256, 16
    $region21: #{tpu_custom_call.1} parent=1 // pred_fallthru
      _
    // Predicated region
    $region22: #{tpu_custom_call.1} parent=1 // pred_check
      _
    $region23: #{tpu_custom_call.1} parent=1 // pred_check_branch
      %48 = sbr.rel (0) target = $region25
    $region24: #{tpu_custom_call.1} parent=1 // pred_region
      %s50 = ssub.s32 4096, 4096
      %51 = vsyncadd [#allocation7], %s50
      %s52 = sshll.u32 [#allocation8], 4
      %s53 = int_to_ptr.vmem [resolvable:$true] %s52
      %58 = dma.hbm_to_vmem [thread:$0]  %s5, 4096, %s53, [#allocation7], 256, 256, 16
    $region25: #{tpu_custom_call.1} parent=1 // pred_fallthru
      _
    // Predicated region
    $region26: #{tpu_custom_call.1} parent=1 // pred_check
      _
    $region27: #{tpu_custom_call.1} parent=1 // pred_check_branch
      %60 = sbr.rel (0) target = $region29
    $region28: #{tpu_custom_call.1} parent=1 // pred_region
      _
    $region29: #{tpu_custom_call.1} parent=1 // pred_fallthru
      _
    // Predicated region
    $region30: #{tpu_custom_call.1} parent=1 // pred_check
      _
    $region31: #{tpu_custom_call.1} parent=1 // pred_check_branch
      %62 = sbr.rel (0) target = $region33
    $region32: #{tpu_custom_call.1} parent=1 // pred_region
      _
    $region33: #{tpu_custom_call.1} parent=1 // pred_fallthru
      _
    // Predicated region
    $region34: #{tpu_custom_call.1} parent=1 // pred_check
      _
    $region35: #{tpu_custom_call.1} parent=1 // pred_check_branch
      %64 = sbr.rel (0) target = $region37
    $region36: #{tpu_custom_call.1} parent=1 // pred_region
      _
    $region37: #{tpu_custom_call.1} parent=1 // pred_fallthru
      _
    // Predicated region
    $region38: #{tpu_custom_call.1} parent=1 // pred_check
      _
    $region39: #{tpu_custom_call.1} parent=1 // pred_check_branch
      %66 = sbr.rel (0) target = $region41
    $region40: #{tpu_custom_call.1} parent=1 // pred_region
      %67 = dma.done [#allocation4], 4096
    $region41: #{tpu_custom_call.1} parent=1 // pred_fallthru
      _
    // Predicated region
    $region42: #{tpu_custom_call.1} parent=1 // pred_check
      _
    $region43: #{tpu_custom_call.1} parent=1 // pred_check_branch
      %69 = sbr.rel (0) target = $region45
    $region44: #{tpu_custom_call.1} parent=1 // pred_region
      %70 = dma.done [#allocation7], 4096
    $region45: #{tpu_custom_call.1} parent=1 // pred_fallthru
      _
    // Predicated region
    $region46: #{tpu_custom_call.1} parent=1 // pred_check
      _
    $region47: #{tpu_custom_call.1} parent=1 // pred_check_branch
      %72 = sbr.rel (0) target = $region49
    $region48: #{tpu_custom_call.1} parent=1 // pred_region
      %73 = dma.done [#allocation7], 4096
    $region49: #{tpu_custom_call.1} parent=1 // pred_fallthru
      _
    %v75 = vld [vmem:[%s0] sm:$0xff]
    %v76 = vld [vmem:[%s0 + $0x8] sm:$0xff]
    %v77 = vld [vmem:[%s0 + $0x10] sm:$0xff]
    %v78 = vld [vmem:[%s0 + $0x18] sm:$0xff]
    %v79 = vld [vmem:[%s0 + $0x20] sm:$0xff]
    %v80 = vld [vmem:[%s0 + $0x28] sm:$0xff]
    %v81 = vld [vmem:[%s0 + $0x30] sm:$0xff]
    %v82 = vld [vmem:[%s0 + $0x38] sm:$0xff]
    %v83 = vpack.c.bf16 %v76, %v75
    %v84 = vpack.c.bf16 %v78, %v77
    %v85 = vpack.c.bf16 %v80, %v79
    %v86 = vpack.c.bf16 %v82, %v81
    %v87 = vld [vmem:[%s1] sm:$0xff]
    %v88 = vld [vmem:[%s3] sm:$0xf]
    %v90 = vlaneseq
    %v91 = vshrl.u32 %v90, 7
    %v92 = vsub.s32 0, %v91
    %v93 = vrot.slane %v88, %v92
    %v94 = vlaneseq
    %v95 = vshrl.u32 %v94, 7
    %v96 = vsub.s32 1, %v95
    %v97 = vrot.slane %v88, %v96
    %v98 = vlaneseq
    %v99 = vshrl.u32 %v98, 7
    %v100 = vsub.s32 2, %v99
    %v101 = vrot.slane %v88, %v100
    %v102 = vlaneseq
    %v103 = vshrl.u32 %v102, 7
    %v104 = vsub.s32 3, %v103
    %v105 = vrot.slane %v88, %v104
    %v111 = vcombine.high %v87, %v87
    %v113 = vunpack.c.l.s4 1983009808
    %v114 = vunpack.c.0.s8 %v113
    %v115 = vlaneseq
    %v116 = vshrl.u32 %v115, 7
    %v117 = vsub.s32 %v114, %v116
    %v118 = vrot.slane %v87, %v117
    %v120 = vunpack.c.l.s4 1983009808
    %v121 = vunpack.c.0.s8 %v120
    %v122 = vlaneseq
    %v123 = vshrl.u32 %v122, 7
    %v124 = vsub.s32 %v121, %v123
    %v125 = vrot.slane %v111, %v124
    %v126 = vcombine.high %v118, %v118
    %v127 = vcombine.high %v125, %v125
    %vm128 = vcmask 31744
    %v130 = vsel %vm128, %v83, 0
    %v133 = vsel %vm128, %v84, 0
    %v136 = vsel %vm128, %v85, 0
    %v139 = vsel %vm128, %v86, 0
    %vm141 = vcmask 1041408
    %v143 = vsel %vm141, %v118, 0
    %v146 = vsel %vm141, %v126, 0
    %v149 = vsel %vm141, %v125, 0
    %v152 = vsel %vm141, %v127, 0
    %154 = vmatprep.subr.bf16.mxu0 %v146
    %155 = vmatpush1.bf16.msra.mxu0 %v143
    %156 = vmatprep.subr.bf16.mxu0 0
    %157 = vmatpush1.bf16.msra.mxu0 0
    %158 = vmatprep.subr.bf16.mxu0 0
    %159 = vmatpush1.bf16.msra.mxu0 0
    %160 = vmatprep.subr.bf16.mxu0 0
    %161 = vmatpush1.bf16.msra.mxu0 0
    %162 = vmatprep.subr.bf16.mxu0 0
    %163 = vmatpush1.bf16.msra.mxu0 0
    %164 = vmatprep.subr.bf16.mxu0 0
    %165 = vmatpush1.bf16.msra.mxu0 0
    %166 = vmatprep.subr.bf16.mxu0 0
    %167 = vmatpush1.bf16.msra.mxu0 0
    %168 = vmatprep.subr.bf16.mxu0 0
    %169 = vmatpush1.bf16.msra.mxu0 0
    %170 = vmatprep.subr.bf16.mxu0 0
    %171 = vmatpush1.bf16.msra.mxu0 0
    %172 = vmatprep.subr.bf16.mxu0 0
    %173 = vmatpush1.bf16.msra.mxu0 0
    %174 = vmatprep.subr.bf16.mxu0 0
    %175 = vmatpush1.bf16.msra.mxu0 0
    %176 = vmatprep.subr.bf16.mxu0 0
    %177 = vmatpush1.bf16.msra.mxu0 0
    %178 = vmatprep.subr.bf16.mxu0 0
    %179 = vmatpush1.bf16.msra.mxu0 0
    %180 = vmatprep.subr.bf16.mxu0 0
    %181 = vmatpush1.bf16.msra.mxu0 0
    %182 = vmatprep.subr.bf16.mxu0 0
    %183 = vmatpush1.bf16.msra.mxu0 0
    %184 = vmatprep.subr.bf16.mxu0 0
    %185 = vmatpush1.bf16.msra.mxu0 0
    %186 = vmatprep.mubr.bf16.mxu0 0
    %187 = vmatmul.mubr.bf16.gmra.mrb[0].mxu0 %v130
    %v188 = vpop.f32.mrb[0].mxu0
    %v189 = vadd.f32 %v93, %v188
    %v190 = vpop.f32.mrb[0].mxu0
    %v191 = vadd.f32 %v97, %v190
    %v192 = vpop.f32.mrb[0].mxu0
    %v193 = vadd.f32 %v93, %v192
    %v194 = vpop.f32.mrb[0].mxu0
    %v195 = vadd.f32 %v97, %v194
    %196 = vmatprep.mubr.bf16.mxu0 0
    %197 = vmatmul.mubr.bf16.gmra.mrb[0].mxu0 %v133
    %v198 = vpop.f32.mrb[0].mxu0
    %v199 = vadd.f32 %v93, %v198
    %v200 = vpop.f32.mrb[0].mxu0
    %v201 = vadd.f32 %v97, %v200
    %v202 = vpop.f32.mrb[0].mxu0
    %v203 = vadd.f32 %v93, %v202
    %v204 = vpop.f32.mrb[0].mxu0
    %v205 = vadd.f32 %v97, %v204
    %206 = vmatprep.mubr.bf16.mxu0 0
    %207 = vmatmul.mubr.bf16.gmra.mrb[0].mxu0 %v136
    %v208 = vpop.f32.mrb[0].mxu0
    %v209 = vadd.f32 %v93, %v208
    %v210 = vpop.f32.mrb[0].mxu0
    %v211 = vadd.f32 %v97, %v210
    %v212 = vpop.f32.mrb[0].mxu0
    %v213 = vadd.f32 %v93, %v212
    %v214 = vpop.f32.mrb[0].mxu0
    %v215 = vadd.f32 %v97, %v214
    %216 = vmatprep.mubr.bf16.mxu0 0
    %217 = vmatmul.mubr.bf16.gmra.mrb[0].mxu0 %v139
    %v218 = vpop.f32.mrb[0].mxu0
    %v219 = vadd.f32 %v93, %v218
    %v220 = vpop.f32.mrb[0].mxu0
    %v221 = vadd.f32 %v97, %v220
    %v222 = vpop.f32.mrb[0].mxu0
    %v223 = vadd.f32 %v93, %v222
    %v224 = vpop.f32.mrb[0].mxu0
    %v225 = vadd.f32 %v97, %v224
    %226 = vdwg.mxu0
    %227 = vmatprep.subr.bf16.mxu0 %v152
    %228 = vmatpush1.bf16.msra.mxu0 %v149
    %229 = vmatprep.subr.bf16.mxu0 0
    %230 = vmatpush1.bf16.msra.mxu0 0
    %231 = vmatprep.subr.bf16.mxu0 0
    %232 = vmatpush1.bf16.msra.mxu0 0
    %233 = vmatprep.subr.bf16.mxu0 0
    %234 = vmatpush1.bf16.msra.mxu0 0
    %235 = vmatprep.subr.bf16.mxu0 0
    %236 = vmatpush1.bf16.msra.mxu0 0
    %237 = vmatprep.subr.bf16.mxu0 0
    %238 = vmatpush1.bf16.msra.mxu0 0
    %239 = vmatprep.subr.bf16.mxu0 0
    %240 = vmatpush1.bf16.msra.mxu0 0
    %241 = vmatprep.subr.bf16.mxu0 0
    %242 = vmatpush1.bf16.msra.mxu0 0
    %243 = vmatprep.subr.bf16.mxu0 0
    %244 = vmatpush1.bf16.msra.mxu0 0
    %245 = vmatprep.subr.bf16.mxu0 0
    %246 = vmatpush1.bf16.msra.mxu0 0
    %247 = vmatprep.subr.bf16.mxu0 0
    %248 = vmatpush1.bf16.msra.mxu0 0
    %249 = vmatprep.subr.bf16.mxu0 0
    %250 = vmatpush1.bf16.msra.mxu0 0
    %251 = vmatprep.subr.bf16.mxu0 0
    %252 = vmatpush1.bf16.msra.mxu0 0
    %253 = vmatprep.subr.bf16.mxu0 0
    %254 = vmatpush1.bf16.msra.mxu0 0
    %255 = vmatprep.subr.bf16.mxu0 0
    %256 = vmatpush1.bf16.msra.mxu0 0
    %257 = vmatprep.subr.bf16.mxu0 0
    %258 = vmatpush1.bf16.msra.mxu0 0
    %259 = vmatprep.mubr.bf16.mxu0 0
    %260 = vmatmul.mubr.bf16.gmra.mrb[0].mxu0 %v130
    %v261 = vpop.f32.mrb[0].mxu0
    %v262 = vadd.f32 %v101, %v261
    %v263 = vpop.f32.mrb[0].mxu0
    %v264 = vadd.f32 %v105, %v263
    %v265 = vpop.f32.mrb[0].mxu0
    %v266 = vadd.f32 %v101, %v265
    %v267 = vpop.f32.mrb[0].mxu0
    %v268 = vadd.f32 %v105, %v267
    %269 = vmatprep.mubr.bf16.mxu0 0
    %270 = vmatmul.mubr.bf16.gmra.mrb[0].mxu0 %v133
    %v271 = vpop.f32.mrb[0].mxu0
    %v272 = vadd.f32 %v101, %v271
    %v273 = vpop.f32.mrb[0].mxu0
    %v274 = vadd.f32 %v105, %v273
    %v275 = vpop.f32.mrb[0].mxu0
    %v276 = vadd.f32 %v101, %v275
    %v277 = vpop.f32.mrb[0].mxu0
    %v278 = vadd.f32 %v105, %v277
    %279 = vmatprep.mubr.bf16.mxu0 0
    %280 = vmatmul.mubr.bf16.gmra.mrb[0].mxu0 %v136
    %v281 = vpop.f32.mrb[0].mxu0
    %v282 = vadd.f32 %v101, %v281
    %v283 = vpop.f32.mrb[0].mxu0
    %v284 = vadd.f32 %v105, %v283
    %v285 = vpop.f32.mrb[0].mxu0
    %v286 = vadd.f32 %v101, %v285
    %v287 = vpop.f32.mrb[0].mxu0
    %v288 = vadd.f32 %v105, %v287
    %289 = vmatprep.mubr.bf16.mxu0 0
    %290 = vmatmul.mubr.bf16.gmra.mrb[0].mxu0 %v139
    %v291 = vpop.f32.mrb[0].mxu0
    %v292 = vadd.f32 %v101, %v291
    %v293 = vpop.f32.mrb[0].mxu0
    %v294 = vadd.f32 %v105, %v293
    %v295 = vpop.f32.mrb[0].mxu0
    %v296 = vadd.f32 %v101, %v295
    %v297 = vpop.f32.mrb[0].mxu0
    %v298 = vadd.f32 %v105, %v297
    %299 = vdwg.mxu0
    %300 = vst [vmem:[#allocation2] sm:$0xff] %v189
    %301 = vst [vmem:[#allocation2 + $0x8] sm:$0xff] %v191
    %302 = vst [vmem:[#allocation2 + $0x10] sm:$0xff] %v262
    %303 = vst [vmem:[#allocation2 + $0x18] sm:$0xff] %v264
    %304 = vst [vmem:[#allocation2 + $0x20] sm:$0xff] %v193
    %305 = vst [vmem:[#allocation2 + $0x28] sm:$0xff] %v195
    %306 = vst [vmem:[#allocation2 + $0x30] sm:$0xff] %v266
    %307 = vst [vmem:[#allocation2 + $0x38] sm:$0xff] %v268
    %308 = vst [vmem:[#allocation2 + $0x40] sm:$0xff] %v199
    %309 = vst [vmem:[#allocation2 + $0x48] sm:$0xff] %v201
    %310 = vst [vmem:[#allocation2 + $0x50] sm:$0xff] %v272
    %311 = vst [vmem:[#allocation2 + $0x58] sm:$0xff] %v274
    %312 = vst [vmem:[#allocation2 + $0x60] sm:$0xff] %v203
    %313 = vst [vmem:[#allocation2 + $0x68] sm:$0xff] %v205
    %314 = vst [vmem:[#allocation2 + $0x70] sm:$0xff] %v276
    %315 = vst [vmem:[#allocation2 + $0x78] sm:$0xff] %v278
    %316 = vst [vmem:[#allocation2 + $0x80] sm:$0xff] %v209
    %317 = vst [vmem:[#allocation2 + $0x88] sm:$0xff] %v211
    %318 = vst [vmem:[#allocation2 + $0x90] sm:$0xff] %v282
    %319 = vst [vmem:[#allocation2 + $0x98] sm:$0xff] %v284
    %320 = vst [vmem:[#allocation2 + $0xa0] sm:$0xff] %v213
    %321 = vst [vmem:[#allocation2 + $0xa8] sm:$0xff] %v215
    %322 = vst [vmem:[#allocation2 + $0xb0] sm:$0xff] %v286
    %323 = vst [vmem:[#allocation2 + $0xb8] sm:$0xff] %v288
    %324 = vst [vmem:[#allocation2 + $0xc0] sm:$0xff] %v219
    %325 = vst [vmem:[#allocation2 + $0xc8] sm:$0xff] %v221
    %326 = vst [vmem:[#allocation2 + $0xd0] sm:$0xff] %v292
    %327 = vst [vmem:[#allocation2 + $0xd8] sm:$0xff] %v294
    %328 = vst [vmem:[#allocation2 + $0xe0] sm:$0xff] %v223
    %329 = vst [vmem:[#allocation2 + $0xe8] sm:$0xff] %v225
    %330 = vst [vmem:[#allocation2 + $0xf0] sm:$0xff] %v296
    %331 = vst [vmem:[#allocation2 + $0xf8] sm:$0xff] %v298
    %v332 = vld [vmem:[%s6] sm:$0xf]
    %v334 = vlaneseq
    %v335 = vshrl.u32 %v334, 7
    %v336 = vsub.s32 0, %v335
    %v337 = vrot.slane %v332, %v336
    %v338 = vlaneseq
    %v339 = vshrl.u32 %v338, 7
    %v340 = vsub.s32 1, %v339
    %v341 = vrot.slane %v332, %v340
    %v342 = vlaneseq
    %v343 = vshrl.u32 %v342, 7
    %v344 = vsub.s32 2, %v343
    %v345 = vrot.slane %v332, %v344
    %v346 = vlaneseq
    %v347 = vshrl.u32 %v346, 7
    %v348 = vsub.s32 3, %v347
    %v349 = vrot.slane %v332, %v348
    %s354 = smul.u32 0, 4
    %s355 = smul.addr %s354, 8
    %s356 = scalar_lea.vmem [#allocation2], %s355
    %v357 = vld [vmem:[%s356] sm:$0xff]
    %v358 = vld [vmem:[%s356 + $0x8] sm:$0xff]
    %v359 = vld [vmem:[%s356 + $0x10] sm:$0xff]
    %v360 = vld [vmem:[%s356 + $0x18] sm:$0xff]
    %v361 = vld [vmem:[#allocation3] sm:$0xff]
    %v362 = vld [vmem:[#allocation3 + $0x8] sm:$0xff]
    %v363 = vld [vmem:[#allocation3 + $0x10] sm:$0xff]
    %v364 = vld [vmem:[#allocation3 + $0x18] sm:$0xff]
    %v365 = vld [vmem:[#allocation3 + $0x20] sm:$0xff]
    %v366 = vld [vmem:[#allocation3 + $0x28] sm:$0xff]
    %v367 = vld [vmem:[#allocation3 + $0x30] sm:$0xff]
    %v368 = vld [vmem:[#allocation3 + $0x38] sm:$0xff]
    %v369 = vld [vmem:[#allocation3 + $0x40] sm:$0xff]
    %v370 = vld [vmem:[#allocation3 + $0x48] sm:$0xff]
    %v371 = vld [vmem:[#allocation3 + $0x50] sm:$0xff]
    %v372 = vld [vmem:[#allocation3 + $0x58] sm:$0xff]
    %v373 = vld [vmem:[#allocation3 + $0x60] sm:$0xff]
    %v374 = vld [vmem:[#allocation3 + $0x68] sm:$0xff]
    %v375 = vld [vmem:[#allocation3 + $0x70] sm:$0xff]
    %v376 = vld [vmem:[#allocation3 + $0x78] sm:$0xff]
    %v377 = vld [vmem:[#allocation3 + $0x80] sm:$0xff]
    %v378 = vld [vmem:[#allocation3 + $0x88] sm:$0xff]
    %v379 = vld [vmem:[#allocation3 + $0x90] sm:$0xff]
    %v380 = vld [vmem:[#allocation3 + $0x98] sm:$0xff]
    %v381 = vld [vmem:[#allocation3 + $0xa0] sm:$0xff]
    %v382 = vld [vmem:[#allocation3 + $0xa8] sm:$0xff]
    %v383 = vld [vmem:[#allocation3 + $0xb0] sm:$0xff]
    %v384 = vld [vmem:[#allocation3 + $0xb8] sm:$0xff]
    %v385 = vld [vmem:[#allocation3 + $0xc0] sm:$0xff]
    %v386 = vld [vmem:[#allocation3 + $0xc8] sm:$0xff]
    %v387 = vld [vmem:[#allocation3 + $0xd0] sm:$0xff]
    %v388 = vld [vmem:[#allocation3 + $0xd8] sm:$0xff]
    %v389 = vld [vmem:[#allocation3 + $0xe0] sm:$0xff]
    %v390 = vld [vmem:[#allocation3 + $0xe8] sm:$0xff]
    %v391 = vld [vmem:[#allocation3 + $0xf0] sm:$0xff]
    %v392 = vld [vmem:[#allocation3 + $0xf8] sm:$0xff]
    %v425 = vunpack.c.l.b16 %v361
    %v426 = vunpack.c.h.b16 %v361
    %v427 = vunpack.c.l.b16 %v362
    %v428 = vunpack.c.h.b16 %v362
    %v429 = vunpack.c.l.b16 %v363
    %v430 = vunpack.c.h.b16 %v363
    %v431 = vunpack.c.l.b16 %v364
    %v432 = vunpack.c.h.b16 %v364
    %v433 = vunpack.c.l.b16 %v365
    %v434 = vunpack.c.h.b16 %v365
    %v435 = vunpack.c.l.b16 %v366
    %v436 = vunpack.c.h.b16 %v366
    %v437 = vunpack.c.l.b16 %v367
    %v438 = vunpack.c.h.b16 %v367
    %v439 = vunpack.c.l.b16 %v368
    %v440 = vunpack.c.h.b16 %v368
    %v441 = vunpack.c.l.b16 %v369
    %v442 = vunpack.c.h.b16 %v369
    %v443 = vunpack.c.l.b16 %v370
    %v444 = vunpack.c.h.b16 %v370
    %v445 = vunpack.c.l.b16 %v371
    %v446 = vunpack.c.h.b16 %v371
    %v447 = vunpack.c.l.b16 %v372
    %v448 = vunpack.c.h.b16 %v372
    %v449 = vunpack.c.l.b16 %v373
    %v450 = vunpack.c.h.b16 %v373
    %v451 = vunpack.c.l.b16 %v374
    %v452 = vunpack.c.h.b16 %v374
    %v453 = vunpack.c.l.b16 %v375
    %v454 = vunpack.c.h.b16 %v375
    %v455 = vunpack.c.l.b16 %v376
    %v456 = vunpack.c.h.b16 %v376
    %v457 = vunpack.c.l.b16 %v377
    %v458 = vunpack.c.h.b16 %v377
    %v459 = vunpack.c.l.b16 %v378
    %v460 = vunpack.c.h.b16 %v378
    %v461 = vunpack.c.l.b16 %v379
    %v462 = vunpack.c.h.b16 %v379
    %v463 = vunpack.c.l.b16 %v380
    %v464 = vunpack.c.h.b16 %v380
    %v465 = vunpack.c.l.b16 %v381
    %v466 = vunpack.c.h.b16 %v381
    %v467 = vunpack.c.l.b16 %v382
    %v468 = vunpack.c.h.b16 %v382
    %v469 = vunpack.c.l.b16 %v383
    %v470 = vunpack.c.h.b16 %v383
    %v471 = vunpack.c.l.b16 %v384
    %v472 = vunpack.c.h.b16 %v384
    %v473 = vunpack.c.l.b16 %v385
    %v474 = vunpack.c.h.b16 %v385
    %v475 = vunpack.c.l.b16 %v386
    %v476 = vunpack.c.h.b16 %v386
    %v477 = vunpack.c.l.b16 %v387
    %v478 = vunpack.c.h.b16 %v387
    %v479 = vunpack.c.l.b16 %v388
    %v480 = vunpack.c.h.b16 %v388
    %v481 = vunpack.c.l.b16 %v389
    %v482 = vunpack.c.h.b16 %v389
    %v483 = vunpack.c.l.b16 %v390
    %v484 = vunpack.c.h.b16 %v390
    %v485 = vunpack.c.l.b16 %v391
    %v486 = vunpack.c.h.b16 %v391
    %v487 = vunpack.c.l.b16 %v392
    %v488 = vunpack.c.h.b16 %v392
    %v489 = vpack.c.b16 %v429, %v425
    %v490 = vpack.c.b16 %v430, %v426
    %v491 = vpack.c.b16 %v431, %v427
    %v492 = vpack.c.b16 %v432, %v428
    %v493 = vpack.c.b16 %v437, %v433
    %v494 = vpack.c.b16 %v438, %v434
    %v495 = vpack.c.b16 %v439, %v435
    %v496 = vpack.c.b16 %v440, %v436
    %v497 = vpack.c.b16 %v445, %v441
    %v498 = vpack.c.b16 %v446, %v442
    %v499 = vpack.c.b16 %v447, %v443
    %v500 = vpack.c.b16 %v448, %v444
    %v501 = vpack.c.b16 %v453, %v449
    %v502 = vpack.c.b16 %v454, %v450
    %v503 = vpack.c.b16 %v455, %v451
    %v504 = vpack.c.b16 %v456, %v452
    %v505 = vpack.c.b16 %v461, %v457
    %v506 = vpack.c.b16 %v462, %v458
    %v507 = vpack.c.b16 %v463, %v459
    %v508 = vpack.c.b16 %v464, %v460
    %v509 = vpack.c.b16 %v469, %v465
    %v510 = vpack.c.b16 %v470, %v466
    %v511 = vpack.c.b16 %v471, %v467
    %v512 = vpack.c.b16 %v472, %v468
    %v513 = vpack.c.b16 %v477, %v473
    %v514 = vpack.c.b16 %v478, %v474
    %v515 = vpack.c.b16 %v479, %v475
    %v516 = vpack.c.b16 %v480, %v476
    %v517 = vpack.c.b16 %v485, %v481
    %v518 = vpack.c.b16 %v486, %v482
    %v519 = vpack.c.b16 %v487, %v483
    %v520 = vpack.c.b16 %v488, %v484
    %553 = vmatprep.subr.bf16.mxu0 %v490
    %554 = vmatpush1.bf16.msra.mxu0 %v489
    %555 = vmatprep.subr.bf16.mxu0 %v494
    %556 = vmatpush1.bf16.msra.mxu0 %v493
    %557 = vmatprep.subr.bf16.mxu0 %v498
    %558 = vmatpush1.bf16.msra.mxu0 %v497
    %559 = vmatprep.subr.bf16.mxu0 %v502
    %560 = vmatpush1.bf16.msra.mxu0 %v501
    %561 = vmatprep.subr.bf16.mxu0 %v506
    %562 = vmatpush1.bf16.msra.mxu0 %v505
    %563 = vmatprep.subr.bf16.mxu0 %v510
    %564 = vmatpush1.bf16.msra.mxu0 %v509
    %565 = vmatprep.subr.bf16.mxu0 %v514
    %566 = vmatpush1.bf16.msra.mxu0 %v513
    %567 = vmatprep.subr.bf16.mxu0 %v518
    %568 = vmatpush1.bf16.msra.mxu0 %v517
    %569 = vmatprep.subr.bf16.mxu0 0
    %570 = vmatpush1.bf16.msra.mxu0 0
    %571 = vmatprep.subr.bf16.mxu0 0
    %572 = vmatpush1.bf16.msra.mxu0 0
    %573 = vmatprep.subr.bf16.mxu0 0
    %574 = vmatpush1.bf16.msra.mxu0 0
    %575 = vmatprep.subr.bf16.mxu0 0
    %576 = vmatpush1.bf16.msra.mxu0 0
    %577 = vmatprep.subr.bf16.mxu0 0
    %578 = vmatpush1.bf16.msra.mxu0 0
    %579 = vmatprep.subr.bf16.mxu0 0
    %580 = vmatpush1.bf16.msra.mxu0 0
    %581 = vmatprep.subr.bf16.mxu0 0
    %582 = vmatpush1.bf16.msra.mxu0 0
    %583 = vmatprep.subr.bf16.mxu0 0
    %584 = vmatpush1.bf16.msra.mxu0 0
    %585 = vmatprep.mubr.bf16.mxu0 0
    %586 = vmatmul.mubr.bf16.gmra.mrb[0].mxu0 0
    %v587 = vpop.f32.mrb[0].mxu0
    %v588 = vadd.f32 0.0, %v587
    %v589 = vpop.f32.mrb[0].mxu0
    %v590 = vadd.f32 0.0, %v589
    %v591 = vpop.f32.mrb[0].mxu0
    %v592 = vpop.f32.mrb[0].mxu0
    %593 = vdwg.mxu0
    %594 = vmatprep.subr.bf16.mxu0 %v492
    %595 = vmatpush1.bf16.msra.mxu0 %v491
    %596 = vmatprep.subr.bf16.mxu0 %v496
    %597 = vmatpush1.bf16.msra.mxu0 %v495
    %598 = vmatprep.subr.bf16.mxu0 %v500
    %599 = vmatpush1.bf16.msra.mxu0 %v499
    %600 = vmatprep.subr.bf16.mxu0 %v504
    %601 = vmatpush1.bf16.msra.mxu0 %v503
    %602 = vmatprep.subr.bf16.mxu0 %v508
    %603 = vmatpush1.bf16.msra.mxu0 %v507
    %604 = vmatprep.subr.bf16.mxu0 %v512
    %605 = vmatpush1.bf16.msra.mxu0 %v511
    %606 = vmatprep.subr.bf16.mxu0 %v516
    %607 = vmatpush1.bf16.msra.mxu0 %v515
    %608 = vmatprep.subr.bf16.mxu0 %v520
    %609 = vmatpush1.bf16.msra.mxu0 %v519
    %610 = vmatprep.subr.bf16.mxu0 0
    %611 = vmatpush1.bf16.msra.mxu0 0
    %612 = vmatprep.subr.bf16.mxu0 0
    %613 = vmatpush1.bf16.msra.mxu0 0
    %614 = vmatprep.subr.bf16.mxu0 0
    %615 = vmatpush1.bf16.msra.mxu0 0
    %616 = vmatprep.subr.bf16.mxu0 0
    %617 = vmatpush1.bf16.msra.mxu0 0
    %618 = vmatprep.subr.bf16.mxu0 0
    %619 = vmatpush1.bf16.msra.mxu0 0
    %620 = vmatprep.subr.bf16.mxu0 0
    %621 = vmatpush1.bf16.msra.mxu0 0
    %622 = vmatprep.subr.bf16.mxu0 0
    %623 = vmatpush1.bf16.msra.mxu0 0
    %624 = vmatprep.subr.bf16.mxu0 0
    %625 = vmatpush1.bf16.msra.mxu0 0
    %626 = vmatprep.mubr.bf16.mxu0 0
    %627 = vmatmul.mubr.bf16.gmra.mrb[0].mxu0 0
    %v628 = vpop.f32.mrb[0].mxu0
    %v629 = vadd.f32 0.0, %v628
    %v630 = vpop.f32.mrb[0].mxu0
    %v631 = vadd.f32 0.0, %v630
    %v632 = vpop.f32.mrb[0].mxu0
    %v633 = vpop.f32.mrb[0].mxu0
    %634 = vdwg.mxu0
    %v635 = vadd.f32 %v357, %v588
    %v636 = vadd.f32 %v358, %v590
    %v637 = vadd.f32 %v359, %v629
    %v638 = vadd.f32 %v360, %v631
    %v639 = vxor.u32 %v635, 2147483648
    %v640 = vxor.u32 %v636, 2147483648
    %v641 = vxor.u32 %v637, 2147483648
    %v642 = vmul.f32 %v639, 1.442695
    %v643 = vpow.pop %v642
    %v644 = vmul.f32 %v640, 1.442695
    %v645 = vpow.pop %v644
    %v646 = vmul.f32 %v641, 1.442695
    %v647 = vpow.pop %v646
    %v648 = vadd.f32 %v643, 1.0
    %v649 = vadd.f32 %v645, 1.0
    %v650 = vadd.f32 %v647, 1.0
    %v651 = vrcp.pop %v648
    %v652 = vmul.f32 1.0, %v651
    %v653 = vrcp.pop %v649
    %v654 = vmul.f32 1.0, %v653
    %v655 = vrcp.pop %v650
    %v656 = vmul.f32 1.0, %v655
    %v657 = vtanh.pop %v638
    %v658 = vmul.f32 %v654, 0.0
    %v659 = vmul.f32 %v652, %v657
    %v660 = vadd.f32 %v658, %v659
    %v661 = vtanh.pop %v660
    %v662 = vmul.f32 %v656, %v661
    %v663 = vpack.c.bf16 %v662, %v662
    %v664 = vld [vmem:[#allocation6] sm:$0xff]
    %v665 = vld [vmem:[#allocation6 + $0x8] sm:$0xff]
    %v666 = vld [vmem:[#allocation6 + $0x10] sm:$0xff]
    %v667 = vld [vmem:[#allocation6 + $0x18] sm:$0xff]
    %v668 = vld [vmem:[#allocation6 + $0x20] sm:$0xff]
    %v669 = vld [vmem:[#allocation6 + $0x28] sm:$0xff]
    %v670 = vld [vmem:[#allocation6 + $0x30] sm:$0xff]
    %v671 = vld [vmem:[#allocation6 + $0x38] sm:$0xff]
    %v672 = vld [vmem:[#allocation6 + $0x40] sm:$0xff]
    %v673 = vld [vmem:[#allocation6 + $0x48] sm:$0xff]
    %v674 = vld [vmem:[#allocation6 + $0x50] sm:$0xff]
    %v675 = vld [vmem:[#allocation6 + $0x58] sm:$0xff]
    %v676 = vld [vmem:[#allocation6 + $0x60] sm:$0xff]
    %v677 = vld [vmem:[#allocation6 + $0x68] sm:$0xff]
    %v678 = vld [vmem:[#allocation6 + $0x70] sm:$0xff]
    %v679 = vld [vmem:[#allocation6 + $0x78] sm:$0xff]
    %v680 = vld [vmem:[#allocation6 + $0x80] sm:$0xff]
    %v681 = vld [vmem:[#allocation6 + $0x88] sm:$0xff]
    %v682 = vld [vmem:[#allocation6 + $0x90] sm:$0xff]
    %v683 = vld [vmem:[#allocation6 + $0x98] sm:$0xff]
    %v684 = vld [vmem:[#allocation6 + $0xa0] sm:$0xff]
    %v685 = vld [vmem:[#allocation6 + $0xa8] sm:$0xff]
    %v686 = vld [vmem:[#allocation6 + $0xb0] sm:$0xff]
    %v687 = vld [vmem:[#allocation6 + $0xb8] sm:$0xff]
    %v688 = vld [vmem:[#allocation6 + $0xc0] sm:$0xff]
    %v689 = vld [vmem:[#allocation6 + $0xc8] sm:$0xff]
    %v690 = vld [vmem:[#allocation6 + $0xd0] sm:$0xff]
    %v691 = vld [vmem:[#allocation6 + $0xd8] sm:$0xff]
    %v692 = vld [vmem:[#allocation6 + $0xe0] sm:$0xff]
    %v693 = vld [vmem:[#allocation6 + $0xe8] sm:$0xff]
    %v694 = vld [vmem:[#allocation6 + $0xf0] sm:$0xff]
    %v695 = vld [vmem:[#allocation6 + $0xf8] sm:$0xff]
    %v696 = vld [vmem:[#allocation8] sm:$0xff]
    %v697 = vld [vmem:[#allocation8 + $0x8] sm:$0xff]
    %v698 = vld [vmem:[#allocation8 + $0x10] sm:$0xff]
    %v699 = vld [vmem:[#allocation8 + $0x18] sm:$0xff]
    %v700 = vld [vmem:[#allocation8 + $0x20] sm:$0xff]
    %v701 = vld [vmem:[#allocation8 + $0x28] sm:$0xff]
    %v702 = vld [vmem:[#allocation8 + $0x30] sm:$0xff]
    %v703 = vld [vmem:[#allocation8 + $0x38] sm:$0xff]
    %v704 = vld [vmem:[#allocation8 + $0x40] sm:$0xff]
    %v705 = vld [vmem:[#allocation8 + $0x48] sm:$0xff]
    %v706 = vld [vmem:[#allocation8 + $0x50] sm:$0xff]
    %v707 = vld [vmem:[#allocation8 + $0x58] sm:$0xff]
    %v708 = vld [vmem:[#allocation8 + $0x60] sm:$0xff]
    %v709 = vld [vmem:[#allocation8 + $0x68] sm:$0xff]
    %v710 = vld [vmem:[#allocation8 + $0x70] sm:$0xff]
    %v711 = vld [vmem:[#allocation8 + $0x78] sm:$0xff]
    %v712 = vld [vmem:[#allocation8 + $0x80] sm:$0xff]
    %v713 = vld [vmem:[#allocation8 + $0x88] sm:$0xff]
    %v714 = vld [vmem:[#allocation8 + $0x90] sm:$0xff]
    %v715 = vld [vmem:[#allocation8 + $0x98] sm:$0xff]
    %v716 = vld [vmem:[#allocation8 + $0xa0] sm:$0xff]
    %v717 = vld [vmem:[#allocation8 + $0xa8] sm:$0xff]
    %v718 = vld [vmem:[#allocation8 + $0xb0] sm:$0xff]
    %v719 = vld [vmem:[#allocation8 + $0xb8] sm:$0xff]
    %v720 = vld [vmem:[#allocation8 + $0xc0] sm:$0xff]
    %v721 = vld [vmem:[#allocation8 + $0xc8] sm:$0xff]
    %v722 = vld [vmem:[#allocation8 + $0xd0] sm:$0xff]
    %v723 = vld [vmem:[#allocation8 + $0xd8] sm:$0xff]
    %v724 = vld [vmem:[#allocation8 + $0xe0] sm:$0xff]
    %v725 = vld [vmem:[#allocation8 + $0xe8] sm:$0xff]
    %v726 = vld [vmem:[#allocation8 + $0xf0] sm:$0xff]
    %v727 = vld [vmem:[#allocation8 + $0xf8] sm:$0xff]
    %v760 = vunpack.c.l.b16 %v696
    %v761 = vunpack.c.h.b16 %v696
    %v762 = vunpack.c.l.b16 %v697
    %v763 = vunpack.c.h.b16 %v697
    %v764 = vunpack.c.l.b16 %v698
    %v765 = vunpack.c.h.b16 %v698
    %v766 = vunpack.c.l.b16 %v699
    %v767 = vunpack.c.h.b16 %v699
    %v768 = vunpack.c.l.b16 %v700
    %v769 = vunpack.c.h.b16 %v700
    %v770 = vunpack.c.l.b16 %v701
    %v771 = vunpack.c.h.b16 %v701
    %v772 = vunpack.c.l.b16 %v702
    %v773 = vunpack.c.h.b16 %v702
    %v774 = vunpack.c.l.b16 %v703
    %v775 = vunpack.c.h.b16 %v703
    %v776 = vunpack.c.l.b16 %v704
    %v777 = vunpack.c.h.b16 %v704
    %v778 = vunpack.c.l.b16 %v705
    %v779 = vunpack.c.h.b16 %v705
    %v780 = vunpack.c.l.b16 %v706
    %v781 = vunpack.c.h.b16 %v706
    %v782 = vunpack.c.l.b16 %v707
    %v783 = vunpack.c.h.b16 %v707
    %v784 = vunpack.c.l.b16 %v708
    %v785 = vunpack.c.h.b16 %v708
    %v786 = vunpack.c.l.b16 %v709
    %v787 = vunpack.c.h.b16 %v709
    %v788 = vunpack.c.l.b16 %v710
    %v789 = vunpack.c.h.b16 %v710
    %v790 = vunpack.c.l.b16 %v711
    %v791 = vunpack.c.h.b16 %v711
    %v792 = vunpack.c.l.b16 %v712
    %v793 = vunpack.c.h.b16 %v712
    %v794 = vunpack.c.l.b16 %v713
    %v795 = vunpack.c.h.b16 %v713
    %v796 = vunpack.c.l.b16 %v714
    %v797 = vunpack.c.h.b16 %v714
    %v798 = vunpack.c.l.b16 %v715
    %v799 = vunpack.c.h.b16 %v715
    %v800 = vunpack.c.l.b16 %v716
    %v801 = vunpack.c.h.b16 %v716
    %v802 = vunpack.c.l.b16 %v717
    %v803 = vunpack.c.h.b16 %v717
    %v804 = vunpack.c.l.b16 %v718
    %v805 = vunpack.c.h.b16 %v718
    %v806 = vunpack.c.l.b16 %v719
    %v807 = vunpack.c.h.b16 %v719
    %v808 = vunpack.c.l.b16 %v720
    %v809 = vunpack.c.h.b16 %v720
    %v810 = vunpack.c.l.b16 %v721
    %v811 = vunpack.c.h.b16 %v721
    %v812 = vunpack.c.l.b16 %v722
    %v813 = vunpack.c.h.b16 %v722
    %v814 = vunpack.c.l.b16 %v723
    %v815 = vunpack.c.h.b16 %v723
    %v816 = vunpack.c.l.b16 %v724
    %v817 = vunpack.c.h.b16 %v724
    %v818 = vunpack.c.l.b16 %v725
    %v819 = vunpack.c.h.b16 %v725
    %v820 = vunpack.c.l.b16 %v726
    %v821 = vunpack.c.h.b16 %v726
    %v822 = vunpack.c.l.b16 %v727
    %v823 = vunpack.c.h.b16 %v727
    %v824 = vpack.c.b16 %v764, %v760
    %v825 = vpack.c.b16 %v765, %v761
    %v826 = vpack.c.b16 %v766, %v762
    %v827 = vpack.c.b16 %v767, %v763
    %v828 = vpack.c.b16 %v772, %v768
    %v829 = vpack.c.b16 %v773, %v769
    %v830 = vpack.c.b16 %v774, %v770
    %v831 = vpack.c.b16 %v775, %v771
    %v832 = vpack.c.b16 %v780, %v776
    %v833 = vpack.c.b16 %v781, %v777
    %v834 = vpack.c.b16 %v782, %v778
    %v835 = vpack.c.b16 %v783, %v779
    %v836 = vpack.c.b16 %v788, %v784
    %v837 = vpack.c.b16 %v789, %v785
    %v838 = vpack.c.b16 %v790, %v786
    %v839 = vpack.c.b16 %v791, %v787
    %v840 = vpack.c.b16 %v796, %v792
    %v841 = vpack.c.b16 %v797, %v793
    %v842 = vpack.c.b16 %v798, %v794
    %v843 = vpack.c.b16 %v799, %v795
    %v844 = vpack.c.b16 %v804, %v800
    %v845 = vpack.c.b16 %v805, %v801
    %v846 = vpack.c.b16 %v806, %v802
    %v847 = vpack.c.b16 %v807, %v803
    %v848 = vpack.c.b16 %v812, %v808
    %v849 = vpack.c.b16 %v813, %v809
    %v850 = vpack.c.b16 %v814, %v810
    %v851 = vpack.c.b16 %v815, %v811
    %v852 = vpack.c.b16 %v820, %v816
    %v853 = vpack.c.b16 %v821, %v817
    %v854 = vpack.c.b16 %v822, %v818
    %v855 = vpack.c.b16 %v823, %v819
    %888 = vmatprep.subr.bf16.mxu0 %v825
    %889 = vmatpush1.bf16.msra.mxu0 %v824
    %890 = vmatprep.subr.bf16.mxu0 %v829
    %891 = vmatpush1.bf16.msra.mxu0 %v828
    %892 = vmatprep.subr.bf16.mxu0 %v833
    %893 = vmatpush1.bf16.msra.mxu0 %v832
    %894 = vmatprep.subr.bf16.mxu0 %v837
    %895 = vmatpush1.bf16.msra.mxu0 %v836
    %896 = vmatprep.subr.bf16.mxu0 %v841
    %897 = vmatpush1.bf16.msra.mxu0 %v840
    %898 = vmatprep.subr.bf16.mxu0 %v845
    %899 = vmatpush1.bf16.msra.mxu0 %v844
    %900 = vmatprep.subr.bf16.mxu0 %v849
    %901 = vmatpush1.bf16.msra.mxu0 %v848
    %902 = vmatprep.subr.bf16.mxu0 %v853
    %903 = vmatpush1.bf16.msra.mxu0 %v852
    %904 = vmatprep.subr.bf16.mxu0 0
    %905 = vmatpush1.bf16.msra.mxu0 0
    %906 = vmatprep.subr.bf16.mxu0 0
    %907 = vmatpush1.bf16.msra.mxu0 0
    %908 = vmatprep.subr.bf16.mxu0 0
    %909 = vmatpush1.bf16.msra.mxu0 0
    %910 = vmatprep.subr.bf16.mxu0 0
    %911 = vmatpush1.bf16.msra.mxu0 0
    %912 = vmatprep.subr.bf16.mxu0 0
    %913 = vmatpush1.bf16.msra.mxu0 0
    %914 = vmatprep.subr.bf16.mxu0 0
    %915 = vmatpush1.bf16.msra.mxu0 0
    %916 = vmatprep.subr.bf16.mxu0 0
    %917 = vmatpush1.bf16.msra.mxu0 0
    %918 = vmatprep.subr.bf16.mxu0 0
    %919 = vmatpush1.bf16.msra.mxu0 0
    %920 = vmatprep.mubr.bf16.mxu0 0
    %921 = vmatmul.mubr.bf16.gmra.mrb[0].mxu0 0
    %v922 = vpop.f32.mrb[0].mxu0
    %v923 = vadd.f32 0.0, %v922
    %v924 = vpop.f32.mrb[0].mxu0
    %v925 = vadd.f32 0.0, %v924
    %v926 = vpop.f32.mrb[0].mxu0
    %v927 = vpop.f32.mrb[0].mxu0
    %928 = vdwg.mxu0
    %929 = vmatprep.subr.bf16.mxu0 %v827
    %930 = vmatpush1.bf16.msra.mxu0 %v826
    %931 = vmatprep.subr.bf16.mxu0 %v831
    %932 = vmatpush1.bf16.msra.mxu0 %v830
    %933 = vmatprep.subr.bf16.mxu0 %v835
    %934 = vmatpush1.bf16.msra.mxu0 %v834
    %935 = vmatprep.subr.bf16.mxu0 %v839
    %936 = vmatpush1.bf16.msra.mxu0 %v838
    %937 = vmatprep.subr.bf16.mxu0 %v843
    %938 = vmatpush1.bf16.msra.mxu0 %v842
    %939 = vmatprep.subr.bf16.mxu0 %v847
    %940 = vmatpush1.bf16.msra.mxu0 %v846
    %941 = vmatprep.subr.bf16.mxu0 %v851
    %942 = vmatpush1.bf16.msra.mxu0 %v850
    %943 = vmatprep.subr.bf16.mxu0 %v855
    %944 = vmatpush1.bf16.msra.mxu0 %v854
    %945 = vmatprep.subr.bf16.mxu0 0
    %946 = vmatpush1.bf16.msra.mxu0 0
    %947 = vmatprep.subr.bf16.mxu0 0
    %948 = vmatpush1.bf16.msra.mxu0 0
    %949 = vmatprep.subr.bf16.mxu0 0
    %950 = vmatpush1.bf16.msra.mxu0 0
    %951 = vmatprep.subr.bf16.mxu0 0
    %952 = vmatpush1.bf16.msra.mxu0 0
    %953 = vmatprep.subr.bf16.mxu0 0
    %954 = vmatpush1.bf16.msra.mxu0 0
    %955 = vmatprep.subr.bf16.mxu0 0
    %956 = vmatpush1.bf16.msra.mxu0 0
    %957 = vmatprep.subr.bf16.mxu0 0
    %958 = vmatpush1.bf16.msra.mxu0 0
    %959 = vmatprep.subr.bf16.mxu0 0
    %960 = vmatpush1.bf16.msra.mxu0 0
    %961 = vmatprep.mubr.bf16.mxu0 0
    %962 = vmatmul.mubr.bf16.gmra.mrb[0].mxu0 0
    %v963 = vpop.f32.mrb[0].mxu0
    %v964 = vadd.f32 0.0, %v963
    %v965 = vpop.f32.mrb[0].mxu0
    %v966 = vadd.f32 0.0, %v965
    %v967 = vpop.f32.mrb[0].mxu0
    %v968 = vpop.f32.mrb[0].mxu0
    %969 = vdwg.mxu0
    %v1002 = vunpack.c.l.b16 %v664
    %v1003 = vunpack.c.h.b16 %v664
    %v1004 = vunpack.c.l.b16 %v665
    %v1005 = vunpack.c.h.b16 %v665
    %v1006 = vunpack.c.l.b16 %v666
    %v1007 = vunpack.c.h.b16 %v666
    %v1008 = vunpack.c.l.b16 %v667
    %v1009 = vunpack.c.h.b16 %v667
    %v1010 = vunpack.c.l.b16 %v668
    %v1011 = vunpack.c.h.b16 %v668
    %v1012 = vunpack.c.l.b16 %v669
    %v1013 = vunpack.c.h.b16 %v669
    %v1014 = vunpack.c.l.b16 %v670
    %v1015 = vunpack.c.h.b16 %v670
    %v1016 = vunpack.c.l.b16 %v671
    %v1017 = vunpack.c.h.b16 %v671
    %v1018 = vunpack.c.l.b16 %v672
    %v1019 = vunpack.c.h.b16 %v672
    %v1020 = vunpack.c.l.b16 %v673
    %v1021 = vunpack.c.h.b16 %v673
    %v1022 = vunpack.c.l.b16 %v674
    %v1023 = vunpack.c.h.b16 %v674
    %v1024 = vunpack.c.l.b16 %v675
    %v1025 = vunpack.c.h.b16 %v675
    %v1026 = vunpack.c.l.b16 %v676
    %v1027 = vunpack.c.h.b16 %v676
    %v1028 = vunpack.c.l.b16 %v677
    %v1029 = vunpack.c.h.b16 %v677
    %v1030 = vunpack.c.l.b16 %v678
    %v1031 = vunpack.c.h.b16 %v678
    %v1032 = vunpack.c.l.b16 %v679
    %v1033 = vunpack.c.h.b16 %v679
    %v1034 = vunpack.c.l.b16 %v680
    %v1035 = vunpack.c.h.b16 %v680
    %v1036 = vunpack.c.l.b16 %v681
    %v1037 = vunpack.c.h.b16 %v681
    %v1038 = vunpack.c.l.b16 %v682
    %v1039 = vunpack.c.h.b16 %v682
    %v1040 = vunpack.c.l.b16 %v683
    %v1041 = vunpack.c.h.b16 %v683
    %v1042 = vunpack.c.l.b16 %v684
    %v1043 = vunpack.c.h.b16 %v684
    %v1044 = vunpack.c.l.b16 %v685
    %v1045 = vunpack.c.h.b16 %v685
    %v1046 = vunpack.c.l.b16 %v686
    %v1047 = vunpack.c.h.b16 %v686
    %v1048 = vunpack.c.l.b16 %v687
    %v1049 = vunpack.c.h.b16 %v687
    %v1050 = vunpack.c.l.b16 %v688
    %v1051 = vunpack.c.h.b16 %v688
    %v1052 = vunpack.c.l.b16 %v689
    %v1053 = vunpack.c.h.b16 %v689
    %v1054 = vunpack.c.l.b16 %v690
    %v1055 = vunpack.c.h.b16 %v690
    %v1056 = vunpack.c.l.b16 %v691
    %v1057 = vunpack.c.h.b16 %v691
    %v1058 = vunpack.c.l.b16 %v692
    %v1059 = vunpack.c.h.b16 %v692
    %v1060 = vunpack.c.l.b16 %v693
    %v1061 = vunpack.c.h.b16 %v693
    %v1062 = vunpack.c.l.b16 %v694
    %v1063 = vunpack.c.h.b16 %v694
    %v1064 = vunpack.c.l.b16 %v695
    %v1065 = vunpack.c.h.b16 %v695
    %v1066 = vpack.c.b16 %v1006, %v1002
    %v1067 = vpack.c.b16 %v1007, %v1003
    %v1068 = vpack.c.b16 %v1008, %v1004
    %v1069 = vpack.c.b16 %v1009, %v1005
    %v1070 = vpack.c.b16 %v1014, %v1010
    %v1071 = vpack.c.b16 %v1015, %v1011
    %v1072 = vpack.c.b16 %v1016, %v1012
    %v1073 = vpack.c.b16 %v1017, %v1013
    %v1074 = vpack.c.b16 %v1022, %v1018
    %v1075 = vpack.c.b16 %v1023, %v1019
    %v1076 = vpack.c.b16 %v1024, %v1020
    %v1077 = vpack.c.b16 %v1025, %v1021
    %v1078 = vpack.c.b16 %v1030, %v1026
    %v1079 = vpack.c.b16 %v1031, %v1027
    %v1080 = vpack.c.b16 %v1032, %v1028
    %v1081 = vpack.c.b16 %v1033, %v1029
    %v1082 = vpack.c.b16 %v1038, %v1034
    %v1083 = vpack.c.b16 %v1039, %v1035
    %v1084 = vpack.c.b16 %v1040, %v1036
    %v1085 = vpack.c.b16 %v1041, %v1037
    %v1086 = vpack.c.b16 %v1046, %v1042
    %v1087 = vpack.c.b16 %v1047, %v1043
    %v1088 = vpack.c.b16 %v1048, %v1044
    %v1089 = vpack.c.b16 %v1049, %v1045
    %v1090 = vpack.c.b16 %v1054, %v1050
    %v1091 = vpack.c.b16 %v1055, %v1051
    %v1092 = vpack.c.b16 %v1056, %v1052
    %v1093 = vpack.c.b16 %v1057, %v1053
    %v1094 = vpack.c.b16 %v1062, %v1058
    %v1095 = vpack.c.b16 %v1063, %v1059
    %v1096 = vpack.c.b16 %v1064, %v1060
    %v1097 = vpack.c.b16 %v1065, %v1061
    %1130 = vmatprep.subr.bf16.mxu0 %v1067
    %1131 = vmatpush1.bf16.msra.mxu0 %v1066
    %1132 = vmatprep.subr.bf16.mxu0 %v1071
    %1133 = vmatpush1.bf16.msra.mxu0 %v1070
    %1134 = vmatprep.subr.bf16.mxu0 %v1075
    %1135 = vmatpush1.bf16.msra.mxu0 %v1074
    %1136 = vmatprep.subr.bf16.mxu0 %v1079
    %1137 = vmatpush1.bf16.msra.mxu0 %v1078
    %1138 = vmatprep.subr.bf16.mxu0 %v1083
    %1139 = vmatpush1.bf16.msra.mxu0 %v1082
    %1140 = vmatprep.subr.bf16.mxu0 %v1087
    %1141 = vmatpush1.bf16.msra.mxu0 %v1086
    %1142 = vmatprep.subr.bf16.mxu0 %v1091
    %1143 = vmatpush1.bf16.msra.mxu0 %v1090
    %1144 = vmatprep.subr.bf16.mxu0 %v1095
    %1145 = vmatpush1.bf16.msra.mxu0 %v1094
    %1146 = vmatprep.subr.bf16.mxu0 0
    %1147 = vmatpush1.bf16.msra.mxu0 0
    %1148 = vmatprep.subr.bf16.mxu0 0
    %1149 = vmatpush1.bf16.msra.mxu0 0
    %1150 = vmatprep.subr.bf16.mxu0 0
    %1151 = vmatpush1.bf16.msra.mxu0 0
    %1152 = vmatprep.subr.bf16.mxu0 0
    %1153 = vmatpush1.bf16.msra.mxu0 0
    %1154 = vmatprep.subr.bf16.mxu0 0
    %1155 = vmatpush1.bf16.msra.mxu0 0
    %1156 = vmatprep.subr.bf16.mxu0 0
    %1157 = vmatpush1.bf16.msra.mxu0 0
    %1158 = vmatprep.subr.bf16.mxu0 0
    %1159 = vmatpush1.bf16.msra.mxu0 0
    %1160 = vmatprep.subr.bf16.mxu0 0
    %1161 = vmatpush1.bf16.msra.mxu0 0
    %1162 = vmatprep.mubr.bf16.mxu0 0
    %1163 = vmatmul.mubr.bf16.gmra.mrb[0].mxu0 %v663
    %v1164 = vpop.f32.mrb[0].mxu0
    %v1165 = vadd.f32 %v923, %v1164
    %v1166 = vpop.f32.mrb[0].mxu0
    %v1167 = vadd.f32 %v925, %v1166
    %v1168 = vpop.f32.mrb[0].mxu0
    %v1169 = vpop.f32.mrb[0].mxu0
    %1170 = vdwg.mxu0
    %1171 = vmatprep.subr.bf16.mxu0 %v1069
    %1172 = vmatpush1.bf16.msra.mxu0 %v1068
    %1173 = vmatprep.subr.bf16.mxu0 %v1073
    %1174 = vmatpush1.bf16.msra.mxu0 %v1072
    %1175 = vmatprep.subr.bf16.mxu0 %v1077
    %1176 = vmatpush1.bf16.msra.mxu0 %v1076
    %1177 = vmatprep.subr.bf16.mxu0 %v1081
    %1178 = vmatpush1.bf16.msra.mxu0 %v1080
    %1179 = vmatprep.subr.bf16.mxu0 %v1085
    %1180 = vmatpush1.bf16.msra.mxu0 %v1084
    %1181 = vmatprep.subr.bf16.mxu0 %v1089
    %1182 = vmatpush1.bf16.msra.mxu0 %v1088
    %1183 = vmatprep.subr.bf16.mxu0 %v1093
    %1184 = vmatpush1.bf16.msra.mxu0 %v1092
    %1185 = vmatprep.subr.bf16.mxu0 %v1097
    %1186 = vmatpush1.bf16.msra.mxu0 %v1096
    %1187 = vmatprep.subr.bf16.mxu0 0
    %1188 = vmatpush1.bf16.msra.mxu0 0
    %1189 = vmatprep.subr.bf16.mxu0 0
    %1190 = vmatpush1.bf16.msra.mxu0 0
    %1191 = vmatprep.subr.bf16.mxu0 0
    %1192 = vmatpush1.bf16.msra.mxu0 0
    %1193 = vmatprep.subr.bf16.mxu0 0
    %1194 = vmatpush1.bf16.msra.mxu0 0
    %1195 = vmatprep.subr.bf16.mxu0 0
    %1196 = vmatpush1.bf16.msra.mxu0 0
    %1197 = vmatprep.subr.bf16.mxu0 0
    %1198 = vmatpush1.bf16.msra.mxu0 0
    %1199 = vmatprep.subr.bf16.mxu0 0
    %1200 = vmatpush1.bf16.msra.mxu0 0
    %1201 = vmatprep.subr.bf16.mxu0 0
    %1202 = vmatpush1.bf16.msra.mxu0 0
    %1203 = vmatprep.mubr.bf16.mxu0 0
    %1204 = vmatmul.mubr.bf16.gmra.mrb[0].mxu0 %v663
    %v1205 = vpop.f32.mrb[0].mxu0
    %v1206 = vadd.f32 %v964, %v1205
    %v1207 = vpop.f32.mrb[0].mxu0
    %v1208 = vadd.f32 %v966, %v1207
    %v1209 = vpop.f32.mrb[0].mxu0
    %v1210 = vpop.f32.mrb[0].mxu0
    %1211 = vdwg.mxu0
    %v1212 = vadd.f32 %v1165, %v337
    %v1213 = vadd.f32 %v1167, %v341
    %v1214 = vadd.f32 %v1206, %v345
    %v1215 = vadd.f32 %v1208, %v349
    %v1216 = vxor.u32 %v1212, 2147483648
    %v1217 = vxor.u32 %v1213, 2147483648
    %v1218 = vxor.u32 %v1214, 2147483648
    %v1219 = vmul.f32 %v1216, 1.442695
    %v1220 = vpow.pop %v1219
    %v1221 = vmul.f32 %v1217, 1.442695
    %v1222 = vpow.pop %v1221
    %v1223 = vmul.f32 %v1218, 1.442695
    %v1224 = vpow.pop %v1223
    %v1225 = vadd.f32 %v1220, 1.0
    %v1226 = vadd.f32 %v1222, 1.0
    %v1227 = vadd.f32 %v1224, 1.0
    %v1228 = vrcp.pop %v1225
    %v1229 = vmul.f32 1.0, %v1228
    %v1230 = vrcp.pop %v1226
    %v1231 = vmul.f32 1.0, %v1230
    %v1232 = vrcp.pop %v1227
    %v1233 = vmul.f32 1.0, %v1232
    %v1234 = vtanh.pop %v1215
    %v1235 = vmul.f32 %v1231, 0.0
    %v1236 = vmul.f32 %v1229, %v1234
    %v1237 = vadd.f32 %v1235, %v1236
    %v1238 = vtanh.pop %v1237
    %v1239 = vmul.f32 %v1233, %v1238
    %s1240 = smul.u32 1, 4
    %s1241 = smul.addr %s1240, 8
    %s1242 = scalar_lea.vmem [#allocation2], %s1241
    %v1243 = vld [vmem:[%s1242] sm:$0xff]
    %v1244 = vld [vmem:[%s1242 + $0x8] sm:$0xff]
    %v1245 = vld [vmem:[%s1242 + $0x10] sm:$0xff]
    %v1246 = vld [vmem:[%s1242 + $0x18] sm:$0xff]
    %1247 = vmatprep.subr.bf16.mxu0 %v490
    %1248 = vmatpush1.bf16.msra.mxu0 %v489
    %1249 = vmatprep.subr.bf16.mxu0 %v494
    %1250 = vmatpush1.bf16.msra.mxu0 %v493
    %1251 = vmatprep.subr.bf16.mxu0 %v498
    %1252 = vmatpush1.bf16.msra.mxu0 %v497
    %1253 = vmatprep.subr.bf16.mxu0 %v502
    %1254 = vmatpush1.bf16.msra.mxu0 %v501
    %1255 = vmatprep.subr.bf16.mxu0 %v506
    %1256 = vmatpush1.bf16.msra.mxu0 %v505
    %1257 = vmatprep.subr.bf16.mxu0 %v510
    %1258 = vmatpush1.bf16.msra.mxu0 %v509
    %1259 = vmatprep.subr.bf16.mxu0 %v514
    %1260 = vmatpush1.bf16.msra.mxu0 %v513
    %1261 = vmatprep.subr.bf16.mxu0 %v518
    %1262 = vmatpush1.bf16.msra.mxu0 %v517
    %1263 = vmatprep.subr.bf16.mxu0 0
    %1264 = vmatpush1.bf16.msra.mxu0 0
    %1265 = vmatprep.subr.bf16.mxu0 0
    %1266 = vmatpush1.bf16.msra.mxu0 0
    %1267 = vmatprep.subr.bf16.mxu0 0
    %1268 = vmatpush1.bf16.msra.mxu0 0
    %1269 = vmatprep.subr.bf16.mxu0 0
    %1270 = vmatpush1.bf16.msra.mxu0 0
    %1271 = vmatprep.subr.bf16.mxu0 0
    %1272 = vmatpush1.bf16.msra.mxu0 0
    %1273 = vmatprep.subr.bf16.mxu0 0
    %1274 = vmatpush1.bf16.msra.mxu0 0
    %1275 = vmatprep.subr.bf16.mxu0 0
    %1276 = vmatpush1.bf16.msra.mxu0 0
    %1277 = vmatprep.subr.bf16.mxu0 0
    %1278 = vmatpush1.bf16.msra.mxu0 0
    %1279 = vmatprep.mubr.bf16.mxu0 0
    %1280 = vmatmul.mubr.bf16.gmra.mrb[0].mxu0 %v663
    %v1281 = vpop.f32.mrb[0].mxu0
    %v1282 = vadd.f32 0.0, %v1281
    %v1283 = vpop.f32.mrb[0].mxu0
    %v1284 = vadd.f32 0.0, %v1283
    %v1285 = vpop.f32.mrb[0].mxu0
    %v1286 = vpop.f32.mrb[0].mxu0
    %1287 = vdwg.mxu0
    %1288 = vmatprep.subr.bf16.mxu0 %v492
    %1289 = vmatpush1.bf16.msra.mxu0 %v491
    %1290 = vmatprep.subr.bf16.mxu0 %v496
    %1291 = vmatpush1.bf16.msra.mxu0 %v495
    %1292 = vmatprep.subr.bf16.mxu0 %v500
    %1293 = vmatpush1.bf16.msra.mxu0 %v499
    %1294 = vmatprep.subr.bf16.mxu0 %v504
    %1295 = vmatpush1.bf16.msra.mxu0 %v503
    %1296 = vmatprep.subr.bf16.mxu0 %v508
    %1297 = vmatpush1.bf16.msra.mxu0 %v507
    %1298 = vmatprep.subr.bf16.mxu0 %v512
    %1299 = vmatpush1.bf16.msra.mxu0 %v511
    %1300 = vmatprep.subr.bf16.mxu0 %v516
    %1301 = vmatpush1.bf16.msra.mxu0 %v515
    %1302 = vmatprep.subr.bf16.mxu0 %v520
    %1303 = vmatpush1.bf16.msra.mxu0 %v519
    %1304 = vmatprep.subr.bf16.mxu0 0
    %1305 = vmatpush1.bf16.msra.mxu0 0
    %1306 = vmatprep.subr.bf16.mxu0 0
    %1307 = vmatpush1.bf16.msra.mxu0 0
    %1308 = vmatprep.subr.bf16.mxu0 0
    %1309 = vmatpush1.bf16.msra.mxu0 0
    %1310 = vmatprep.subr.bf16.mxu0 0
    %1311 = vmatpush1.bf16.msra.mxu0 0
    %1312 = vmatprep.subr.bf16.mxu0 0
    %1313 = vmatpush1.bf16.msra.mxu0 0
    %1314 = vmatprep.subr.bf16.mxu0 0
    %1315 = vmatpush1.bf16.msra.mxu0 0
    %1316 = vmatprep.subr.bf16.mxu0 0
    %1317 = vmatpush1.bf16.msra.mxu0 0
    %1318 = vmatprep.subr.bf16.mxu0 0
    %1319 = vmatpush1.bf16.msra.mxu0 0
    %1320 = vmatprep.mubr.bf16.mxu0 0
    %1321 = vmatmul.mubr.bf16.gmra.mrb[0].mxu0 %v663
    %v1322 = vpop.f32.mrb[0].mxu0
    %v1323 = vadd.f32 0.0, %v1322
    %v1324 = vpop.f32.mrb[0].mxu0
    %v1325 = vadd.f32 0.0, %v1324
    %v1326 = vpop.f32.mrb[0].mxu0
    %v1327 = vpop.f32.mrb[0].mxu0
    %1328 = vdwg.mxu0
    %v1329 = vadd.f32 %v1243, %v1282
    %v1330 = vadd.f32 %v1244, %v1284
    %v1331 = vadd.f32 %v1245, %v1323
    %v1332 = vadd.f32 %v1246, %v1325
    %v1333 = vxor.u32 %v1329, 2147483648
    %v1334 = vxor.u32 %v1330, 2147483648
    %v1335 = vxor.u32 %v1331, 2147483648
    %v1336 = vmul.f32 %v1333, 1.442695
    %v1337 = vpow.pop %v1336
    %v1338 = vmul.f32 %v1334, 1.442695
    %v1339 = vpow.pop %v1338
    %v1340 = vmul.f32 %v1335, 1.442695
    %v1341 = vpow.pop %v1340
    %v1342 = vadd.f32 %v1337, 1.0
    %v1343 = vadd.f32 %v1339, 1.0
    %v1344 = vadd.f32 %v1341, 1.0
    %v1345 = vrcp.pop %v1342
    %v1346 = vmul.f32 1.0, %v1345
    %v1347 = vrcp.pop %v1343
    %v1348 = vmul.f32 1.0, %v1347
    %v1349 = vrcp.pop %v1344
    %v1350 = vmul.f32 1.0, %v1349
    %v1351 = vtanh.pop %v1332
    %v1352 = vmul.f32 %v1348, %v660
    %v1353 = vmul.f32 %v1346, %v1351
    %v1354 = vadd.f32 %v1352, %v1353
    %v1355 = vtanh.pop %v1354
    %v1356 = vmul.f32 %v1350, %v1355
    %v1357 = vpack.c.bf16 %v1356, %v1356
    %v1358 = vpack.c.bf16 %v1239, %v1239
    %1359 = vmatprep.subr.bf16.mxu0 %v825
    %1360 = vmatpush1.bf16.msra.mxu0 %v824
    %1361 = vmatprep.subr.bf16.mxu0 %v829
    %1362 = vmatpush1.bf16.msra.mxu0 %v828
    %1363 = vmatprep.subr.bf16.mxu0 %v833
    %1364 = vmatpush1.bf16.msra.mxu0 %v832
    %1365 = vmatprep.subr.bf16.mxu0 %v837
    %1366 = vmatpush1.bf16.msra.mxu0 %v836
    %1367 = vmatprep.subr.bf16.mxu0 %v841
    %1368 = vmatpush1.bf16.msra.mxu0 %v840
    %1369 = vmatprep.subr.bf16.mxu0 %v845
    %1370 = vmatpush1.bf16.msra.mxu0 %v844
    %1371 = vmatprep.subr.bf16.mxu0 %v849
    %1372 = vmatpush1.bf16.msra.mxu0 %v848
    %1373 = vmatprep.subr.bf16.mxu0 %v853
    %1374 = vmatpush1.bf16.msra.mxu0 %v852
    %1375 = vmatprep.subr.bf16.mxu0 0
    %1376 = vmatpush1.bf16.msra.mxu0 0
    %1377 = vmatprep.subr.bf16.mxu0 0
    %1378 = vmatpush1.bf16.msra.mxu0 0
    %1379 = vmatprep.subr.bf16.mxu0 0
    %1380 = vmatpush1.bf16.msra.mxu0 0
    %1381 = vmatprep.subr.bf16.mxu0 0
    %1382 = vmatpush1.bf16.msra.mxu0 0
    %1383 = vmatprep.subr.bf16.mxu0 0
    %1384 = vmatpush1.bf16.msra.mxu0 0
    %1385 = vmatprep.subr.bf16.mxu0 0
    %1386 = vmatpush1.bf16.msra.mxu0 0
    %1387 = vmatprep.subr.bf16.mxu0 0
    %1388 = vmatpush1.bf16.msra.mxu0 0
    %1389 = vmatprep.subr.bf16.mxu0 0
    %1390 = vmatpush1.bf16.msra.mxu0 0
    %1391 = vmatprep.mubr.bf16.mxu0 0
    %1392 = vmatmul.mubr.bf16.gmra.mrb[0].mxu0 %v1358
    %v1393 = vpop.f32.mrb[0].mxu0
    %v1394 = vadd.f32 0.0, %v1393
    %v1395 = vpop.f32.mrb[0].mxu0
    %v1396 = vadd.f32 0.0, %v1395
    %v1397 = vpop.f32.mrb[0].mxu0
    %v1398 = vpop.f32.mrb[0].mxu0
    %1399 = vdwg.mxu0
    %1400 = vmatprep.subr.bf16.mxu0 %v827
    %1401 = vmatpush1.bf16.msra.mxu0 %v826
    %1402 = vmatprep.subr.bf16.mxu0 %v831
    %1403 = vmatpush1.bf16.msra.mxu0 %v830
    %1404 = vmatprep.subr.bf16.mxu0 %v835
    %1405 = vmatpush1.bf16.msra.mxu0 %v834
    %1406 = vmatprep.subr.bf16.mxu0 %v839
    %1407 = vmatpush1.bf16.msra.mxu0 %v838
    %1408 = vmatprep.subr.bf16.mxu0 %v843
    %1409 = vmatpush1.bf16.msra.mxu0 %v842
    %1410 = vmatprep.subr.bf16.mxu0 %v847
    %1411 = vmatpush1.bf16.msra.mxu0 %v846
    %1412 = vmatprep.subr.bf16.mxu0 %v851
    %1413 = vmatpush1.bf16.msra.mxu0 %v850
    %1414 = vmatprep.subr.bf16.mxu0 %v855
    %1415 = vmatpush1.bf16.msra.mxu0 %v854
    %1416 = vmatprep.subr.bf16.mxu0 0
    %1417 = vmatpush1.bf16.msra.mxu0 0
    %1418 = vmatprep.subr.bf16.mxu0 0
    %1419 = vmatpush1.bf16.msra.mxu0 0
    %1420 = vmatprep.subr.bf16.mxu0 0
    %1421 = vmatpush1.bf16.msra.mxu0 0
    %1422 = vmatprep.subr.bf16.mxu0 0
    %1423 = vmatpush1.bf16.msra.mxu0 0
    %1424 = vmatprep.subr.bf16.mxu0 0
    %1425 = vmatpush1.bf16.msra.mxu0 0
    %1426 = vmatprep.subr.bf16.mxu0 0
    %1427 = vmatpush1.bf16.msra.mxu0 0
    %1428 = vmatprep.subr.bf16.mxu0 0
    %1429 = vmatpush1.bf16.msra.mxu0 0
    %1430 = vmatprep.subr.bf16.mxu0 0
    %1431 = vmatpush1.bf16.msra.mxu0 0
    %1432 = vmatprep.mubr.bf16.mxu0 0
    %1433 = vmatmul.mubr.bf16.gmra.mrb[0].mxu0 %v1358
    %v1434 = vpop.f32.mrb[0].mxu0
    %v1435 = vadd.f32 0.0, %v1434
    %v1436 = vpop.f32.mrb[0].mxu0
    %v1437 = vadd.f32 0.0, %v1436
    %v1438 = vpop.f32.mrb[0].mxu0
    %v1439 = vpop.f32.mrb[0].mxu0
    %1440 = vdwg.mxu0
    %1441 = vmatprep.subr.bf16.mxu0 %v1067
    %1442 = vmatpush1.bf16.msra.mxu0 %v1066
    %1443 = vmatprep.subr.bf16.mxu0 %v1071
    %1444 = vmatpush1.bf16.msra.mxu0 %v1070
    %1445 = vmatprep.subr.bf16.mxu0 %v1075
    %1446 = vmatpush1.bf16.msra.mxu0 %v1074
    %1447 = vmatprep.subr.bf16.mxu0 %v1079
    %1448 = vmatpush1.bf16.msra.mxu0 %v1078
    %1449 = vmatprep.subr.bf16.mxu0 %v1083
    %1450 = vmatpush1.bf16.msra.mxu0 %v1082
    %1451 = vmatprep.subr.bf16.mxu0 %v1087
    %1452 = vmatpush1.bf16.msra.mxu0 %v1086
    %1453 = vmatprep.subr.bf16.mxu0 %v1091
    %1454 = vmatpush1.bf16.msra.mxu0 %v1090
    %1455 = vmatprep.subr.bf16.mxu0 %v1095
    %1456 = vmatpush1.bf16.msra.mxu0 %v1094
    %1457 = vmatprep.subr.bf16.mxu0 0
    %1458 = vmatpush1.bf16.msra.mxu0 0
    %1459 = vmatprep.subr.bf16.mxu0 0
    %1460 = vmatpush1.bf16.msra.mxu0 0
    %1461 = vmatprep.subr.bf16.mxu0 0
    %1462 = vmatpush1.bf16.msra.mxu0 0
    %1463 = vmatprep.subr.bf16.mxu0 0
    %1464 = vmatpush1.bf16.msra.mxu0 0
    %1465 = vmatprep.subr.bf16.mxu0 0
    %1466 = vmatpush1.bf16.msra.mxu0 0
    %1467 = vmatprep.subr.bf16.mxu0 0
    %1468 = vmatpush1.bf16.msra.mxu0 0
    %1469 = vmatprep.subr.bf16.mxu0 0
    %1470 = vmatpush1.bf16.msra.mxu0 0
    %1471 = vmatprep.subr.bf16.mxu0 0
    %1472 = vmatpush1.bf16.msra.mxu0 0
    %1473 = vmatprep.mubr.bf16.mxu0 0
    %1474 = vmatmul.mubr.bf16.gmra.mrb[0].mxu0 %v1357
    %v1475 = vpop.f32.mrb[0].mxu0
    %v1476 = vadd.f32 %v1394, %v1475
    %v1477 = vpop.f32.mrb[0].mxu0
    %v1478 = vadd.f32 %v1396, %v1477
    %v1479 = vpop.f32.mrb[0].mxu0
    %v1480 = vpop.f32.mrb[0].mxu0
    %1481 = vdwg.mxu0
    %1482 = vmatprep.subr.bf16.mxu0 %v1069
    %1483 = vmatpush1.bf16.msra.mxu0 %v1068
    %1484 = vmatprep.subr.bf16.mxu0 %v1073
    %1485 = vmatpush1.bf16.msra.mxu0 %v1072
    %1486 = vmatprep.subr.bf16.mxu0 %v1077
    %1487 = vmatpush1.bf16.msra.mxu0 %v1076
    %1488 = vmatprep.subr.bf16.mxu0 %v1081
    %1489 = vmatpush1.bf16.msra.mxu0 %v1080
    %1490 = vmatprep.subr.bf16.mxu0 %v1085
    %1491 = vmatpush1.bf16.msra.mxu0 %v1084
    %1492 = vmatprep.subr.bf16.mxu0 %v1089
    %1493 = vmatpush1.bf16.msra.mxu0 %v1088
    %1494 = vmatprep.subr.bf16.mxu0 %v1093
    %1495 = vmatpush1.bf16.msra.mxu0 %v1092
    %1496 = vmatprep.subr.bf16.mxu0 %v1097
    %1497 = vmatpush1.bf16.msra.mxu0 %v1096
    %1498 = vmatprep.subr.bf16.mxu0 0
    %1499 = vmatpush1.bf16.msra.mxu0 0
    %1500 = vmatprep.subr.bf16.mxu0 0
    %1501 = vmatpush1.bf16.msra.mxu0 0
    %1502 = vmatprep.subr.bf16.mxu0 0
    %1503 = vmatpush1.bf16.msra.mxu0 0
    %1504 = vmatprep.subr.bf16.mxu0 0
    %1505 = vmatpush1.bf16.msra.mxu0 0
    %1506 = vmatprep.subr.bf16.mxu0 0
    %1507 = vmatpush1.bf16.msra.mxu0 0
    %1508 = vmatprep.subr.bf16.mxu0 0
    %1509 = vmatpush1.bf16.msra.mxu0 0
    %1510 = vmatprep.subr.bf16.mxu0 0
    %1511 = vmatpush1.bf16.msra.mxu0 0
    %1512 = vmatprep.subr.bf16.mxu0 0
    %1513 = vmatpush1.bf16.msra.mxu0 0
    %1514 = vmatprep.mubr.bf16.mxu0 0
    %1515 = vmatmul.mubr.bf16.gmra.mrb[0].mxu0 %v1357
    %v1516 = vpop.f32.mrb[0].mxu0
    %v1517 = vadd.f32 %v1435, %v1516
    %v1518 = vpop.f32.mrb[0].mxu0
    %v1519 = vadd.f32 %v1437, %v1518
    %v1520 = vpop.f32.mrb[0].mxu0
    %v1521 = vpop.f32.mrb[0].mxu0
    %1522 = vdwg.mxu0
    %v1523 = vadd.f32 %v1476, %v337
    %v1524 = vadd.f32 %v1478, %v341
    %v1525 = vadd.f32 %v1517, %v345
    %v1526 = vadd.f32 %v1519, %v349
    %v1527 = vxor.u32 %v1523, 2147483648
    %v1528 = vxor.u32 %v1524, 2147483648
    %v1529 = vxor.u32 %v1525, 2147483648
    %v1530 = vmul.f32 %v1527, 1.442695
    %v1531 = vpow.pop %v1530
    %v1532 = vmul.f32 %v1528, 1.442695
    %v1533 = vpow.pop %v1532
    %v1534 = vmul.f32 %v1529, 1.442695
    %v1535 = vpow.pop %v1534
    %v1536 = vadd.f32 %v1531, 1.0
    %v1537 = vadd.f32 %v1533, 1.0
    %v1538 = vadd.f32 %v1535, 1.0
    %v1539 = vrcp.pop %v1536
    %v1540 = vmul.f32 1.0, %v1539
    %v1541 = vrcp.pop %v1537
    %v1542 = vmul.f32 1.0, %v1541
    %v1543 = vrcp.pop %v1538
    %v1544 = vmul.f32 1.0, %v1543
    %v1545 = vtanh.pop %v1526
    %v1546 = vmul.f32 %v1542, %v1237
    %v1547 = vmul.f32 %v1540, %v1545
    %v1548 = vadd.f32 %v1546, %v1547
    %v1549 = vtanh.pop %v1548
    %v1550 = vmul.f32 %v1544, %v1549
    %s1551 = smul.u32 2, 4
    %s1552 = smul.addr %s1551, 8
    %s1553 = scalar_lea.vmem [#allocation2], %s1552
    %v1554 = vld [vmem:[%s1553] sm:$0xff]
    %v1555 = vld [vmem:[%s1553 + $0x8] sm:$0xff]
    %v1556 = vld [vmem:[%s1553 + $0x10] sm:$0xff]
    %v1557 = vld [vmem:[%s1553 + $0x18] sm:$0xff]
    %1558 = vmatprep.subr.bf16.mxu0 %v490
    %1559 = vmatpush1.bf16.msra.mxu0 %v489
    %1560 = vmatprep.subr.bf16.mxu0 %v494
    %1561 = vmatpush1.bf16.msra.mxu0 %v493
    %1562 = vmatprep.subr.bf16.mxu0 %v498
    %1563 = vmatpush1.bf16.msra.mxu0 %v497
    %1564 = vmatprep.subr.bf16.mxu0 %v502
    %1565 = vmatpush1.bf16.msra.mxu0 %v501
    %1566 = vmatprep.subr.bf16.mxu0 %v506
    %1567 = vmatpush1.bf16.msra.mxu0 %v505
    %1568 = vmatprep.subr.bf16.mxu0 %v510
    %1569 = vmatpush1.bf16.msra.mxu0 %v509
    %1570 = vmatprep.subr.bf16.mxu0 %v514
    %1571 = vmatpush1.bf16.msra.mxu0 %v513
    %1572 = vmatprep.subr.bf16.mxu0 %v518
    %1573 = vmatpush1.bf16.msra.mxu0 %v517
    %1574 = vmatprep.subr.bf16.mxu0 0
    %1575 = vmatpush1.bf16.msra.mxu0 0
    %1576 = vmatprep.subr.bf16.mxu0 0
    %1577 = vmatpush1.bf16.msra.mxu0 0
    %1578 = vmatprep.subr.bf16.mxu0 0
    %1579 = vmatpush1.bf16.msra.mxu0 0
    %1580 = vmatprep.subr.bf16.mxu0 0
    %1581 = vmatpush1.bf16.msra.mxu0 0
    %1582 = vmatprep.subr.bf16.mxu0 0
    %1583 = vmatpush1.bf16.msra.mxu0 0
    %1584 = vmatprep.subr.bf16.mxu0 0
    %1585 = vmatpush1.bf16.msra.mxu0 0
    %1586 = vmatprep.subr.bf16.mxu0 0
    %1587 = vmatpush1.bf16.msra.mxu0 0
    %1588 = vmatprep.subr.bf16.mxu0 0
    %1589 = vmatpush1.bf16.msra.mxu0 0
    %1590 = vmatprep.mubr.bf16.mxu0 0
    %1591 = vmatmul.mubr.bf16.gmra.mrb[0].mxu0 %v1357
    %v1592 = vpop.f32.mrb[0].mxu0
    %v1593 = vadd.f32 0.0, %v1592
    %v1594 = vpop.f32.mrb[0].mxu0
    %v1595 = vadd.f32 0.0, %v1594
    %v1596 = vpop.f32.mrb[0].mxu0
    %v1597 = vpop.f32.mrb[0].mxu0
    %1598 = vdwg.mxu0
    %1599 = vmatprep.subr.bf16.mxu0 %v492
    %1600 = vmatpush1.bf16.msra.mxu0 %v491
    %1601 = vmatprep.subr.bf16.mxu0 %v496
    %1602 = vmatpush1.bf16.msra.mxu0 %v495
    %1603 = vmatprep.subr.bf16.mxu0 %v500
    %1604 = vmatpush1.bf16.msra.mxu0 %v499
    %1605 = vmatprep.subr.bf16.mxu0 %v504
    %1606 = vmatpush1.bf16.msra.mxu0 %v503
    %1607 = vmatprep.subr.bf16.mxu0 %v508
    %1608 = vmatpush1.bf16.msra.mxu0 %v507
    %1609 = vmatprep.subr.bf16.mxu0 %v512
    %1610 = vmatpush1.bf16.msra.mxu0 %v511
    %1611 = vmatprep.subr.bf16.mxu0 %v516
    %1612 = vmatpush1.bf16.msra.mxu0 %v515
    %1613 = vmatprep.subr.bf16.mxu0 %v520
    %1614 = vmatpush1.bf16.msra.mxu0 %v519
    %1615 = vmatprep.subr.bf16.mxu0 0
    %1616 = vmatpush1.bf16.msra.mxu0 0
    %1617 = vmatprep.subr.bf16.mxu0 0
    %1618 = vmatpush1.bf16.msra.mxu0 0
    %1619 = vmatprep.subr.bf16.mxu0 0
    %1620 = vmatpush1.bf16.msra.mxu0 0
    %1621 = vmatprep.subr.bf16.mxu0 0
    %1622 = vmatpush1.bf16.msra.mxu0 0
    %1623 = vmatprep.subr.bf16.mxu0 0
    %1624 = vmatpush1.bf16.msra.mxu0 0
    %1625 = vmatprep.subr.bf16.mxu0 0
    %1626 = vmatpush1.bf16.msra.mxu0 0
    %1627 = vmatprep.subr.bf16.mxu0 0
    %1628 = vmatpush1.bf16.msra.mxu0 0
    %1629 = vmatprep.subr.bf16.mxu0 0
    %1630 = vmatpush1.bf16.msra.mxu0 0
    %1631 = vmatprep.mubr.bf16.mxu0 0
    %1632 = vmatmul.mubr.bf16.gmra.mrb[0].mxu0 %v1357
    %v1633 = vpop.f32.mrb[0].mxu0
    %v1634 = vadd.f32 0.0, %v1633
    %v1635 = vpop.f32.mrb[0].mxu0
    %v1636 = vadd.f32 0.0, %v1635
    %v1637 = vpop.f32.mrb[0].mxu0
    %v1638 = vpop.f32.mrb[0].mxu0
    %1639 = vdwg.mxu0
    %v1640 = vadd.f32 %v1554, %v1593
    %v1641 = vadd.f32 %v1555, %v1595
    %v1642 = vadd.f32 %v1556, %v1634
    %v1643 = vadd.f32 %v1557, %v1636
    %v1644 = vxor.u32 %v1640, 2147483648
    %v1645 = vxor.u32 %v1641, 2147483648
    %v1646 = vxor.u32 %v1642, 2147483648
    %v1647 = vmul.f32 %v1644, 1.442695
    %v1648 = vpow.pop %v1647
    %v1649 = vmul.f32 %v1645, 1.442695
    %v1650 = vpow.pop %v1649
    %v1651 = vmul.f32 %v1646, 1.442695
    %v1652 = vpow.pop %v1651
    %v1653 = vadd.f32 %v1648, 1.0
    %v1654 = vadd.f32 %v1650, 1.0
    %v1655 = vadd.f32 %v1652, 1.0
    %v1656 = vrcp.pop %v1653
    %v1657 = vmul.f32 1.0, %v1656
    %v1658 = vrcp.pop %v1654
    %v1659 = vmul.f32 1.0, %v1658
    %v1660 = vrcp.pop %v1655
    %v1661 = vmul.f32 1.0, %v1660
    %v1662 = vtanh.pop %v1643
    %v1663 = vmul.f32 %v1659, %v1354
    %v1664 = vmul.f32 %v1657, %v1662
    %v1665 = vadd.f32 %v1663, %v1664
    %v1666 = vtanh.pop %v1665
    %v1667 = vmul.f32 %v1661, %v1666
    %v1668 = vpack.c.bf16 %v1667, %v1667
    %v1669 = vpack.c.bf16 %v1550, %v1550
    %1670 = vmatprep.subr.bf16.mxu0 %v825
    %1671 = vmatpush1.bf16.msra.mxu0 %v824
    %1672 = vmatprep.subr.bf16.mxu0 %v829
    %1673 = vmatpush1.bf16.msra.mxu0 %v828
    %1674 = vmatprep.subr.bf16.mxu0 %v833
    %1675 = vmatpush1.bf16.msra.mxu0 %v832
    %1676 = vmatprep.subr.bf16.mxu0 %v837
    %1677 = vmatpush1.bf16.msra.mxu0 %v836
    %1678 = vmatprep.subr.bf16.mxu0 %v841
    %1679 = vmatpush1.bf16.msra.mxu0 %v840
    %1680 = vmatprep.subr.bf16.mxu0 %v845
    %1681 = vmatpush1.bf16.msra.mxu0 %v844
    %1682 = vmatprep.subr.bf16.mxu0 %v849
    %1683 = vmatpush1.bf16.msra.mxu0 %v848
    %1684 = vmatprep.subr.bf16.mxu0 %v853
    %1685 = vmatpush1.bf16.msra.mxu0 %v852
    %1686 = vmatprep.subr.bf16.mxu0 0
    %1687 = vmatpush1.bf16.msra.mxu0 0
    %1688 = vmatprep.subr.bf16.mxu0 0
    %1689 = vmatpush1.bf16.msra.mxu0 0
    %1690 = vmatprep.subr.bf16.mxu0 0
    %1691 = vmatpush1.bf16.msra.mxu0 0
    %1692 = vmatprep.subr.bf16.mxu0 0
    %1693 = vmatpush1.bf16.msra.mxu0 0
    %1694 = vmatprep.subr.bf16.mxu0 0
    %1695 = vmatpush1.bf16.msra.mxu0 0
    %1696 = vmatprep.subr.bf16.mxu0 0
    %1697 = vmatpush1.bf16.msra.mxu0 0
    %1698 = vmatprep.subr.bf16.mxu0 0
    %1699 = vmatpush1.bf16.msra.mxu0 0
    %1700 = vmatprep.subr.bf16.mxu0 0
    %1701 = vmatpush1.bf16.msra.mxu0 0
    %1702 = vmatprep.mubr.bf16.mxu0 0
    %1703 = vmatmul.mubr.bf16.gmra.mrb[0].mxu0 %v1669
    %v1704 = vpop.f32.mrb[0].mxu0
    %v1705 = vadd.f32 0.0, %v1704
    %v1706 = vpop.f32.mrb[0].mxu0
    %v1707 = vadd.f32 0.0, %v1706
    %v1708 = vpop.f32.mrb[0].mxu0
    %v1709 = vpop.f32.mrb[0].mxu0
    %1710 = vdwg.mxu0
    %1711 = vmatprep.subr.bf16.mxu0 %v827
    %1712 = vmatpush1.bf16.msra.mxu0 %v826
    %1713 = vmatprep.subr.bf16.mxu0 %v831
    %1714 = vmatpush1.bf16.msra.mxu0 %v830
    %1715 = vmatprep.subr.bf16.mxu0 %v835
    %1716 = vmatpush1.bf16.msra.mxu0 %v834
    %1717 = vmatprep.subr.bf16.mxu0 %v839
    %1718 = vmatpush1.bf16.msra.mxu0 %v838
    %1719 = vmatprep.subr.bf16.mxu0 %v843
    %1720 = vmatpush1.bf16.msra.mxu0 %v842
    %1721 = vmatprep.subr.bf16.mxu0 %v847
    %1722 = vmatpush1.bf16.msra.mxu0 %v846
    %1723 = vmatprep.subr.bf16.mxu0 %v851
    %1724 = vmatpush1.bf16.msra.mxu0 %v850
    %1725 = vmatprep.subr.bf16.mxu0 %v855
    %1726 = vmatpush1.bf16.msra.mxu0 %v854
    %1727 = vmatprep.subr.bf16.mxu0 0
    %1728 = vmatpush1.bf16.msra.mxu0 0
    %1729 = vmatprep.subr.bf16.mxu0 0
    %1730 = vmatpush1.bf16.msra.mxu0 0
    %1731 = vmatprep.subr.bf16.mxu0 0
    %1732 = vmatpush1.bf16.msra.mxu0 0
    %1733 = vmatprep.subr.bf16.mxu0 0
    %1734 = vmatpush1.bf16.msra.mxu0 0
    %1735 = vmatprep.subr.bf16.mxu0 0
    %1736 = vmatpush1.bf16.msra.mxu0 0
    %1737 = vmatprep.subr.bf16.mxu0 0
    %1738 = vmatpush1.bf16.msra.mxu0 0
    %1739 = vmatprep.subr.bf16.mxu0 0
    %1740 = vmatpush1.bf16.msra.mxu0 0
    %1741 = vmatprep.subr.bf16.mxu0 0
    %1742 = vmatpush1.bf16.msra.mxu0 0
    %1743 = vmatprep.mubr.bf16.mxu0 0
    %1744 = vmatmul.mubr.bf16.gmra.mrb[0].mxu0 %v1669
    %v1745 = vpop.f32.mrb[0].mxu0
    %v1746 = vadd.f32 0.0, %v1745
    %v1747 = vpop.f32.mrb[0].mxu0
    %v1748 = vadd.f32 0.0, %v1747
    %v1749 = vpop.f32.mrb[0].mxu0
    %v1750 = vpop.f32.mrb[0].mxu0
    %1751 = vdwg.mxu0
    %1752 = vmatprep.subr.bf16.mxu0 %v1067
    %1753 = vmatpush1.bf16.msra.mxu0 %v1066
    %1754 = vmatprep.subr.bf16.mxu0 %v1071
    %1755 = vmatpush1.bf16.msra.mxu0 %v1070
    %1756 = vmatprep.subr.bf16.mxu0 %v1075
    %1757 = vmatpush1.bf16.msra.mxu0 %v1074
    %1758 = vmatprep.subr.bf16.mxu0 %v1079
    %1759 = vmatpush1.bf16.msra.mxu0 %v1078
    %1760 = vmatprep.subr.bf16.mxu0 %v1083
    %1761 = vmatpush1.bf16.msra.mxu0 %v1082
    %1762 = vmatprep.subr.bf16.mxu0 %v1087
    %1763 = vmatpush1.bf16.msra.mxu0 %v1086
    %1764 = vmatprep.subr.bf16.mxu0 %v1091
    %1765 = vmatpush1.bf16.msra.mxu0 %v1090
    %1766 = vmatprep.subr.bf16.mxu0 %v1095
    %1767 = vmatpush1.bf16.msra.mxu0 %v1094
    %1768 = vmatprep.subr.bf16.mxu0 0
    %1769 = vmatpush1.bf16.msra.mxu0 0
    %1770 = vmatprep.subr.bf16.mxu0 0
    %1771 = vmatpush1.bf16.msra.mxu0 0
    %1772 = vmatprep.subr.bf16.mxu0 0
    %1773 = vmatpush1.bf16.msra.mxu0 0
    %1774 = vmatprep.subr.bf16.mxu0 0
    %1775 = vmatpush1.bf16.msra.mxu0 0
    %1776 = vmatprep.subr.bf16.mxu0 0
    %1777 = vmatpush1.bf16.msra.mxu0 0
    %1778 = vmatprep.subr.bf16.mxu0 0
    %1779 = vmatpush1.bf16.msra.mxu0 0
    %1780 = vmatprep.subr.bf16.mxu0 0
    %1781 = vmatpush1.bf16.msra.mxu0 0
    %1782 = vmatprep.subr.bf16.mxu0 0
    %1783 = vmatpush1.bf16.msra.mxu0 0
    %1784 = vmatprep.mubr.bf16.mxu0 0
    %1785 = vmatmul.mubr.bf16.gmra.mrb[0].mxu0 %v1668
    %v1786 = vpop.f32.mrb[0].mxu0
    %v1787 = vadd.f32 %v1705, %v1786
    %v1788 = vpop.f32.mrb[0].mxu0
    %v1789 = vadd.f32 %v1707, %v1788
    %v1790 = vpop.f32.mrb[0].mxu0
    %v1791 = vpop.f32.mrb[0].mxu0
    %1792 = vdwg.mxu0
    %1793 = vmatprep.subr.bf16.mxu0 %v1069
    %1794 = vmatpush1.bf16.msra.mxu0 %v1068
    %1795 = vmatprep.subr.bf16.mxu0 %v1073
    %1796 = vmatpush1.bf16.msra.mxu0 %v1072
    %1797 = vmatprep.subr.bf16.mxu0 %v1077
    %1798 = vmatpush1.bf16.msra.mxu0 %v1076
    %1799 = vmatprep.subr.bf16.mxu0 %v1081
    %1800 = vmatpush1.bf16.msra.mxu0 %v1080
    %1801 = vmatprep.subr.bf16.mxu0 %v1085
    %1802 = vmatpush1.bf16.msra.mxu0 %v1084
    %1803 = vmatprep.subr.bf16.mxu0 %v1089
    %1804 = vmatpush1.bf16.msra.mxu0 %v1088
    %1805 = vmatprep.subr.bf16.mxu0 %v1093
    %1806 = vmatpush1.bf16.msra.mxu0 %v1092
    %1807 = vmatprep.subr.bf16.mxu0 %v1097
    %1808 = vmatpush1.bf16.msra.mxu0 %v1096
    %1809 = vmatprep.subr.bf16.mxu0 0
    %1810 = vmatpush1.bf16.msra.mxu0 0
    %1811 = vmatprep.subr.bf16.mxu0 0
    %1812 = vmatpush1.bf16.msra.mxu0 0
    %1813 = vmatprep.subr.bf16.mxu0 0
    %1814 = vmatpush1.bf16.msra.mxu0 0
    %1815 = vmatprep.subr.bf16.mxu0 0
    %1816 = vmatpush1.bf16.msra.mxu0 0
    %1817 = vmatprep.subr.bf16.mxu0 0
    %1818 = vmatpush1.bf16.msra.mxu0 0
    %1819 = vmatprep.subr.bf16.mxu0 0
    %1820 = vmatpush1.bf16.msra.mxu0 0
    %1821 = vmatprep.subr.bf16.mxu0 0
    %1822 = vmatpush1.bf16.msra.mxu0 0
    %1823 = vmatprep.subr.bf16.mxu0 0
    %1824 = vmatpush1.bf16.msra.mxu0 0
    %1825 = vmatprep.mubr.bf16.mxu0 0
    %1826 = vmatmul.mubr.bf16.gmra.mrb[0].mxu0 %v1668
    %v1827 = vpop.f32.mrb[0].mxu0
    %v1828 = vadd.f32 %v1746, %v1827
    %v1829 = vpop.f32.mrb[0].mxu0
    %v1830 = vadd.f32 %v1748, %v1829
    %v1831 = vpop.f32.mrb[0].mxu0
    %v1832 = vpop.f32.mrb[0].mxu0
    %1833 = vdwg.mxu0
    %v1834 = vadd.f32 %v1787, %v337
    %v1835 = vadd.f32 %v1789, %v341
    %v1836 = vadd.f32 %v1828, %v345
    %v1837 = vadd.f32 %v1830, %v349
    %v1838 = vxor.u32 %v1834, 2147483648
    %v1839 = vxor.u32 %v1835, 2147483648
    %v1840 = vxor.u32 %v1836, 2147483648
    %v1841 = vmul.f32 %v1838, 1.442695
    %v1842 = vpow.pop %v1841
    %v1843 = vmul.f32 %v1839, 1.442695
    %v1844 = vpow.pop %v1843
    %v1845 = vmul.f32 %v1840, 1.442695
    %v1846 = vpow.pop %v1845
    %v1847 = vadd.f32 %v1842, 1.0
    %v1848 = vadd.f32 %v1844, 1.0
    %v1849 = vadd.f32 %v1846, 1.0
    %v1850 = vrcp.pop %v1847
    %v1851 = vmul.f32 1.0, %v1850
    %v1852 = vrcp.pop %v1848
    %v1853 = vmul.f32 1.0, %v1852
    %v1854 = vrcp.pop %v1849
    %v1855 = vmul.f32 1.0, %v1854
    %v1856 = vtanh.pop %v1837
    %v1857 = vmul.f32 %v1853, %v1548
    %v1858 = vmul.f32 %v1851, %v1856
    %v1859 = vadd.f32 %v1857, %v1858
    %v1860 = vtanh.pop %v1859
    %v1861 = vmul.f32 %v1855, %v1860
    %s1862 = smul.u32 3, 4
    %s1863 = smul.addr %s1862, 8
    %s1864 = scalar_lea.vmem [#allocation2], %s1863
    %v1865 = vld [vmem:[%s1864] sm:$0xff]
    %v1866 = vld [vmem:[%s1864 + $0x8] sm:$0xff]
    %v1867 = vld [vmem:[%s1864 + $0x10] sm:$0xff]
    %v1868 = vld [vmem:[%s1864 + $0x18] sm:$0xff]
    %1869 = vmatprep.subr.bf16.mxu0 %v490
    %1870 = vmatpush1.bf16.msra.mxu0 %v489
    %1871 = vmatprep.subr.bf16.mxu0 %v494
    %1872 = vmatpush1.bf16.msra.mxu0 %v493
    %1873 = vmatprep.subr.bf16.mxu0 %v498
    %1874 = vmatpush1.bf16.msra.mxu0 %v497
    %1875 = vmatprep.subr.bf16.mxu0 %v502
    %1876 = vmatpush1.bf16.msra.mxu0 %v501
    %1877 = vmatprep.subr.bf16.mxu0 %v506
    %1878 = vmatpush1.bf16.msra.mxu0 %v505
    %1879 = vmatprep.subr.bf16.mxu0 %v510
    %1880 = vmatpush1.bf16.msra.mxu0 %v509
    %1881 = vmatprep.subr.bf16.mxu0 %v514
    %1882 = vmatpush1.bf16.msra.mxu0 %v513
    %1883 = vmatprep.subr.bf16.mxu0 %v518
    %1884 = vmatpush1.bf16.msra.mxu0 %v517
    %1885 = vmatprep.subr.bf16.mxu0 0
    %1886 = vmatpush1.bf16.msra.mxu0 0
    %1887 = vmatprep.subr.bf16.mxu0 0
    %1888 = vmatpush1.bf16.msra.mxu0 0
    %1889 = vmatprep.subr.bf16.mxu0 0
    %1890 = vmatpush1.bf16.msra.mxu0 0
    %1891 = vmatprep.subr.bf16.mxu0 0
    %1892 = vmatpush1.bf16.msra.mxu0 0
    %1893 = vmatprep.subr.bf16.mxu0 0
    %1894 = vmatpush1.bf16.msra.mxu0 0
    %1895 = vmatprep.subr.bf16.mxu0 0
    %1896 = vmatpush1.bf16.msra.mxu0 0
    %1897 = vmatprep.subr.bf16.mxu0 0
    %1898 = vmatpush1.bf16.msra.mxu0 0
    %1899 = vmatprep.subr.bf16.mxu0 0
    %1900 = vmatpush1.bf16.msra.mxu0 0
    %1901 = vmatprep.mubr.bf16.mxu0 0
    %1902 = vmatmul.mubr.bf16.gmra.mrb[0].mxu0 %v1668
    %v1903 = vpop.f32.mrb[0].mxu0
    %v1904 = vadd.f32 0.0, %v1903
    %v1905 = vpop.f32.mrb[0].mxu0
    %v1906 = vadd.f32 0.0, %v1905
    %v1907 = vpop.f32.mrb[0].mxu0
    %v1908 = vpop.f32.mrb[0].mxu0
    %1909 = vdwg.mxu0
    %1910 = vmatprep.subr.bf16.mxu0 %v492
    %1911 = vmatpush1.bf16.msra.mxu0 %v491
    %1912 = vmatprep.subr.bf16.mxu0 %v496
    %1913 = vmatpush1.bf16.msra.mxu0 %v495
    %1914 = vmatprep.subr.bf16.mxu0 %v500
    %1915 = vmatpush1.bf16.msra.mxu0 %v499
    %1916 = vmatprep.subr.bf16.mxu0 %v504
    %1917 = vmatpush1.bf16.msra.mxu0 %v503
    %1918 = vmatprep.subr.bf16.mxu0 %v508
    %1919 = vmatpush1.bf16.msra.mxu0 %v507
    %1920 = vmatprep.subr.bf16.mxu0 %v512
    %1921 = vmatpush1.bf16.msra.mxu0 %v511
    %1922 = vmatprep.subr.bf16.mxu0 %v516
    %1923 = vmatpush1.bf16.msra.mxu0 %v515
    %1924 = vmatprep.subr.bf16.mxu0 %v520
    %1925 = vmatpush1.bf16.msra.mxu0 %v519
    %1926 = vmatprep.subr.bf16.mxu0 0
    %1927 = vmatpush1.bf16.msra.mxu0 0
    %1928 = vmatprep.subr.bf16.mxu0 0
    %1929 = vmatpush1.bf16.msra.mxu0 0
    %1930 = vmatprep.subr.bf16.mxu0 0
    %1931 = vmatpush1.bf16.msra.mxu0 0
    %1932 = vmatprep.subr.bf16.mxu0 0
    %1933 = vmatpush1.bf16.msra.mxu0 0
    %1934 = vmatprep.subr.bf16.mxu0 0
    %1935 = vmatpush1.bf16.msra.mxu0 0
    %1936 = vmatprep.subr.bf16.mxu0 0
    %1937 = vmatpush1.bf16.msra.mxu0 0
    %1938 = vmatprep.subr.bf16.mxu0 0
    %1939 = vmatpush1.bf16.msra.mxu0 0
    %1940 = vmatprep.subr.bf16.mxu0 0
    %1941 = vmatpush1.bf16.msra.mxu0 0
    %1942 = vmatprep.mubr.bf16.mxu0 0
    %1943 = vmatmul.mubr.bf16.gmra.mrb[0].mxu0 %v1668
    %v1944 = vpop.f32.mrb[0].mxu0
    %v1945 = vadd.f32 0.0, %v1944
    %v1946 = vpop.f32.mrb[0].mxu0
    %v1947 = vadd.f32 0.0, %v1946
    %v1948 = vpop.f32.mrb[0].mxu0
    %v1949 = vpop.f32.mrb[0].mxu0
    %1950 = vdwg.mxu0
    %v1951 = vadd.f32 %v1865, %v1904
    %v1952 = vadd.f32 %v1866, %v1906
    %v1953 = vadd.f32 %v1867, %v1945
    %v1954 = vadd.f32 %v1868, %v1947
    %v1955 = vxor.u32 %v1951, 2147483648
    %v1956 = vxor.u32 %v1952, 2147483648
    %v1957 = vxor.u32 %v1953, 2147483648
    %v1958 = vmul.f32 %v1955, 1.442695
    %v1959 = vpow.pop %v1958
    %v1960 = vmul.f32 %v1956, 1.442695
    %v1961 = vpow.pop %v1960
    %v1962 = vmul.f32 %v1957, 1.442695
    %v1963 = vpow.pop %v1962
    %v1964 = vadd.f32 %v1959, 1.0
    %v1965 = vadd.f32 %v1961, 1.0
    %v1966 = vadd.f32 %v1963, 1.0
    %v1967 = vrcp.pop %v1964
    %v1968 = vmul.f32 1.0, %v1967
    %v1969 = vrcp.pop %v1965
    %v1970 = vmul.f32 1.0, %v1969
    %v1971 = vrcp.pop %v1966
    %v1972 = vmul.f32 1.0, %v1971
    %v1973 = vtanh.pop %v1954
    %v1974 = vmul.f32 %v1970, %v1665
    %v1975 = vmul.f32 %v1968, %v1973
    %v1976 = vadd.f32 %v1974, %v1975
    %v1977 = vtanh.pop %v1976
    %v1978 = vmul.f32 %v1972, %v1977
    %v1979 = vpack.c.bf16 %v1978, %v1978
    %v1980 = vpack.c.bf16 %v1861, %v1861
    %1981 = vmatprep.subr.bf16.mxu0 %v825
    %1982 = vmatpush1.bf16.msra.mxu0 %v824
    %1983 = vmatprep.subr.bf16.mxu0 %v829
    %1984 = vmatpush1.bf16.msra.mxu0 %v828
    %1985 = vmatprep.subr.bf16.mxu0 %v833
    %1986 = vmatpush1.bf16.msra.mxu0 %v832
    %1987 = vmatprep.subr.bf16.mxu0 %v837
    %1988 = vmatpush1.bf16.msra.mxu0 %v836
    %1989 = vmatprep.subr.bf16.mxu0 %v841
    %1990 = vmatpush1.bf16.msra.mxu0 %v840
    %1991 = vmatprep.subr.bf16.mxu0 %v845
    %1992 = vmatpush1.bf16.msra.mxu0 %v844
    %1993 = vmatprep.subr.bf16.mxu0 %v849
    %1994 = vmatpush1.bf16.msra.mxu0 %v848
    %1995 = vmatprep.subr.bf16.mxu0 %v853
    %1996 = vmatpush1.bf16.msra.mxu0 %v852
    %1997 = vmatprep.subr.bf16.mxu0 0
    %1998 = vmatpush1.bf16.msra.mxu0 0
    %1999 = vmatprep.subr.bf16.mxu0 0
    %2000 = vmatpush1.bf16.msra.mxu0 0
    %2001 = vmatprep.subr.bf16.mxu0 0
    %2002 = vmatpush1.bf16.msra.mxu0 0
    %2003 = vmatprep.subr.bf16.mxu0 0
    %2004 = vmatpush1.bf16.msra.mxu0 0
    %2005 = vmatprep.subr.bf16.mxu0 0
    %2006 = vmatpush1.bf16.msra.mxu0 0
    %2007 = vmatprep.subr.bf16.mxu0 0
    %2008 = vmatpush1.bf16.msra.mxu0 0
    %2009 = vmatprep.subr.bf16.mxu0 0
    %2010 = vmatpush1.bf16.msra.mxu0 0
    %2011 = vmatprep.subr.bf16.mxu0 0
    %2012 = vmatpush1.bf16.msra.mxu0 0
    %2013 = vmatprep.mubr.bf16.mxu0 0
    %2014 = vmatmul.mubr.bf16.gmra.mrb[0].mxu0 %v1980
    %v2015 = vpop.f32.mrb[0].mxu0
    %v2016 = vadd.f32 0.0, %v2015
    %v2017 = vpop.f32.mrb[0].mxu0
    %v2018 = vadd.f32 0.0, %v2017
    %v2019 = vpop.f32.mrb[0].mxu0
    %v2020 = vpop.f32.mrb[0].mxu0
    %2021 = vdwg.mxu0
    %2022 = vmatprep.subr.bf16.mxu0 %v827
    %2023 = vmatpush1.bf16.msra.mxu0 %v826
    %2024 = vmatprep.subr.bf16.mxu0 %v831
    %2025 = vmatpush1.bf16.msra.mxu0 %v830
    %2026 = vmatprep.subr.bf16.mxu0 %v835
    %2027 = vmatpush1.bf16.msra.mxu0 %v834
    %2028 = vmatprep.subr.bf16.mxu0 %v839
    %2029 = vmatpush1.bf16.msra.mxu0 %v838
    %2030 = vmatprep.subr.bf16.mxu0 %v843
    %2031 = vmatpush1.bf16.msra.mxu0 %v842
    %2032 = vmatprep.subr.bf16.mxu0 %v847
    %2033 = vmatpush1.bf16.msra.mxu0 %v846
    %2034 = vmatprep.subr.bf16.mxu0 %v851
    %2035 = vmatpush1.bf16.msra.mxu0 %v850
    %2036 = vmatprep.subr.bf16.mxu0 %v855
    %2037 = vmatpush1.bf16.msra.mxu0 %v854
    %2038 = vmatprep.subr.bf16.mxu0 0
    %2039 = vmatpush1.bf16.msra.mxu0 0
    %2040 = vmatprep.subr.bf16.mxu0 0
    %2041 = vmatpush1.bf16.msra.mxu0 0
    %2042 = vmatprep.subr.bf16.mxu0 0
    %2043 = vmatpush1.bf16.msra.mxu0 0
    %2044 = vmatprep.subr.bf16.mxu0 0
    %2045 = vmatpush1.bf16.msra.mxu0 0
    %2046 = vmatprep.subr.bf16.mxu0 0
    %2047 = vmatpush1.bf16.msra.mxu0 0
    %2048 = vmatprep.subr.bf16.mxu0 0
    %2049 = vmatpush1.bf16.msra.mxu0 0
    %2050 = vmatprep.subr.bf16.mxu0 0
    %2051 = vmatpush1.bf16.msra.mxu0 0
    %2052 = vmatprep.subr.bf16.mxu0 0
    %2053 = vmatpush1.bf16.msra.mxu0 0
    %2054 = vmatprep.mubr.bf16.mxu0 0
    %2055 = vmatmul.mubr.bf16.gmra.mrb[0].mxu0 %v1980
    %v2056 = vpop.f32.mrb[0].mxu0
    %v2057 = vadd.f32 0.0, %v2056
    %v2058 = vpop.f32.mrb[0].mxu0
    %v2059 = vadd.f32 0.0, %v2058
    %v2060 = vpop.f32.mrb[0].mxu0
    %v2061 = vpop.f32.mrb[0].mxu0
    %2062 = vdwg.mxu0
    %2063 = vmatprep.subr.bf16.mxu0 %v1067
    %2064 = vmatpush1.bf16.msra.mxu0 %v1066
    %2065 = vmatprep.subr.bf16.mxu0 %v1071
    %2066 = vmatpush1.bf16.msra.mxu0 %v1070
    %2067 = vmatprep.subr.bf16.mxu0 %v1075
    %2068 = vmatpush1.bf16.msra.mxu0 %v1074
    %2069 = vmatprep.subr.bf16.mxu0 %v1079
    %2070 = vmatpush1.bf16.msra.mxu0 %v1078
    %2071 = vmatprep.subr.bf16.mxu0 %v1083
    %2072 = vmatpush1.bf16.msra.mxu0 %v1082
    %2073 = vmatprep.subr.bf16.mxu0 %v1087
    %2074 = vmatpush1.bf16.msra.mxu0 %v1086
    %2075 = vmatprep.subr.bf16.mxu0 %v1091
    %2076 = vmatpush1.bf16.msra.mxu0 %v1090
    %2077 = vmatprep.subr.bf16.mxu0 %v1095
    %2078 = vmatpush1.bf16.msra.mxu0 %v1094
    %2079 = vmatprep.subr.bf16.mxu0 0
    %2080 = vmatpush1.bf16.msra.mxu0 0
    %2081 = vmatprep.subr.bf16.mxu0 0
    %2082 = vmatpush1.bf16.msra.mxu0 0
    %2083 = vmatprep.subr.bf16.mxu0 0
    %2084 = vmatpush1.bf16.msra.mxu0 0
    %2085 = vmatprep.subr.bf16.mxu0 0
    %2086 = vmatpush1.bf16.msra.mxu0 0
    %2087 = vmatprep.subr.bf16.mxu0 0
    %2088 = vmatpush1.bf16.msra.mxu0 0
    %2089 = vmatprep.subr.bf16.mxu0 0
    %2090 = vmatpush1.bf16.msra.mxu0 0
    %2091 = vmatprep.subr.bf16.mxu0 0
    %2092 = vmatpush1.bf16.msra.mxu0 0
    %2093 = vmatprep.subr.bf16.mxu0 0
    %2094 = vmatpush1.bf16.msra.mxu0 0
    %2095 = vmatprep.mubr.bf16.mxu0 0
    %2096 = vmatmul.mubr.bf16.gmra.mrb[0].mxu0 %v1979
    %v2097 = vpop.f32.mrb[0].mxu0
    %v2098 = vadd.f32 %v2016, %v2097
    %v2099 = vpop.f32.mrb[0].mxu0
    %v2100 = vadd.f32 %v2018, %v2099
    %v2101 = vpop.f32.mrb[0].mxu0
    %v2102 = vpop.f32.mrb[0].mxu0
    %2103 = vdwg.mxu0
    %2104 = vmatprep.subr.bf16.mxu0 %v1069
    %2105 = vmatpush1.bf16.msra.mxu0 %v1068
    %2106 = vmatprep.subr.bf16.mxu0 %v1073
    %2107 = vmatpush1.bf16.msra.mxu0 %v1072
    %2108 = vmatprep.subr.bf16.mxu0 %v1077
    %2109 = vmatpush1.bf16.msra.mxu0 %v1076
    %2110 = vmatprep.subr.bf16.mxu0 %v1081
    %2111 = vmatpush1.bf16.msra.mxu0 %v1080
    %2112 = vmatprep.subr.bf16.mxu0 %v1085
    %2113 = vmatpush1.bf16.msra.mxu0 %v1084
    %2114 = vmatprep.subr.bf16.mxu0 %v1089
    %2115 = vmatpush1.bf16.msra.mxu0 %v1088
    %2116 = vmatprep.subr.bf16.mxu0 %v1093
    %2117 = vmatpush1.bf16.msra.mxu0 %v1092
    %2118 = vmatprep.subr.bf16.mxu0 %v1097
    %2119 = vmatpush1.bf16.msra.mxu0 %v1096
    %2120 = vmatprep.subr.bf16.mxu0 0
    %2121 = vmatpush1.bf16.msra.mxu0 0
    %2122 = vmatprep.subr.bf16.mxu0 0
    %2123 = vmatpush1.bf16.msra.mxu0 0
    %2124 = vmatprep.subr.bf16.mxu0 0
    %2125 = vmatpush1.bf16.msra.mxu0 0
    %2126 = vmatprep.subr.bf16.mxu0 0
    %2127 = vmatpush1.bf16.msra.mxu0 0
    %2128 = vmatprep.subr.bf16.mxu0 0
    %2129 = vmatpush1.bf16.msra.mxu0 0
    %2130 = vmatprep.subr.bf16.mxu0 0
    %2131 = vmatpush1.bf16.msra.mxu0 0
    %2132 = vmatprep.subr.bf16.mxu0 0
    %2133 = vmatpush1.bf16.msra.mxu0 0
    %2134 = vmatprep.subr.bf16.mxu0 0
    %2135 = vmatpush1.bf16.msra.mxu0 0
    %2136 = vmatprep.mubr.bf16.mxu0 0
    %2137 = vmatmul.mubr.bf16.gmra.mrb[0].mxu0 %v1979
    %v2138 = vpop.f32.mrb[0].mxu0
    %v2139 = vadd.f32 %v2057, %v2138
    %v2140 = vpop.f32.mrb[0].mxu0
    %v2141 = vadd.f32 %v2059, %v2140
    %v2142 = vpop.f32.mrb[0].mxu0
    %v2143 = vpop.f32.mrb[0].mxu0
    %2144 = vdwg.mxu0
    %v2145 = vadd.f32 %v2098, %v337
    %v2146 = vadd.f32 %v2100, %v341
    %v2147 = vadd.f32 %v2139, %v345
    %v2148 = vadd.f32 %v2141, %v349
    %v2149 = vxor.u32 %v2145, 2147483648
    %v2150 = vxor.u32 %v2146, 2147483648
    %v2151 = vxor.u32 %v2147, 2147483648
    %v2152 = vmul.f32 %v2149, 1.442695
    %v2153 = vpow.pop %v2152
    %v2154 = vmul.f32 %v2150, 1.442695
    %v2155 = vpow.pop %v2154
    %v2156 = vmul.f32 %v2151, 1.442695
    %v2157 = vpow.pop %v2156
    %v2158 = vadd.f32 %v2153, 1.0
    %v2159 = vadd.f32 %v2155, 1.0
    %v2160 = vadd.f32 %v2157, 1.0
    %v2161 = vrcp.pop %v2158
    %v2162 = vmul.f32 1.0, %v2161
    %v2163 = vrcp.pop %v2159
    %v2164 = vmul.f32 1.0, %v2163
    %v2165 = vrcp.pop %v2160
    %v2166 = vmul.f32 1.0, %v2165
    %v2167 = vtanh.pop %v2148
    %v2168 = vmul.f32 %v2164, %v1859
    %v2169 = vmul.f32 %v2162, %v2167
    %v2170 = vadd.f32 %v2168, %v2169
    %v2171 = vtanh.pop %v2170
    %v2172 = vmul.f32 %v2166, %v2171
    %s2173 = smul.u32 4, 4
    %s2174 = smul.addr %s2173, 8
    %s2175 = scalar_lea.vmem [#allocation2], %s2174
    %v2176 = vld [vmem:[%s2175] sm:$0xff]
    %v2177 = vld [vmem:[%s2175 + $0x8] sm:$0xff]
    %v2178 = vld [vmem:[%s2175 + $0x10] sm:$0xff]
    %v2179 = vld [vmem:[%s2175 + $0x18] sm:$0xff]
    %2180 = vmatprep.subr.bf16.mxu0 %v490
    %2181 = vmatpush1.bf16.msra.mxu0 %v489
    %2182 = vmatprep.subr.bf16.mxu0 %v494
    %2183 = vmatpush1.bf16.msra.mxu0 %v493
    %2184 = vmatprep.subr.bf16.mxu0 %v498
    %2185 = vmatpush1.bf16.msra.mxu0 %v497
    %2186 = vmatprep.subr.bf16.mxu0 %v502
    %2187 = vmatpush1.bf16.msra.mxu0 %v501
    %2188 = vmatprep.subr.bf16.mxu0 %v506
    %2189 = vmatpush1.bf16.msra.mxu0 %v505
    %2190 = vmatprep.subr.bf16.mxu0 %v510
    %2191 = vmatpush1.bf16.msra.mxu0 %v509
    %2192 = vmatprep.subr.bf16.mxu0 %v514
    %2193 = vmatpush1.bf16.msra.mxu0 %v513
    %2194 = vmatprep.subr.bf16.mxu0 %v518
    %2195 = vmatpush1.bf16.msra.mxu0 %v517
    %2196 = vmatprep.subr.bf16.mxu0 0
    %2197 = vmatpush1.bf16.msra.mxu0 0
    %2198 = vmatprep.subr.bf16.mxu0 0
    %2199 = vmatpush1.bf16.msra.mxu0 0
    %2200 = vmatprep.subr.bf16.mxu0 0
    %2201 = vmatpush1.bf16.msra.mxu0 0
    %2202 = vmatprep.subr.bf16.mxu0 0
    %2203 = vmatpush1.bf16.msra.mxu0 0
    %2204 = vmatprep.subr.bf16.mxu0 0
    %2205 = vmatpush1.bf16.msra.mxu0 0
    %2206 = vmatprep.subr.bf16.mxu0 0
    %2207 = vmatpush1.bf16.msra.mxu0 0
    %2208 = vmatprep.subr.bf16.mxu0 0
    %2209 = vmatpush1.bf16.msra.mxu0 0
    %2210 = vmatprep.subr.bf16.mxu0 0
    %2211 = vmatpush1.bf16.msra.mxu0 0
    %2212 = vmatprep.mubr.bf16.mxu0 0
    %2213 = vmatmul.mubr.bf16.gmra.mrb[0].mxu0 %v1979
    %v2214 = vpop.f32.mrb[0].mxu0
    %v2215 = vadd.f32 0.0, %v2214
    %v2216 = vpop.f32.mrb[0].mxu0
    %v2217 = vadd.f32 0.0, %v2216
    %v2218 = vpop.f32.mrb[0].mxu0
    %v2219 = vpop.f32.mrb[0].mxu0
    %2220 = vdwg.mxu0
    %2221 = vmatprep.subr.bf16.mxu0 %v492
    %2222 = vmatpush1.bf16.msra.mxu0 %v491
    %2223 = vmatprep.subr.bf16.mxu0 %v496
    %2224 = vmatpush1.bf16.msra.mxu0 %v495
    %2225 = vmatprep.subr.bf16.mxu0 %v500
    %2226 = vmatpush1.bf16.msra.mxu0 %v499
    %2227 = vmatprep.subr.bf16.mxu0 %v504
    %2228 = vmatpush1.bf16.msra.mxu0 %v503
    %2229 = vmatprep.subr.bf16.mxu0 %v508
    %2230 = vmatpush1.bf16.msra.mxu0 %v507
    %2231 = vmatprep.subr.bf16.mxu0 %v512
    %2232 = vmatpush1.bf16.msra.mxu0 %v511
    %2233 = vmatprep.subr.bf16.mxu0 %v516
    %2234 = vmatpush1.bf16.msra.mxu0 %v515
    %2235 = vmatprep.subr.bf16.mxu0 %v520
    %2236 = vmatpush1.bf16.msra.mxu0 %v519
    %2237 = vmatprep.subr.bf16.mxu0 0
    %2238 = vmatpush1.bf16.msra.mxu0 0
    %2239 = vmatprep.subr.bf16.mxu0 0
    %2240 = vmatpush1.bf16.msra.mxu0 0
    %2241 = vmatprep.subr.bf16.mxu0 0
    %2242 = vmatpush1.bf16.msra.mxu0 0
    %2243 = vmatprep.subr.bf16.mxu0 0
    %2244 = vmatpush1.bf16.msra.mxu0 0
    %2245 = vmatprep.subr.bf16.mxu0 0
    %2246 = vmatpush1.bf16.msra.mxu0 0
    %2247 = vmatprep.subr.bf16.mxu0 0
    %2248 = vmatpush1.bf16.msra.mxu0 0
    %2249 = vmatprep.subr.bf16.mxu0 0
    %2250 = vmatpush1.bf16.msra.mxu0 0
    %2251 = vmatprep.subr.bf16.mxu0 0
    %2252 = vmatpush1.bf16.msra.mxu0 0
    %2253 = vmatprep.mubr.bf16.mxu0 0
    %2254 = vmatmul.mubr.bf16.gmra.mrb[0].mxu0 %v1979
    %v2255 = vpop.f32.mrb[0].mxu0
    %v2256 = vadd.f32 0.0, %v2255
    %v2257 = vpop.f32.mrb[0].mxu0
    %v2258 = vadd.f32 0.0, %v2257
    %v2259 = vpop.f32.mrb[0].mxu0
    %v2260 = vpop.f32.mrb[0].mxu0
    %2261 = vdwg.mxu0
    %v2262 = vadd.f32 %v2176, %v2215
    %v2263 = vadd.f32 %v2177, %v2217
    %v2264 = vadd.f32 %v2178, %v2256
    %v2265 = vadd.f32 %v2179, %v2258
    %v2266 = vxor.u32 %v2262, 2147483648
    %v2267 = vxor.u32 %v2263, 2147483648
    %v2268 = vxor.u32 %v2264, 2147483648
    %v2269 = vmul.f32 %v2266, 1.442695
    %v2270 = vpow.pop %v2269
    %v2271 = vmul.f32 %v2267, 1.442695
    %v2272 = vpow.pop %v2271
    %v2273 = vmul.f32 %v2268, 1.442695
    %v2274 = vpow.pop %v2273
    %v2275 = vadd.f32 %v2270, 1.0
    %v2276 = vadd.f32 %v2272, 1.0
    %v2277 = vadd.f32 %v2274, 1.0
    %v2278 = vrcp.pop %v2275
    %v2279 = vmul.f32 1.0, %v2278
    %v2280 = vrcp.pop %v2276
    %v2281 = vmul.f32 1.0, %v2280
    %v2282 = vrcp.pop %v2277
    %v2283 = vmul.f32 1.0, %v2282
    %v2284 = vtanh.pop %v2265
    %v2285 = vmul.f32 %v2281, %v1976
    %v2286 = vmul.f32 %v2279, %v2284
    %v2287 = vadd.f32 %v2285, %v2286
    %v2288 = vtanh.pop %v2287
    %v2289 = vmul.f32 %v2283, %v2288
    %v2290 = vpack.c.bf16 %v2289, %v2289
    %v2291 = vpack.c.bf16 %v2172, %v2172
    %2292 = vmatprep.subr.bf16.mxu0 %v825
    %2293 = vmatpush1.bf16.msra.mxu0 %v824
    %2294 = vmatprep.subr.bf16.mxu0 %v829
    %2295 = vmatpush1.bf16.msra.mxu0 %v828
    %2296 = vmatprep.subr.bf16.mxu0 %v833
    %2297 = vmatpush1.bf16.msra.mxu0 %v832
    %2298 = vmatprep.subr.bf16.mxu0 %v837
    %2299 = vmatpush1.bf16.msra.mxu0 %v836
    %2300 = vmatprep.subr.bf16.mxu0 %v841
    %2301 = vmatpush1.bf16.msra.mxu0 %v840
    %2302 = vmatprep.subr.bf16.mxu0 %v845
    %2303 = vmatpush1.bf16.msra.mxu0 %v844
    %2304 = vmatprep.subr.bf16.mxu0 %v849
    %2305 = vmatpush1.bf16.msra.mxu0 %v848
    %2306 = vmatprep.subr.bf16.mxu0 %v853
    %2307 = vmatpush1.bf16.msra.mxu0 %v852
    %2308 = vmatprep.subr.bf16.mxu0 0
    %2309 = vmatpush1.bf16.msra.mxu0 0
    %2310 = vmatprep.subr.bf16.mxu0 0
    %2311 = vmatpush1.bf16.msra.mxu0 0
    %2312 = vmatprep.subr.bf16.mxu0 0
    %2313 = vmatpush1.bf16.msra.mxu0 0
    %2314 = vmatprep.subr.bf16.mxu0 0
    %2315 = vmatpush1.bf16.msra.mxu0 0
    %2316 = vmatprep.subr.bf16.mxu0 0
    %2317 = vmatpush1.bf16.msra.mxu0 0
    %2318 = vmatprep.subr.bf16.mxu0 0
    %2319 = vmatpush1.bf16.msra.mxu0 0
    %2320 = vmatprep.subr.bf16.mxu0 0
    %2321 = vmatpush1.bf16.msra.mxu0 0
    %2322 = vmatprep.subr.bf16.mxu0 0
    %2323 = vmatpush1.bf16.msra.mxu0 0
    %2324 = vmatprep.mubr.bf16.mxu0 0
    %2325 = vmatmul.mubr.bf16.gmra.mrb[0].mxu0 %v2291
    %v2326 = vpop.f32.mrb[0].mxu0
    %v2327 = vadd.f32 0.0, %v2326
    %v2328 = vpop.f32.mrb[0].mxu0
    %v2329 = vadd.f32 0.0, %v2328
    %v2330 = vpop.f32.mrb[0].mxu0
    %v2331 = vpop.f32.mrb[0].mxu0
    %2332 = vdwg.mxu0
    %2333 = vmatprep.subr.bf16.mxu0 %v827
    %2334 = vmatpush1.bf16.msra.mxu0 %v826
    %2335 = vmatprep.subr.bf16.mxu0 %v831
    %2336 = vmatpush1.bf16.msra.mxu0 %v830
    %2337 = vmatprep.subr.bf16.mxu0 %v835
    %2338 = vmatpush1.bf16.msra.mxu0 %v834
    %2339 = vmatprep.subr.bf16.mxu0 %v839
    %2340 = vmatpush1.bf16.msra.mxu0 %v838
    %2341 = vmatprep.subr.bf16.mxu0 %v843
    %2342 = vmatpush1.bf16.msra.mxu0 %v842
    %2343 = vmatprep.subr.bf16.mxu0 %v847
    %2344 = vmatpush1.bf16.msra.mxu0 %v846
    %2345 = vmatprep.subr.bf16.mxu0 %v851
    %2346 = vmatpush1.bf16.msra.mxu0 %v850
    %2347 = vmatprep.subr.bf16.mxu0 %v855
    %2348 = vmatpush1.bf16.msra.mxu0 %v854
    %2349 = vmatprep.subr.bf16.mxu0 0
    %2350 = vmatpush1.bf16.msra.mxu0 0
    %2351 = vmatprep.subr.bf16.mxu0 0
    %2352 = vmatpush1.bf16.msra.mxu0 0
    %2353 = vmatprep.subr.bf16.mxu0 0
    %2354 = vmatpush1.bf16.msra.mxu0 0
    %2355 = vmatprep.subr.bf16.mxu0 0
    %2356 = vmatpush1.bf16.msra.mxu0 0
    %2357 = vmatprep.subr.bf16.mxu0 0
    %2358 = vmatpush1.bf16.msra.mxu0 0
    %2359 = vmatprep.subr.bf16.mxu0 0
    %2360 = vmatpush1.bf16.msra.mxu0 0
    %2361 = vmatprep.subr.bf16.mxu0 0
    %2362 = vmatpush1.bf16.msra.mxu0 0
    %2363 = vmatprep.subr.bf16.mxu0 0
    %2364 = vmatpush1.bf16.msra.mxu0 0
    %2365 = vmatprep.mubr.bf16.mxu0 0
    %2366 = vmatmul.mubr.bf16.gmra.mrb[0].mxu0 %v2291
    %v2367 = vpop.f32.mrb[0].mxu0
    %v2368 = vadd.f32 0.0, %v2367
    %v2369 = vpop.f32.mrb[0].mxu0
    %v2370 = vadd.f32 0.0, %v2369
    %v2371 = vpop.f32.mrb[0].mxu0
    %v2372 = vpop.f32.mrb[0].mxu0
    %2373 = vdwg.mxu0
    %2374 = vmatprep.subr.bf16.mxu0 %v1067
    %2375 = vmatpush1.bf16.msra.mxu0 %v1066
    %2376 = vmatprep.subr.bf16.mxu0 %v1071
    %2377 = vmatpush1.bf16.msra.mxu0 %v1070
    %2378 = vmatprep.subr.bf16.mxu0 %v1075
    %2379 = vmatpush1.bf16.msra.mxu0 %v1074
    %2380 = vmatprep.subr.bf16.mxu0 %v1079
    %2381 = vmatpush1.bf16.msra.mxu0 %v1078
    %2382 = vmatprep.subr.bf16.mxu0 %v1083
    %2383 = vmatpush1.bf16.msra.mxu0 %v1082
    %2384 = vmatprep.subr.bf16.mxu0 %v1087
    %2385 = vmatpush1.bf16.msra.mxu0 %v1086
    %2386 = vmatprep.subr.bf16.mxu0 %v1091
    %2387 = vmatpush1.bf16.msra.mxu0 %v1090
    %2388 = vmatprep.subr.bf16.mxu0 %v1095
    %2389 = vmatpush1.bf16.msra.mxu0 %v1094
    %2390 = vmatprep.subr.bf16.mxu0 0
    %2391 = vmatpush1.bf16.msra.mxu0 0
    %2392 = vmatprep.subr.bf16.mxu0 0
    %2393 = vmatpush1.bf16.msra.mxu0 0
    %2394 = vmatprep.subr.bf16.mxu0 0
    %2395 = vmatpush1.bf16.msra.mxu0 0
    %2396 = vmatprep.subr.bf16.mxu0 0
    %2397 = vmatpush1.bf16.msra.mxu0 0
    %2398 = vmatprep.subr.bf16.mxu0 0
    %2399 = vmatpush1.bf16.msra.mxu0 0
    %2400 = vmatprep.subr.bf16.mxu0 0
    %2401 = vmatpush1.bf16.msra.mxu0 0
    %2402 = vmatprep.subr.bf16.mxu0 0
    %2403 = vmatpush1.bf16.msra.mxu0 0
    %2404 = vmatprep.subr.bf16.mxu0 0
    %2405 = vmatpush1.bf16.msra.mxu0 0
    %2406 = vmatprep.mubr.bf16.mxu0 0
    %2407 = vmatmul.mubr.bf16.gmra.mrb[0].mxu0 %v2290
    %v2408 = vpop.f32.mrb[0].mxu0
    %v2409 = vadd.f32 %v2327, %v2408
    %v2410 = vpop.f32.mrb[0].mxu0
    %v2411 = vadd.f32 %v2329, %v2410
    %v2412 = vpop.f32.mrb[0].mxu0
    %v2413 = vpop.f32.mrb[0].mxu0
    %2414 = vdwg.mxu0
    %2415 = vmatprep.subr.bf16.mxu0 %v1069
    %2416 = vmatpush1.bf16.msra.mxu0 %v1068
    %2417 = vmatprep.subr.bf16.mxu0 %v1073
    %2418 = vmatpush1.bf16.msra.mxu0 %v1072
    %2419 = vmatprep.subr.bf16.mxu0 %v1077
    %2420 = vmatpush1.bf16.msra.mxu0 %v1076
    %2421 = vmatprep.subr.bf16.mxu0 %v1081
    %2422 = vmatpush1.bf16.msra.mxu0 %v1080
    %2423 = vmatprep.subr.bf16.mxu0 %v1085
    %2424 = vmatpush1.bf16.msra.mxu0 %v1084
    %2425 = vmatprep.subr.bf16.mxu0 %v1089
    %2426 = vmatpush1.bf16.msra.mxu0 %v1088
    %2427 = vmatprep.subr.bf16.mxu0 %v1093
    %2428 = vmatpush1.bf16.msra.mxu0 %v1092
    %2429 = vmatprep.subr.bf16.mxu0 %v1097
    %2430 = vmatpush1.bf16.msra.mxu0 %v1096
    %2431 = vmatprep.subr.bf16.mxu0 0
    %2432 = vmatpush1.bf16.msra.mxu0 0
    %2433 = vmatprep.subr.bf16.mxu0 0
    %2434 = vmatpush1.bf16.msra.mxu0 0
    %2435 = vmatprep.subr.bf16.mxu0 0
    %2436 = vmatpush1.bf16.msra.mxu0 0
    %2437 = vmatprep.subr.bf16.mxu0 0
    %2438 = vmatpush1.bf16.msra.mxu0 0
    %2439 = vmatprep.subr.bf16.mxu0 0
    %2440 = vmatpush1.bf16.msra.mxu0 0
    %2441 = vmatprep.subr.bf16.mxu0 0
    %2442 = vmatpush1.bf16.msra.mxu0 0
    %2443 = vmatprep.subr.bf16.mxu0 0
    %2444 = vmatpush1.bf16.msra.mxu0 0
    %2445 = vmatprep.subr.bf16.mxu0 0
    %2446 = vmatpush1.bf16.msra.mxu0 0
    %2447 = vmatprep.mubr.bf16.mxu0 0
    %2448 = vmatmul.mubr.bf16.gmra.mrb[0].mxu0 %v2290
    %v2449 = vpop.f32.mrb[0].mxu0
    %v2450 = vadd.f32 %v2368, %v2449
    %v2451 = vpop.f32.mrb[0].mxu0
    %v2452 = vadd.f32 %v2370, %v2451
    %v2453 = vpop.f32.mrb[0].mxu0
    %v2454 = vpop.f32.mrb[0].mxu0
    %2455 = vdwg.mxu0
    %v2456 = vadd.f32 %v2409, %v337
    %v2457 = vadd.f32 %v2411, %v341
    %v2458 = vadd.f32 %v2450, %v345
    %v2459 = vadd.f32 %v2452, %v349
    %v2460 = vxor.u32 %v2456, 2147483648
    %v2461 = vxor.u32 %v2457, 2147483648
    %v2462 = vxor.u32 %v2458, 2147483648
    %v2463 = vmul.f32 %v2460, 1.442695
    %v2464 = vpow.pop %v2463
    %v2465 = vmul.f32 %v2461, 1.442695
    %v2466 = vpow.pop %v2465
    %v2467 = vmul.f32 %v2462, 1.442695
    %v2468 = vpow.pop %v2467
    %v2469 = vadd.f32 %v2464, 1.0
    %v2470 = vadd.f32 %v2466, 1.0
    %v2471 = vadd.f32 %v2468, 1.0
    %v2472 = vrcp.pop %v2469
    %v2473 = vmul.f32 1.0, %v2472
    %v2474 = vrcp.pop %v2470
    %v2475 = vmul.f32 1.0, %v2474
    %v2476 = vrcp.pop %v2471
    %v2477 = vmul.f32 1.0, %v2476
    %v2478 = vtanh.pop %v2459
    %v2479 = vmul.f32 %v2475, %v2170
    %v2480 = vmul.f32 %v2473, %v2478
    %v2481 = vadd.f32 %v2479, %v2480
    %v2482 = vtanh.pop %v2481
    %v2483 = vmul.f32 %v2477, %v2482
    %s2484 = smul.u32 5, 4
    %s2485 = smul.addr %s2484, 8
    %s2486 = scalar_lea.vmem [#allocation2], %s2485
    %v2487 = vld [vmem:[%s2486] sm:$0xff]
    %v2488 = vld [vmem:[%s2486 + $0x8] sm:$0xff]
    %v2489 = vld [vmem:[%s2486 + $0x10] sm:$0xff]
    %v2490 = vld [vmem:[%s2486 + $0x18] sm:$0xff]
    %2491 = vmatprep.subr.bf16.mxu0 %v490
    %2492 = vmatpush1.bf16.msra.mxu0 %v489
    %2493 = vmatprep.subr.bf16.mxu0 %v494
    %2494 = vmatpush1.bf16.msra.mxu0 %v493
    %2495 = vmatprep.subr.bf16.mxu0 %v498
    %2496 = vmatpush1.bf16.msra.mxu0 %v497
    %2497 = vmatprep.subr.bf16.mxu0 %v502
    %2498 = vmatpush1.bf16.msra.mxu0 %v501
    %2499 = vmatprep.subr.bf16.mxu0 %v506
    %2500 = vmatpush1.bf16.msra.mxu0 %v505
    %2501 = vmatprep.subr.bf16.mxu0 %v510
    %2502 = vmatpush1.bf16.msra.mxu0 %v509
    %2503 = vmatprep.subr.bf16.mxu0 %v514
    %2504 = vmatpush1.bf16.msra.mxu0 %v513
    %2505 = vmatprep.subr.bf16.mxu0 %v518
    %2506 = vmatpush1.bf16.msra.mxu0 %v517
    %2507 = vmatprep.subr.bf16.mxu0 0
    %2508 = vmatpush1.bf16.msra.mxu0 0
    %2509 = vmatprep.subr.bf16.mxu0 0
    %2510 = vmatpush1.bf16.msra.mxu0 0
    %2511 = vmatprep.subr.bf16.mxu0 0
    %2512 = vmatpush1.bf16.msra.mxu0 0
    %2513 = vmatprep.subr.bf16.mxu0 0
    %2514 = vmatpush1.bf16.msra.mxu0 0
    %2515 = vmatprep.subr.bf16.mxu0 0
    %2516 = vmatpush1.bf16.msra.mxu0 0
    %2517 = vmatprep.subr.bf16.mxu0 0
    %2518 = vmatpush1.bf16.msra.mxu0 0
    %2519 = vmatprep.subr.bf16.mxu0 0
    %2520 = vmatpush1.bf16.msra.mxu0 0
    %2521 = vmatprep.subr.bf16.mxu0 0
    %2522 = vmatpush1.bf16.msra.mxu0 0
    %2523 = vmatprep.mubr.bf16.mxu0 0
    %2524 = vmatmul.mubr.bf16.gmra.mrb[0].mxu0 %v2290
    %v2525 = vpop.f32.mrb[0].mxu0
    %v2526 = vadd.f32 0.0, %v2525
    %v2527 = vpop.f32.mrb[0].mxu0
    %v2528 = vadd.f32 0.0, %v2527
    %v2529 = vpop.f32.mrb[0].mxu0
    %v2530 = vpop.f32.mrb[0].mxu0
    %2531 = vdwg.mxu0
    %2532 = vmatprep.subr.bf16.mxu0 %v492
    %2533 = vmatpush1.bf16.msra.mxu0 %v491
    %2534 = vmatprep.subr.bf16.mxu0 %v496
    %2535 = vmatpush1.bf16.msra.mxu0 %v495
    %2536 = vmatprep.subr.bf16.mxu0 %v500
    %2537 = vmatpush1.bf16.msra.mxu0 %v499
    %2538 = vmatprep.subr.bf16.mxu0 %v504
    %2539 = vmatpush1.bf16.msra.mxu0 %v503
    %2540 = vmatprep.subr.bf16.mxu0 %v508
    %2541 = vmatpush1.bf16.msra.mxu0 %v507
    %2542 = vmatprep.subr.bf16.mxu0 %v512
    %2543 = vmatpush1.bf16.msra.mxu0 %v511
    %2544 = vmatprep.subr.bf16.mxu0 %v516
    %2545 = vmatpush1.bf16.msra.mxu0 %v515
    %2546 = vmatprep.subr.bf16.mxu0 %v520
    %2547 = vmatpush1.bf16.msra.mxu0 %v519
    %2548 = vmatprep.subr.bf16.mxu0 0
    %2549 = vmatpush1.bf16.msra.mxu0 0
    %2550 = vmatprep.subr.bf16.mxu0 0
    %2551 = vmatpush1.bf16.msra.mxu0 0
    %2552 = vmatprep.subr.bf16.mxu0 0
    %2553 = vmatpush1.bf16.msra.mxu0 0
    %2554 = vmatprep.subr.bf16.mxu0 0
    %2555 = vmatpush1.bf16.msra.mxu0 0
    %2556 = vmatprep.subr.bf16.mxu0 0
    %2557 = vmatpush1.bf16.msra.mxu0 0
    %2558 = vmatprep.subr.bf16.mxu0 0
    %2559 = vmatpush1.bf16.msra.mxu0 0
    %2560 = vmatprep.subr.bf16.mxu0 0
    %2561 = vmatpush1.bf16.msra.mxu0 0
    %2562 = vmatprep.subr.bf16.mxu0 0
    %2563 = vmatpush1.bf16.msra.mxu0 0
    %2564 = vmatprep.mubr.bf16.mxu0 0
    %2565 = vmatmul.mubr.bf16.gmra.mrb[0].mxu0 %v2290
    %v2566 = vpop.f32.mrb[0].mxu0
    %v2567 = vadd.f32 0.0, %v2566
    %v2568 = vpop.f32.mrb[0].mxu0
    %v2569 = vadd.f32 0.0, %v2568
    %v2570 = vpop.f32.mrb[0].mxu0
    %v2571 = vpop.f32.mrb[0].mxu0
    %2572 = vdwg.mxu0
    %v2573 = vadd.f32 %v2487, %v2526
    %v2574 = vadd.f32 %v2488, %v2528
    %v2575 = vadd.f32 %v2489, %v2567
    %v2576 = vadd.f32 %v2490, %v2569
    %v2577 = vxor.u32 %v2573, 2147483648
    %v2578 = vxor.u32 %v2574, 2147483648
    %v2579 = vxor.u32 %v2575, 2147483648
    %v2580 = vmul.f32 %v2577, 1.442695
    %v2581 = vpow.pop %v2580
    %v2582 = vmul.f32 %v2578, 1.442695
    %v2583 = vpow.pop %v2582
    %v2584 = vmul.f32 %v2579, 1.442695
    %v2585 = vpow.pop %v2584
    %v2586 = vadd.f32 %v2581, 1.0
    %v2587 = vadd.f32 %v2583, 1.0
    %v2588 = vadd.f32 %v2585, 1.0
    %v2589 = vrcp.pop %v2586
    %v2590 = vmul.f32 1.0, %v2589
    %v2591 = vrcp.pop %v2587
    %v2592 = vmul.f32 1.0, %v2591
    %v2593 = vrcp.pop %v2588
    %v2594 = vmul.f32 1.0, %v2593
    %v2595 = vtanh.pop %v2576
    %v2596 = vmul.f32 %v2592, %v2287
    %v2597 = vmul.f32 %v2590, %v2595
    %v2598 = vadd.f32 %v2596, %v2597
    %v2599 = vtanh.pop %v2598
    %v2600 = vmul.f32 %v2594, %v2599
    %v2601 = vpack.c.bf16 %v2600, %v2600
    %v2602 = vpack.c.bf16 %v2483, %v2483
    %2603 = vmatprep.subr.bf16.mxu0 %v825
    %2604 = vmatpush1.bf16.msra.mxu0 %v824
    %2605 = vmatprep.subr.bf16.mxu0 %v829
    %2606 = vmatpush1.bf16.msra.mxu0 %v828
    %2607 = vmatprep.subr.bf16.mxu0 %v833
    %2608 = vmatpush1.bf16.msra.mxu0 %v832
    %2609 = vmatprep.subr.bf16.mxu0 %v837
    %2610 = vmatpush1.bf16.msra.mxu0 %v836
    %2611 = vmatprep.subr.bf16.mxu0 %v841
    %2612 = vmatpush1.bf16.msra.mxu0 %v840
    %2613 = vmatprep.subr.bf16.mxu0 %v845
    %2614 = vmatpush1.bf16.msra.mxu0 %v844
    %2615 = vmatprep.subr.bf16.mxu0 %v849
    %2616 = vmatpush1.bf16.msra.mxu0 %v848
    %2617 = vmatprep.subr.bf16.mxu0 %v853
    %2618 = vmatpush1.bf16.msra.mxu0 %v852
    %2619 = vmatprep.subr.bf16.mxu0 0
    %2620 = vmatpush1.bf16.msra.mxu0 0
    %2621 = vmatprep.subr.bf16.mxu0 0
    %2622 = vmatpush1.bf16.msra.mxu0 0
    %2623 = vmatprep.subr.bf16.mxu0 0
    %2624 = vmatpush1.bf16.msra.mxu0 0
    %2625 = vmatprep.subr.bf16.mxu0 0
    %2626 = vmatpush1.bf16.msra.mxu0 0
    %2627 = vmatprep.subr.bf16.mxu0 0
    %2628 = vmatpush1.bf16.msra.mxu0 0
    %2629 = vmatprep.subr.bf16.mxu0 0
    %2630 = vmatpush1.bf16.msra.mxu0 0
    %2631 = vmatprep.subr.bf16.mxu0 0
    %2632 = vmatpush1.bf16.msra.mxu0 0
    %2633 = vmatprep.subr.bf16.mxu0 0
    %2634 = vmatpush1.bf16.msra.mxu0 0
    %2635 = vmatprep.mubr.bf16.mxu0 0
    %2636 = vmatmul.mubr.bf16.gmra.mrb[0].mxu0 %v2602
    %v2637 = vpop.f32.mrb[0].mxu0
    %v2638 = vadd.f32 0.0, %v2637
    %v2639 = vpop.f32.mrb[0].mxu0
    %v2640 = vadd.f32 0.0, %v2639
    %v2641 = vpop.f32.mrb[0].mxu0
    %v2642 = vpop.f32.mrb[0].mxu0
    %2643 = vdwg.mxu0
    %2644 = vmatprep.subr.bf16.mxu0 %v827
    %2645 = vmatpush1.bf16.msra.mxu0 %v826
    %2646 = vmatprep.subr.bf16.mxu0 %v831
    %2647 = vmatpush1.bf16.msra.mxu0 %v830
    %2648 = vmatprep.subr.bf16.mxu0 %v835
    %2649 = vmatpush1.bf16.msra.mxu0 %v834
    %2650 = vmatprep.subr.bf16.mxu0 %v839
    %2651 = vmatpush1.bf16.msra.mxu0 %v838
    %2652 = vmatprep.subr.bf16.mxu0 %v843
    %2653 = vmatpush1.bf16.msra.mxu0 %v842
    %2654 = vmatprep.subr.bf16.mxu0 %v847
    %2655 = vmatpush1.bf16.msra.mxu0 %v846
    %2656 = vmatprep.subr.bf16.mxu0 %v851
    %2657 = vmatpush1.bf16.msra.mxu0 %v850
    %2658 = vmatprep.subr.bf16.mxu0 %v855
    %2659 = vmatpush1.bf16.msra.mxu0 %v854
    %2660 = vmatprep.subr.bf16.mxu0 0
    %2661 = vmatpush1.bf16.msra.mxu0 0
    %2662 = vmatprep.subr.bf16.mxu0 0
    %2663 = vmatpush1.bf16.msra.mxu0 0
    %2664 = vmatprep.subr.bf16.mxu0 0
    %2665 = vmatpush1.bf16.msra.mxu0 0
    %2666 = vmatprep.subr.bf16.mxu0 0
    %2667 = vmatpush1.bf16.msra.mxu0 0
    %2668 = vmatprep.subr.bf16.mxu0 0
    %2669 = vmatpush1.bf16.msra.mxu0 0
    %2670 = vmatprep.subr.bf16.mxu0 0
    %2671 = vmatpush1.bf16.msra.mxu0 0
    %2672 = vmatprep.subr.bf16.mxu0 0
    %2673 = vmatpush1.bf16.msra.mxu0 0
    %2674 = vmatprep.subr.bf16.mxu0 0
    %2675 = vmatpush1.bf16.msra.mxu0 0
    %2676 = vmatprep.mubr.bf16.mxu0 0
    %2677 = vmatmul.mubr.bf16.gmra.mrb[0].mxu0 %v2602
    %v2678 = vpop.f32.mrb[0].mxu0
    %v2679 = vadd.f32 0.0, %v2678
    %v2680 = vpop.f32.mrb[0].mxu0
    %v2681 = vadd.f32 0.0, %v2680
    %v2682 = vpop.f32.mrb[0].mxu0
    %v2683 = vpop.f32.mrb[0].mxu0
    %2684 = vdwg.mxu0
    %2685 = vmatprep.subr.bf16.mxu0 %v1067
    %2686 = vmatpush1.bf16.msra.mxu0 %v1066
    %2687 = vmatprep.subr.bf16.mxu0 %v1071
    %2688 = vmatpush1.bf16.msra.mxu0 %v1070
    %2689 = vmatprep.subr.bf16.mxu0 %v1075
    %2690 = vmatpush1.bf16.msra.mxu0 %v1074
    %2691 = vmatprep.subr.bf16.mxu0 %v1079
    %2692 = vmatpush1.bf16.msra.mxu0 %v1078
    %2693 = vmatprep.subr.bf16.mxu0 %v1083
    %2694 = vmatpush1.bf16.msra.mxu0 %v1082
    %2695 = vmatprep.subr.bf16.mxu0 %v1087
    %2696 = vmatpush1.bf16.msra.mxu0 %v1086
    %2697 = vmatprep.subr.bf16.mxu0 %v1091
    %2698 = vmatpush1.bf16.msra.mxu0 %v1090
    %2699 = vmatprep.subr.bf16.mxu0 %v1095
    %2700 = vmatpush1.bf16.msra.mxu0 %v1094
    %2701 = vmatprep.subr.bf16.mxu0 0
    %2702 = vmatpush1.bf16.msra.mxu0 0
    %2703 = vmatprep.subr.bf16.mxu0 0
    %2704 = vmatpush1.bf16.msra.mxu0 0
    %2705 = vmatprep.subr.bf16.mxu0 0
    %2706 = vmatpush1.bf16.msra.mxu0 0
    %2707 = vmatprep.subr.bf16.mxu0 0
    %2708 = vmatpush1.bf16.msra.mxu0 0
    %2709 = vmatprep.subr.bf16.mxu0 0
    %2710 = vmatpush1.bf16.msra.mxu0 0
    %2711 = vmatprep.subr.bf16.mxu0 0
    %2712 = vmatpush1.bf16.msra.mxu0 0
    %2713 = vmatprep.subr.bf16.mxu0 0
    %2714 = vmatpush1.bf16.msra.mxu0 0
    %2715 = vmatprep.subr.bf16.mxu0 0
    %2716 = vmatpush1.bf16.msra.mxu0 0
    %2717 = vmatprep.mubr.bf16.mxu0 0
    %2718 = vmatmul.mubr.bf16.gmra.mrb[0].mxu0 %v2601
    %v2719 = vpop.f32.mrb[0].mxu0
    %v2720 = vadd.f32 %v2638, %v2719
    %v2721 = vpop.f32.mrb[0].mxu0
    %v2722 = vadd.f32 %v2640, %v2721
    %v2723 = vpop.f32.mrb[0].mxu0
    %v2724 = vpop.f32.mrb[0].mxu0
    %2725 = vdwg.mxu0
    %2726 = vmatprep.subr.bf16.mxu0 %v1069
    %2727 = vmatpush1.bf16.msra.mxu0 %v1068
    %2728 = vmatprep.subr.bf16.mxu0 %v1073
    %2729 = vmatpush1.bf16.msra.mxu0 %v1072
    %2730 = vmatprep.subr.bf16.mxu0 %v1077
    %2731 = vmatpush1.bf16.msra.mxu0 %v1076
    %2732 = vmatprep.subr.bf16.mxu0 %v1081
    %2733 = vmatpush1.bf16.msra.mxu0 %v1080
    %2734 = vmatprep.subr.bf16.mxu0 %v1085
    %2735 = vmatpush1.bf16.msra.mxu0 %v1084
    %2736 = vmatprep.subr.bf16.mxu0 %v1089
    %2737 = vmatpush1.bf16.msra.mxu0 %v1088
    %2738 = vmatprep.subr.bf16.mxu0 %v1093
    %2739 = vmatpush1.bf16.msra.mxu0 %v1092
    %2740 = vmatprep.subr.bf16.mxu0 %v1097
    %2741 = vmatpush1.bf16.msra.mxu0 %v1096
    %2742 = vmatprep.subr.bf16.mxu0 0
    %2743 = vmatpush1.bf16.msra.mxu0 0
    %2744 = vmatprep.subr.bf16.mxu0 0
    %2745 = vmatpush1.bf16.msra.mxu0 0
    %2746 = vmatprep.subr.bf16.mxu0 0
    %2747 = vmatpush1.bf16.msra.mxu0 0
    %2748 = vmatprep.subr.bf16.mxu0 0
    %2749 = vmatpush1.bf16.msra.mxu0 0
    %2750 = vmatprep.subr.bf16.mxu0 0
    %2751 = vmatpush1.bf16.msra.mxu0 0
    %2752 = vmatprep.subr.bf16.mxu0 0
    %2753 = vmatpush1.bf16.msra.mxu0 0
    %2754 = vmatprep.subr.bf16.mxu0 0
    %2755 = vmatpush1.bf16.msra.mxu0 0
    %2756 = vmatprep.subr.bf16.mxu0 0
    %2757 = vmatpush1.bf16.msra.mxu0 0
    %2758 = vmatprep.mubr.bf16.mxu0 0
    %2759 = vmatmul.mubr.bf16.gmra.mrb[0].mxu0 %v2601
    %v2760 = vpop.f32.mrb[0].mxu0
    %v2761 = vadd.f32 %v2679, %v2760
    %v2762 = vpop.f32.mrb[0].mxu0
    %v2763 = vadd.f32 %v2681, %v2762
    %v2764 = vpop.f32.mrb[0].mxu0
    %v2765 = vpop.f32.mrb[0].mxu0
    %2766 = vdwg.mxu0
    %v2767 = vadd.f32 %v2720, %v337
    %v2768 = vadd.f32 %v2722, %v341
    %v2769 = vadd.f32 %v2761, %v345
    %v2770 = vadd.f32 %v2763, %v349
    %v2771 = vxor.u32 %v2767, 2147483648
    %v2772 = vxor.u32 %v2768, 2147483648
    %v2773 = vxor.u32 %v2769, 2147483648
    %v2774 = vmul.f32 %v2771, 1.442695
    %v2775 = vpow.pop %v2774
    %v2776 = vmul.f32 %v2772, 1.442695
    %v2777 = vpow.pop %v2776
    %v2778 = vmul.f32 %v2773, 1.442695
    %v2779 = vpow.pop %v2778
    %v2780 = vadd.f32 %v2775, 1.0
    %v2781 = vadd.f32 %v2777, 1.0
    %v2782 = vadd.f32 %v2779, 1.0
    %v2783 = vrcp.pop %v2780
    %v2784 = vmul.f32 1.0, %v2783
    %v2785 = vrcp.pop %v2781
    %v2786 = vmul.f32 1.0, %v2785
    %v2787 = vrcp.pop %v2782
    %v2788 = vmul.f32 1.0, %v2787
    %v2789 = vtanh.pop %v2770
    %v2790 = vmul.f32 %v2786, %v2481
    %v2791 = vmul.f32 %v2784, %v2789
    %v2792 = vadd.f32 %v2790, %v2791
    %v2793 = vtanh.pop %v2792
    %v2794 = vmul.f32 %v2788, %v2793
    %s2795 = smul.u32 6, 4
    %s2796 = smul.addr %s2795, 8
    %s2797 = scalar_lea.vmem [#allocation2], %s2796
    %v2798 = vld [vmem:[%s2797] sm:$0xff]
    %v2799 = vld [vmem:[%s2797 + $0x8] sm:$0xff]
    %v2800 = vld [vmem:[%s2797 + $0x10] sm:$0xff]
    %v2801 = vld [vmem:[%s2797 + $0x18] sm:$0xff]
    %2802 = vmatprep.subr.bf16.mxu0 %v490
    %2803 = vmatpush1.bf16.msra.mxu0 %v489
    %2804 = vmatprep.subr.bf16.mxu0 %v494
    %2805 = vmatpush1.bf16.msra.mxu0 %v493
    %2806 = vmatprep.subr.bf16.mxu0 %v498
    %2807 = vmatpush1.bf16.msra.mxu0 %v497
    %2808 = vmatprep.subr.bf16.mxu0 %v502
    %2809 = vmatpush1.bf16.msra.mxu0 %v501
    %2810 = vmatprep.subr.bf16.mxu0 %v506
    %2811 = vmatpush1.bf16.msra.mxu0 %v505
    %2812 = vmatprep.subr.bf16.mxu0 %v510
    %2813 = vmatpush1.bf16.msra.mxu0 %v509
    %2814 = vmatprep.subr.bf16.mxu0 %v514
    %2815 = vmatpush1.bf16.msra.mxu0 %v513
    %2816 = vmatprep.subr.bf16.mxu0 %v518
    %2817 = vmatpush1.bf16.msra.mxu0 %v517
    %2818 = vmatprep.subr.bf16.mxu0 0
    %2819 = vmatpush1.bf16.msra.mxu0 0
    %2820 = vmatprep.subr.bf16.mxu0 0
    %2821 = vmatpush1.bf16.msra.mxu0 0
    %2822 = vmatprep.subr.bf16.mxu0 0
    %2823 = vmatpush1.bf16.msra.mxu0 0
    %2824 = vmatprep.subr.bf16.mxu0 0
    %2825 = vmatpush1.bf16.msra.mxu0 0
    %2826 = vmatprep.subr.bf16.mxu0 0
    %2827 = vmatpush1.bf16.msra.mxu0 0
    %2828 = vmatprep.subr.bf16.mxu0 0
    %2829 = vmatpush1.bf16.msra.mxu0 0
    %2830 = vmatprep.subr.bf16.mxu0 0
    %2831 = vmatpush1.bf16.msra.mxu0 0
    %2832 = vmatprep.subr.bf16.mxu0 0
    %2833 = vmatpush1.bf16.msra.mxu0 0
    %2834 = vmatprep.mubr.bf16.mxu0 0
    %2835 = vmatmul.mubr.bf16.gmra.mrb[0].mxu0 %v2601
    %v2836 = vpop.f32.mrb[0].mxu0
    %v2837 = vadd.f32 0.0, %v2836
    %v2838 = vpop.f32.mrb[0].mxu0
    %v2839 = vadd.f32 0.0, %v2838
    %v2840 = vpop.f32.mrb[0].mxu0
    %v2841 = vpop.f32.mrb[0].mxu0
    %2842 = vdwg.mxu0
    %2843 = vmatprep.subr.bf16.mxu0 %v492
    %2844 = vmatpush1.bf16.msra.mxu0 %v491
    %2845 = vmatprep.subr.bf16.mxu0 %v496
    %2846 = vmatpush1.bf16.msra.mxu0 %v495
    %2847 = vmatprep.subr.bf16.mxu0 %v500
    %2848 = vmatpush1.bf16.msra.mxu0 %v499
    %2849 = vmatprep.subr.bf16.mxu0 %v504
    %2850 = vmatpush1.bf16.msra.mxu0 %v503
    %2851 = vmatprep.subr.bf16.mxu0 %v508
    %2852 = vmatpush1.bf16.msra.mxu0 %v507
    %2853 = vmatprep.subr.bf16.mxu0 %v512
    %2854 = vmatpush1.bf16.msra.mxu0 %v511
    %2855 = vmatprep.subr.bf16.mxu0 %v516
    %2856 = vmatpush1.bf16.msra.mxu0 %v515
    %2857 = vmatprep.subr.bf16.mxu0 %v520
    %2858 = vmatpush1.bf16.msra.mxu0 %v519
    %2859 = vmatprep.subr.bf16.mxu0 0
    %2860 = vmatpush1.bf16.msra.mxu0 0
    %2861 = vmatprep.subr.bf16.mxu0 0
    %2862 = vmatpush1.bf16.msra.mxu0 0
    %2863 = vmatprep.subr.bf16.mxu0 0
    %2864 = vmatpush1.bf16.msra.mxu0 0
    %2865 = vmatprep.subr.bf16.mxu0 0
    %2866 = vmatpush1.bf16.msra.mxu0 0
    %2867 = vmatprep.subr.bf16.mxu0 0
    %2868 = vmatpush1.bf16.msra.mxu0 0
    %2869 = vmatprep.subr.bf16.mxu0 0
    %2870 = vmatpush1.bf16.msra.mxu0 0
    %2871 = vmatprep.subr.bf16.mxu0 0
    %2872 = vmatpush1.bf16.msra.mxu0 0
    %2873 = vmatprep.subr.bf16.mxu0 0
    %2874 = vmatpush1.bf16.msra.mxu0 0
    %2875 = vmatprep.mubr.bf16.mxu0 0
    %2876 = vmatmul.mubr.bf16.gmra.mrb[0].mxu0 %v2601
    %v2877 = vpop.f32.mrb[0].mxu0
    %v2878 = vadd.f32 0.0, %v2877
    %v2879 = vpop.f32.mrb[0].mxu0
    %v2880 = vadd.f32 0.0, %v2879
    %v2881 = vpop.f32.mrb[0].mxu0
    %v2882 = vpop.f32.mrb[0].mxu0
    %2883 = vdwg.mxu0
    %v2884 = vadd.f32 %v2798, %v2837
    %v2885 = vadd.f32 %v2799, %v2839
    %v2886 = vadd.f32 %v2800, %v2878
    %v2887 = vadd.f32 %v2801, %v2880
    %v2888 = vxor.u32 %v2884, 2147483648
    %v2889 = vxor.u32 %v2885, 2147483648
    %v2890 = vxor.u32 %v2886, 2147483648
    %v2891 = vmul.f32 %v2888, 1.442695
    %v2892 = vpow.pop %v2891
    %v2893 = vmul.f32 %v2889, 1.442695
    %v2894 = vpow.pop %v2893
    %v2895 = vmul.f32 %v2890, 1.442695
    %v2896 = vpow.pop %v2895
    %v2897 = vadd.f32 %v2892, 1.0
    %v2898 = vadd.f32 %v2894, 1.0
    %v2899 = vadd.f32 %v2896, 1.0
    %v2900 = vrcp.pop %v2897
    %v2901 = vmul.f32 1.0, %v2900
    %v2902 = vrcp.pop %v2898
    %v2903 = vmul.f32 1.0, %v2902
    %v2904 = vrcp.pop %v2899
    %v2905 = vmul.f32 1.0, %v2904
    %v2906 = vtanh.pop %v2887
    %v2907 = vmul.f32 %v2903, %v2598
    %v2908 = vmul.f32 %v2901, %v2906
    %v2909 = vadd.f32 %v2907, %v2908
    %v2910 = vtanh.pop %v2909
    %v2911 = vmul.f32 %v2905, %v2910
    %v2912 = vpack.c.bf16 %v2911, %v2911
    %v2913 = vpack.c.bf16 %v2794, %v2794
    %2914 = vmatprep.subr.bf16.mxu0 %v825
    %2915 = vmatpush1.bf16.msra.mxu0 %v824
    %2916 = vmatprep.subr.bf16.mxu0 %v829
    %2917 = vmatpush1.bf16.msra.mxu0 %v828
    %2918 = vmatprep.subr.bf16.mxu0 %v833
    %2919 = vmatpush1.bf16.msra.mxu0 %v832
    %2920 = vmatprep.subr.bf16.mxu0 %v837
    %2921 = vmatpush1.bf16.msra.mxu0 %v836
    %2922 = vmatprep.subr.bf16.mxu0 %v841
    %2923 = vmatpush1.bf16.msra.mxu0 %v840
    %2924 = vmatprep.subr.bf16.mxu0 %v845
    %2925 = vmatpush1.bf16.msra.mxu0 %v844
    %2926 = vmatprep.subr.bf16.mxu0 %v849
    %2927 = vmatpush1.bf16.msra.mxu0 %v848
    %2928 = vmatprep.subr.bf16.mxu0 %v853
    %2929 = vmatpush1.bf16.msra.mxu0 %v852
    %2930 = vmatprep.subr.bf16.mxu0 0
    %2931 = vmatpush1.bf16.msra.mxu0 0
    %2932 = vmatprep.subr.bf16.mxu0 0
    %2933 = vmatpush1.bf16.msra.mxu0 0
    %2934 = vmatprep.subr.bf16.mxu0 0
    %2935 = vmatpush1.bf16.msra.mxu0 0
    %2936 = vmatprep.subr.bf16.mxu0 0
    %2937 = vmatpush1.bf16.msra.mxu0 0
    %2938 = vmatprep.subr.bf16.mxu0 0
    %2939 = vmatpush1.bf16.msra.mxu0 0
    %2940 = vmatprep.subr.bf16.mxu0 0
    %2941 = vmatpush1.bf16.msra.mxu0 0
    %2942 = vmatprep.subr.bf16.mxu0 0
    %2943 = vmatpush1.bf16.msra.mxu0 0
    %2944 = vmatprep.subr.bf16.mxu0 0
    %2945 = vmatpush1.bf16.msra.mxu0 0
    %2946 = vmatprep.mubr.bf16.mxu0 0
    %2947 = vmatmul.mubr.bf16.gmra.mrb[0].mxu0 %v2913
    %v2948 = vpop.f32.mrb[0].mxu0
    %v2949 = vadd.f32 0.0, %v2948
    %v2950 = vpop.f32.mrb[0].mxu0
    %v2951 = vadd.f32 0.0, %v2950
    %v2952 = vpop.f32.mrb[0].mxu0
    %v2953 = vpop.f32.mrb[0].mxu0
    %2954 = vdwg.mxu0
    %2955 = vmatprep.subr.bf16.mxu0 %v827
    %2956 = vmatpush1.bf16.msra.mxu0 %v826
    %2957 = vmatprep.subr.bf16.mxu0 %v831
    %2958 = vmatpush1.bf16.msra.mxu0 %v830
    %2959 = vmatprep.subr.bf16.mxu0 %v835
    %2960 = vmatpush1.bf16.msra.mxu0 %v834
    %2961 = vmatprep.subr.bf16.mxu0 %v839
    %2962 = vmatpush1.bf16.msra.mxu0 %v838
    %2963 = vmatprep.subr.bf16.mxu0 %v843
    %2964 = vmatpush1.bf16.msra.mxu0 %v842
    %2965 = vmatprep.subr.bf16.mxu0 %v847
    %2966 = vmatpush1.bf16.msra.mxu0 %v846
    %2967 = vmatprep.subr.bf16.mxu0 %v851
    %2968 = vmatpush1.bf16.msra.mxu0 %v850
    %2969 = vmatprep.subr.bf16.mxu0 %v855
    %2970 = vmatpush1.bf16.msra.mxu0 %v854
    %2971 = vmatprep.subr.bf16.mxu0 0
    %2972 = vmatpush1.bf16.msra.mxu0 0
    %2973 = vmatprep.subr.bf16.mxu0 0
    %2974 = vmatpush1.bf16.msra.mxu0 0
    %2975 = vmatprep.subr.bf16.mxu0 0
    %2976 = vmatpush1.bf16.msra.mxu0 0
    %2977 = vmatprep.subr.bf16.mxu0 0
    %2978 = vmatpush1.bf16.msra.mxu0 0
    %2979 = vmatprep.subr.bf16.mxu0 0
    %2980 = vmatpush1.bf16.msra.mxu0 0
    %2981 = vmatprep.subr.bf16.mxu0 0
    %2982 = vmatpush1.bf16.msra.mxu0 0
    %2983 = vmatprep.subr.bf16.mxu0 0
    %2984 = vmatpush1.bf16.msra.mxu0 0
    %2985 = vmatprep.subr.bf16.mxu0 0
    %2986 = vmatpush1.bf16.msra.mxu0 0
    %2987 = vmatprep.mubr.bf16.mxu0 0
    %2988 = vmatmul.mubr.bf16.gmra.mrb[0].mxu0 %v2913
    %v2989 = vpop.f32.mrb[0].mxu0
    %v2990 = vadd.f32 0.0, %v2989
    %v2991 = vpop.f32.mrb[0].mxu0
    %v2992 = vadd.f32 0.0, %v2991
    %v2993 = vpop.f32.mrb[0].mxu0
    %v2994 = vpop.f32.mrb[0].mxu0
    %2995 = vdwg.mxu0
    %2996 = vmatprep.subr.bf16.mxu0 %v1067
    %2997 = vmatpush1.bf16.msra.mxu0 %v1066
    %2998 = vmatprep.subr.bf16.mxu0 %v1071
    %2999 = vmatpush1.bf16.msra.mxu0 %v1070
    %3000 = vmatprep.subr.bf16.mxu0 %v1075
    %3001 = vmatpush1.bf16.msra.mxu0 %v1074
    %3002 = vmatprep.subr.bf16.mxu0 %v1079
    %3003 = vmatpush1.bf16.msra.mxu0 %v1078
    %3004 = vmatprep.subr.bf16.mxu0 %v1083
    %3005 = vmatpush1.bf16.msra.mxu0 %v1082
    %3006 = vmatprep.subr.bf16.mxu0 %v1087
    %3007 = vmatpush1.bf16.msra.mxu0 %v1086
    %3008 = vmatprep.subr.bf16.mxu0 %v1091
    %3009 = vmatpush1.bf16.msra.mxu0 %v1090
    %3010 = vmatprep.subr.bf16.mxu0 %v1095
    %3011 = vmatpush1.bf16.msra.mxu0 %v1094
    %3012 = vmatprep.subr.bf16.mxu0 0
    %3013 = vmatpush1.bf16.msra.mxu0 0
    %3014 = vmatprep.subr.bf16.mxu0 0
    %3015 = vmatpush1.bf16.msra.mxu0 0
    %3016 = vmatprep.subr.bf16.mxu0 0
    %3017 = vmatpush1.bf16.msra.mxu0 0
    %3018 = vmatprep.subr.bf16.mxu0 0
    %3019 = vmatpush1.bf16.msra.mxu0 0
    %3020 = vmatprep.subr.bf16.mxu0 0
    %3021 = vmatpush1.bf16.msra.mxu0 0
    %3022 = vmatprep.subr.bf16.mxu0 0
    %3023 = vmatpush1.bf16.msra.mxu0 0
    %3024 = vmatprep.subr.bf16.mxu0 0
    %3025 = vmatpush1.bf16.msra.mxu0 0
    %3026 = vmatprep.subr.bf16.mxu0 0
    %3027 = vmatpush1.bf16.msra.mxu0 0
    %3028 = vmatprep.mubr.bf16.mxu0 0
    %3029 = vmatmul.mubr.bf16.gmra.mrb[0].mxu0 %v2912
    %v3030 = vpop.f32.mrb[0].mxu0
    %v3031 = vadd.f32 %v2949, %v3030
    %v3032 = vpop.f32.mrb[0].mxu0
    %v3033 = vadd.f32 %v2951, %v3032
    %v3034 = vpop.f32.mrb[0].mxu0
    %v3035 = vpop.f32.mrb[0].mxu0
    %3036 = vdwg.mxu0
    %3037 = vmatprep.subr.bf16.mxu0 %v1069
    %3038 = vmatpush1.bf16.msra.mxu0 %v1068
    %3039 = vmatprep.subr.bf16.mxu0 %v1073
    %3040 = vmatpush1.bf16.msra.mxu0 %v1072
    %3041 = vmatprep.subr.bf16.mxu0 %v1077
    %3042 = vmatpush1.bf16.msra.mxu0 %v1076
    %3043 = vmatprep.subr.bf16.mxu0 %v1081
    %3044 = vmatpush1.bf16.msra.mxu0 %v1080
    %3045 = vmatprep.subr.bf16.mxu0 %v1085
    %3046 = vmatpush1.bf16.msra.mxu0 %v1084
    %3047 = vmatprep.subr.bf16.mxu0 %v1089
    %3048 = vmatpush1.bf16.msra.mxu0 %v1088
    %3049 = vmatprep.subr.bf16.mxu0 %v1093
    %3050 = vmatpush1.bf16.msra.mxu0 %v1092
    %3051 = vmatprep.subr.bf16.mxu0 %v1097
    %3052 = vmatpush1.bf16.msra.mxu0 %v1096
    %3053 = vmatprep.subr.bf16.mxu0 0
    %3054 = vmatpush1.bf16.msra.mxu0 0
    %3055 = vmatprep.subr.bf16.mxu0 0
    %3056 = vmatpush1.bf16.msra.mxu0 0
    %3057 = vmatprep.subr.bf16.mxu0 0
    %3058 = vmatpush1.bf16.msra.mxu0 0
    %3059 = vmatprep.subr.bf16.mxu0 0
    %3060 = vmatpush1.bf16.msra.mxu0 0
    %3061 = vmatprep.subr.bf16.mxu0 0
    %3062 = vmatpush1.bf16.msra.mxu0 0
    %3063 = vmatprep.subr.bf16.mxu0 0
    %3064 = vmatpush1.bf16.msra.mxu0 0
    %3065 = vmatprep.subr.bf16.mxu0 0
    %3066 = vmatpush1.bf16.msra.mxu0 0
    %3067 = vmatprep.subr.bf16.mxu0 0
    %3068 = vmatpush1.bf16.msra.mxu0 0
    %3069 = vmatprep.mubr.bf16.mxu0 0
    %3070 = vmatmul.mubr.bf16.gmra.mrb[0].mxu0 %v2912
    %v3071 = vpop.f32.mrb[0].mxu0
    %v3072 = vadd.f32 %v2990, %v3071
    %v3073 = vpop.f32.mrb[0].mxu0
    %v3074 = vadd.f32 %v2992, %v3073
    %v3075 = vpop.f32.mrb[0].mxu0
    %v3076 = vpop.f32.mrb[0].mxu0
    %3077 = vdwg.mxu0
    %v3078 = vadd.f32 %v3031, %v337
    %v3079 = vadd.f32 %v3033, %v341
    %v3080 = vadd.f32 %v3072, %v345
    %v3081 = vadd.f32 %v3074, %v349
    %v3082 = vxor.u32 %v3078, 2147483648
    %v3083 = vxor.u32 %v3079, 2147483648
    %v3084 = vxor.u32 %v3080, 2147483648
    %v3085 = vmul.f32 %v3082, 1.442695
    %v3086 = vpow.pop %v3085
    %v3087 = vmul.f32 %v3083, 1.442695
    %v3088 = vpow.pop %v3087
    %v3089 = vmul.f32 %v3084, 1.442695
    %v3090 = vpow.pop %v3089
    %v3091 = vadd.f32 %v3086, 1.0
    %v3092 = vadd.f32 %v3088, 1.0
    %v3093 = vadd.f32 %v3090, 1.0
    %v3094 = vrcp.pop %v3091
    %v3095 = vmul.f32 1.0, %v3094
    %v3096 = vrcp.pop %v3092
    %v3097 = vmul.f32 1.0, %v3096
    %v3098 = vrcp.pop %v3093
    %v3099 = vmul.f32 1.0, %v3098
    %v3100 = vtanh.pop %v3081
    %v3101 = vmul.f32 %v3097, %v2792
    %v3102 = vmul.f32 %v3095, %v3100
    %v3103 = vadd.f32 %v3101, %v3102
    %v3104 = vtanh.pop %v3103
    %v3105 = vmul.f32 %v3099, %v3104
    %s3106 = smul.u32 7, 4
    %s3107 = smul.addr %s3106, 8
    %s3108 = scalar_lea.vmem [#allocation2], %s3107
    %v3109 = vld [vmem:[%s3108] sm:$0xff]
    %v3110 = vld [vmem:[%s3108 + $0x8] sm:$0xff]
    %v3111 = vld [vmem:[%s3108 + $0x10] sm:$0xff]
    %v3112 = vld [vmem:[%s3108 + $0x18] sm:$0xff]
    %3113 = vmatprep.subr.bf16.mxu0 %v490
    %3114 = vmatpush1.bf16.msra.mxu0 %v489
    %3115 = vmatprep.subr.bf16.mxu0 %v494
    %3116 = vmatpush1.bf16.msra.mxu0 %v493
    %3117 = vmatprep.subr.bf16.mxu0 %v498
    %3118 = vmatpush1.bf16.msra.mxu0 %v497
    %3119 = vmatprep.subr.bf16.mxu0 %v502
    %3120 = vmatpush1.bf16.msra.mxu0 %v501
    %3121 = vmatprep.subr.bf16.mxu0 %v506
    %3122 = vmatpush1.bf16.msra.mxu0 %v505
    %3123 = vmatprep.subr.bf16.mxu0 %v510
    %3124 = vmatpush1.bf16.msra.mxu0 %v509
    %3125 = vmatprep.subr.bf16.mxu0 %v514
    %3126 = vmatpush1.bf16.msra.mxu0 %v513
    %3127 = vmatprep.subr.bf16.mxu0 %v518
    %3128 = vmatpush1.bf16.msra.mxu0 %v517
    %3129 = vmatprep.subr.bf16.mxu0 0
    %3130 = vmatpush1.bf16.msra.mxu0 0
    %3131 = vmatprep.subr.bf16.mxu0 0
    %3132 = vmatpush1.bf16.msra.mxu0 0
    %3133 = vmatprep.subr.bf16.mxu0 0
    %3134 = vmatpush1.bf16.msra.mxu0 0
    %3135 = vmatprep.subr.bf16.mxu0 0
    %3136 = vmatpush1.bf16.msra.mxu0 0
    %3137 = vmatprep.subr.bf16.mxu0 0
    %3138 = vmatpush1.bf16.msra.mxu0 0
    %3139 = vmatprep.subr.bf16.mxu0 0
    %3140 = vmatpush1.bf16.msra.mxu0 0
    %3141 = vmatprep.subr.bf16.mxu0 0
    %3142 = vmatpush1.bf16.msra.mxu0 0
    %3143 = vmatprep.subr.bf16.mxu0 0
    %3144 = vmatpush1.bf16.msra.mxu0 0
    %3145 = vmatprep.mubr.bf16.mxu0 0
    %3146 = vmatmul.mubr.bf16.gmra.mrb[0].mxu0 %v2912
    %v3147 = vpop.f32.mrb[0].mxu0
    %v3148 = vadd.f32 0.0, %v3147
    %v3149 = vpop.f32.mrb[0].mxu0
    %v3150 = vadd.f32 0.0, %v3149
    %v3151 = vpop.f32.mrb[0].mxu0
    %v3152 = vpop.f32.mrb[0].mxu0
    %3153 = vdwg.mxu0
    %3154 = vmatprep.subr.bf16.mxu0 %v492
    %3155 = vmatpush1.bf16.msra.mxu0 %v491
    %3156 = vmatprep.subr.bf16.mxu0 %v496
    %3157 = vmatpush1.bf16.msra.mxu0 %v495
    %3158 = vmatprep.subr.bf16.mxu0 %v500
    %3159 = vmatpush1.bf16.msra.mxu0 %v499
    %3160 = vmatprep.subr.bf16.mxu0 %v504
    %3161 = vmatpush1.bf16.msra.mxu0 %v503
    %3162 = vmatprep.subr.bf16.mxu0 %v508
    %3163 = vmatpush1.bf16.msra.mxu0 %v507
    %3164 = vmatprep.subr.bf16.mxu0 %v512
    %3165 = vmatpush1.bf16.msra.mxu0 %v511
    %3166 = vmatprep.subr.bf16.mxu0 %v516
    %3167 = vmatpush1.bf16.msra.mxu0 %v515
    %3168 = vmatprep.subr.bf16.mxu0 %v520
    %3169 = vmatpush1.bf16.msra.mxu0 %v519
    %3170 = vmatprep.subr.bf16.mxu0 0
    %3171 = vmatpush1.bf16.msra.mxu0 0
    %3172 = vmatprep.subr.bf16.mxu0 0
    %3173 = vmatpush1.bf16.msra.mxu0 0
    %3174 = vmatprep.subr.bf16.mxu0 0
    %3175 = vmatpush1.bf16.msra.mxu0 0
    %3176 = vmatprep.subr.bf16.mxu0 0
    %3177 = vmatpush1.bf16.msra.mxu0 0
    %3178 = vmatprep.subr.bf16.mxu0 0
    %3179 = vmatpush1.bf16.msra.mxu0 0
    %3180 = vmatprep.subr.bf16.mxu0 0
    %3181 = vmatpush1.bf16.msra.mxu0 0
    %3182 = vmatprep.subr.bf16.mxu0 0
    %3183 = vmatpush1.bf16.msra.mxu0 0
    %3184 = vmatprep.subr.bf16.mxu0 0
    %3185 = vmatpush1.bf16.msra.mxu0 0
    %3186 = vmatprep.mubr.bf16.mxu0 0
    %3187 = vmatmul.mubr.bf16.gmra.mrb[0].mxu0 %v2912
    %v3188 = vpop.f32.mrb[0].mxu0
    %v3189 = vadd.f32 0.0, %v3188
    %v3190 = vpop.f32.mrb[0].mxu0
    %v3191 = vadd.f32 0.0, %v3190
    %v3192 = vpop.f32.mrb[0].mxu0
    %v3193 = vpop.f32.mrb[0].mxu0
    %3194 = vdwg.mxu0
    %v3195 = vadd.f32 %v3109, %v3148
    %v3196 = vadd.f32 %v3110, %v3150
    %v3197 = vadd.f32 %v3111, %v3189
    %v3198 = vadd.f32 %v3112, %v3191
    %v3199 = vxor.u32 %v3195, 2147483648
    %v3200 = vxor.u32 %v3196, 2147483648
    %v3201 = vxor.u32 %v3197, 2147483648
    %v3202 = vmul.f32 %v3199, 1.442695
    %v3203 = vpow.pop %v3202
    %v3204 = vmul.f32 %v3200, 1.442695
    %v3205 = vpow.pop %v3204
    %v3206 = vmul.f32 %v3201, 1.442695
    %v3207 = vpow.pop %v3206
    %v3208 = vadd.f32 %v3203, 1.0
    %v3209 = vadd.f32 %v3205, 1.0
    %v3210 = vadd.f32 %v3207, 1.0
    %v3211 = vrcp.pop %v3208
    %v3212 = vmul.f32 1.0, %v3211
    %v3213 = vrcp.pop %v3209
    %v3214 = vmul.f32 1.0, %v3213
    %v3215 = vrcp.pop %v3210
    %v3216 = vmul.f32 1.0, %v3215
    %v3217 = vtanh.pop %v3198
    %v3218 = vmul.f32 %v3214, %v2909
    %v3219 = vmul.f32 %v3212, %v3217
    %v3220 = vadd.f32 %v3218, %v3219
    %v3221 = vtanh.pop %v3220
    %v3222 = vmul.f32 %v3216, %v3221
    %v3223 = vpack.c.bf16 %v3222, %v3222
    %v3224 = vpack.c.bf16 %v3105, %v3105
    %3225 = vmatprep.subr.bf16.mxu0 %v825
    %3226 = vmatpush1.bf16.msra.mxu0 %v824
    %3227 = vmatprep.subr.bf16.mxu0 %v829
    %3228 = vmatpush1.bf16.msra.mxu0 %v828
    %3229 = vmatprep.subr.bf16.mxu0 %v833
    %3230 = vmatpush1.bf16.msra.mxu0 %v832
    %3231 = vmatprep.subr.bf16.mxu0 %v837
    %3232 = vmatpush1.bf16.msra.mxu0 %v836
    %3233 = vmatprep.subr.bf16.mxu0 %v841
    %3234 = vmatpush1.bf16.msra.mxu0 %v840
    %3235 = vmatprep.subr.bf16.mxu0 %v845
    %3236 = vmatpush1.bf16.msra.mxu0 %v844
    %3237 = vmatprep.subr.bf16.mxu0 %v849
    %3238 = vmatpush1.bf16.msra.mxu0 %v848
    %3239 = vmatprep.subr.bf16.mxu0 %v853
    %3240 = vmatpush1.bf16.msra.mxu0 %v852
    %3241 = vmatprep.subr.bf16.mxu0 0
    %3242 = vmatpush1.bf16.msra.mxu0 0
    %3243 = vmatprep.subr.bf16.mxu0 0
    %3244 = vmatpush1.bf16.msra.mxu0 0
    %3245 = vmatprep.subr.bf16.mxu0 0
    %3246 = vmatpush1.bf16.msra.mxu0 0
    %3247 = vmatprep.subr.bf16.mxu0 0
    %3248 = vmatpush1.bf16.msra.mxu0 0
    %3249 = vmatprep.subr.bf16.mxu0 0
    %3250 = vmatpush1.bf16.msra.mxu0 0
    %3251 = vmatprep.subr.bf16.mxu0 0
    %3252 = vmatpush1.bf16.msra.mxu0 0
    %3253 = vmatprep.subr.bf16.mxu0 0
    %3254 = vmatpush1.bf16.msra.mxu0 0
    %3255 = vmatprep.subr.bf16.mxu0 0
    %3256 = vmatpush1.bf16.msra.mxu0 0
    %3257 = vmatprep.mubr.bf16.mxu0 0
    %3258 = vmatmul.mubr.bf16.gmra.mrb[0].mxu0 %v3224
    %v3259 = vpop.f32.mrb[0].mxu0
    %v3260 = vadd.f32 0.0, %v3259
    %v3261 = vpop.f32.mrb[0].mxu0
    %v3262 = vadd.f32 0.0, %v3261
    %v3263 = vpop.f32.mrb[0].mxu0
    %v3264 = vpop.f32.mrb[0].mxu0
    %3265 = vdwg.mxu0
    %3266 = vmatprep.subr.bf16.mxu0 %v827
    %3267 = vmatpush1.bf16.msra.mxu0 %v826
    %3268 = vmatprep.subr.bf16.mxu0 %v831
    %3269 = vmatpush1.bf16.msra.mxu0 %v830
    %3270 = vmatprep.subr.bf16.mxu0 %v835
    %3271 = vmatpush1.bf16.msra.mxu0 %v834
    %3272 = vmatprep.subr.bf16.mxu0 %v839
    %3273 = vmatpush1.bf16.msra.mxu0 %v838
    %3274 = vmatprep.subr.bf16.mxu0 %v843
    %3275 = vmatpush1.bf16.msra.mxu0 %v842
    %3276 = vmatprep.subr.bf16.mxu0 %v847
    %3277 = vmatpush1.bf16.msra.mxu0 %v846
    %3278 = vmatprep.subr.bf16.mxu0 %v851
    %3279 = vmatpush1.bf16.msra.mxu0 %v850
    %3280 = vmatprep.subr.bf16.mxu0 %v855
    %3281 = vmatpush1.bf16.msra.mxu0 %v854
    %3282 = vmatprep.subr.bf16.mxu0 0
    %3283 = vmatpush1.bf16.msra.mxu0 0
    %3284 = vmatprep.subr.bf16.mxu0 0
    %3285 = vmatpush1.bf16.msra.mxu0 0
    %3286 = vmatprep.subr.bf16.mxu0 0
    %3287 = vmatpush1.bf16.msra.mxu0 0
    %3288 = vmatprep.subr.bf16.mxu0 0
    %3289 = vmatpush1.bf16.msra.mxu0 0
    %3290 = vmatprep.subr.bf16.mxu0 0
    %3291 = vmatpush1.bf16.msra.mxu0 0
    %3292 = vmatprep.subr.bf16.mxu0 0
    %3293 = vmatpush1.bf16.msra.mxu0 0
    %3294 = vmatprep.subr.bf16.mxu0 0
    %3295 = vmatpush1.bf16.msra.mxu0 0
    %3296 = vmatprep.subr.bf16.mxu0 0
    %3297 = vmatpush1.bf16.msra.mxu0 0
    %3298 = vmatprep.mubr.bf16.mxu0 0
    %3299 = vmatmul.mubr.bf16.gmra.mrb[0].mxu0 %v3224
    %v3300 = vpop.f32.mrb[0].mxu0
    %v3301 = vadd.f32 0.0, %v3300
    %v3302 = vpop.f32.mrb[0].mxu0
    %v3303 = vadd.f32 0.0, %v3302
    %v3304 = vpop.f32.mrb[0].mxu0
    %v3305 = vpop.f32.mrb[0].mxu0
    %3306 = vdwg.mxu0
    %3307 = vmatprep.subr.bf16.mxu0 %v1067
    %3308 = vmatpush1.bf16.msra.mxu0 %v1066
    %3309 = vmatprep.subr.bf16.mxu0 %v1071
    %3310 = vmatpush1.bf16.msra.mxu0 %v1070
    %3311 = vmatprep.subr.bf16.mxu0 %v1075
    %3312 = vmatpush1.bf16.msra.mxu0 %v1074
    %3313 = vmatprep.subr.bf16.mxu0 %v1079
    %3314 = vmatpush1.bf16.msra.mxu0 %v1078
    %3315 = vmatprep.subr.bf16.mxu0 %v1083
    %3316 = vmatpush1.bf16.msra.mxu0 %v1082
    %3317 = vmatprep.subr.bf16.mxu0 %v1087
    %3318 = vmatpush1.bf16.msra.mxu0 %v1086
    %3319 = vmatprep.subr.bf16.mxu0 %v1091
    %3320 = vmatpush1.bf16.msra.mxu0 %v1090
    %3321 = vmatprep.subr.bf16.mxu0 %v1095
    %3322 = vmatpush1.bf16.msra.mxu0 %v1094
    %3323 = vmatprep.subr.bf16.mxu0 0
    %3324 = vmatpush1.bf16.msra.mxu0 0
    %3325 = vmatprep.subr.bf16.mxu0 0
    %3326 = vmatpush1.bf16.msra.mxu0 0
    %3327 = vmatprep.subr.bf16.mxu0 0
    %3328 = vmatpush1.bf16.msra.mxu0 0
    %3329 = vmatprep.subr.bf16.mxu0 0
    %3330 = vmatpush1.bf16.msra.mxu0 0
    %3331 = vmatprep.subr.bf16.mxu0 0
    %3332 = vmatpush1.bf16.msra.mxu0 0
    %3333 = vmatprep.subr.bf16.mxu0 0
    %3334 = vmatpush1.bf16.msra.mxu0 0
    %3335 = vmatprep.subr.bf16.mxu0 0
    %3336 = vmatpush1.bf16.msra.mxu0 0
    %3337 = vmatprep.subr.bf16.mxu0 0
    %3338 = vmatpush1.bf16.msra.mxu0 0
    %3339 = vmatprep.mubr.bf16.mxu0 0
    %3340 = vmatmul.mubr.bf16.gmra.mrb[0].mxu0 %v3223
    %v3341 = vpop.f32.mrb[0].mxu0
    %v3342 = vadd.f32 %v3260, %v3341
    %v3343 = vpop.f32.mrb[0].mxu0
    %v3344 = vadd.f32 %v3262, %v3343
    %v3345 = vpop.f32.mrb[0].mxu0
    %v3346 = vpop.f32.mrb[0].mxu0
    %3347 = vdwg.mxu0
    %3348 = vmatprep.subr.bf16.mxu0 %v1069
    %3349 = vmatpush1.bf16.msra.mxu0 %v1068
    %3350 = vmatprep.subr.bf16.mxu0 %v1073
    %3351 = vmatpush1.bf16.msra.mxu0 %v1072
    %3352 = vmatprep.subr.bf16.mxu0 %v1077
    %3353 = vmatpush1.bf16.msra.mxu0 %v1076
    %3354 = vmatprep.subr.bf16.mxu0 %v1081
    %3355 = vmatpush1.bf16.msra.mxu0 %v1080
    %3356 = vmatprep.subr.bf16.mxu0 %v1085
    %3357 = vmatpush1.bf16.msra.mxu0 %v1084
    %3358 = vmatprep.subr.bf16.mxu0 %v1089
    %3359 = vmatpush1.bf16.msra.mxu0 %v1088
    %3360 = vmatprep.subr.bf16.mxu0 %v1093
    %3361 = vmatpush1.bf16.msra.mxu0 %v1092
    %3362 = vmatprep.subr.bf16.mxu0 %v1097
    %3363 = vmatpush1.bf16.msra.mxu0 %v1096
    %3364 = vmatprep.subr.bf16.mxu0 0
    %3365 = vmatpush1.bf16.msra.mxu0 0
    %3366 = vmatprep.subr.bf16.mxu0 0
    %3367 = vmatpush1.bf16.msra.mxu0 0
    %3368 = vmatprep.subr.bf16.mxu0 0
    %3369 = vmatpush1.bf16.msra.mxu0 0
    %3370 = vmatprep.subr.bf16.mxu0 0
    %3371 = vmatpush1.bf16.msra.mxu0 0
    %3372 = vmatprep.subr.bf16.mxu0 0
    %3373 = vmatpush1.bf16.msra.mxu0 0
    %3374 = vmatprep.subr.bf16.mxu0 0
    %3375 = vmatpush1.bf16.msra.mxu0 0
    %3376 = vmatprep.subr.bf16.mxu0 0
    %3377 = vmatpush1.bf16.msra.mxu0 0
    %3378 = vmatprep.subr.bf16.mxu0 0
    %3379 = vmatpush1.bf16.msra.mxu0 0
    %3380 = vmatprep.mubr.bf16.mxu0 0
    %3381 = vmatmul.mubr.bf16.gmra.mrb[0].mxu0 %v3223
    %v3382 = vpop.f32.mrb[0].mxu0
    %v3383 = vadd.f32 %v3301, %v3382
    %v3384 = vpop.f32.mrb[0].mxu0
    %v3385 = vadd.f32 %v3303, %v3384
    %v3386 = vpop.f32.mrb[0].mxu0
    %v3387 = vpop.f32.mrb[0].mxu0
    %3388 = vdwg.mxu0
    %v3389 = vadd.f32 %v3342, %v337
    %v3390 = vadd.f32 %v3344, %v341
    %v3391 = vadd.f32 %v3383, %v345
    %v3392 = vadd.f32 %v3385, %v349
    %v3393 = vxor.u32 %v3389, 2147483648
    %v3394 = vxor.u32 %v3390, 2147483648
    %v3395 = vxor.u32 %v3391, 2147483648
    %v3396 = vmul.f32 %v3393, 1.442695
    %v3397 = vpow.pop %v3396
    %v3398 = vmul.f32 %v3394, 1.442695
    %v3399 = vpow.pop %v3398
    %v3400 = vmul.f32 %v3395, 1.442695
    %v3401 = vpow.pop %v3400
    %v3402 = vadd.f32 %v3397, 1.0
    %v3403 = vadd.f32 %v3399, 1.0
    %v3404 = vadd.f32 %v3401, 1.0
    %v3405 = vrcp.pop %v3402
    %v3406 = vmul.f32 1.0, %v3405
    %v3407 = vrcp.pop %v3403
    %v3408 = vmul.f32 1.0, %v3407
    %v3409 = vrcp.pop %v3404
    %v3410 = vmul.f32 1.0, %v3409
    %v3411 = vtanh.pop %v3392
    %v3412 = vmul.f32 %v3408, %v3103
    %v3413 = vmul.f32 %v3406, %v3411
    %v3414 = vadd.f32 %v3412, %v3413
    %v3415 = vtanh.pop %v3414
    %v3416 = vmul.f32 %v3410, %v3415
    %v3417 = vpack.c.bf16 %v3416, %v3416
    %v3418 = vld [vmem:[%s7] sm:$0xf]
    %v3419 = vld [vmem:[%s7 + $0x4] sm:$0xf]
    %v3420 = vld [vmem:[%s7 + $0x8] sm:$0xf]
    %v3421 = vld [vmem:[%s7 + $0xc] sm:$0xf]
    %v3422 = vld [vmem:[%s7 + $0x10] sm:$0xf]
    %v3423 = vld [vmem:[%s7 + $0x14] sm:$0xf]
    %v3424 = vld [vmem:[%s7 + $0x18] sm:$0xf]
    %v3425 = vld [vmem:[%s7 + $0x1c] sm:$0xf]
    %v3426 = vld [vmem:[%s7 + $0x20] sm:$0xf]
    %v3427 = vld [vmem:[%s7 + $0x24] sm:$0xf]
    %v3428 = vld [vmem:[%s7 + $0x28] sm:$0xf]
    %v3429 = vld [vmem:[%s7 + $0x2c] sm:$0xf]
    %v3430 = vld [vmem:[%s7 + $0x30] sm:$0xf]
    %v3431 = vld [vmem:[%s7 + $0x34] sm:$0xf]
    %v3432 = vld [vmem:[%s7 + $0x38] sm:$0xf]
    %v3433 = vld [vmem:[%s7 + $0x3c] sm:$0xf]
    %v3434 = vld [vmem:[%s8] sm:$0x1]
    %v3436 = vlaneseq
    %v3437 = vshrl.u32 %v3436, 7
    %v3438 = vsub.s32 0, %v3437
    %v3439 = vrot.slane %v3434, %v3438
    %v3457 = vunpack.c.l.b16 %v3418
    %v3458 = vunpack.c.l.b16 %v3419
    %v3459 = vunpack.c.l.b16 %v3420
    %v3460 = vunpack.c.l.b16 %v3421
    %v3461 = vunpack.c.l.b16 %v3422
    %v3462 = vunpack.c.l.b16 %v3423
    %v3463 = vunpack.c.l.b16 %v3424
    %v3464 = vunpack.c.l.b16 %v3425
    %v3465 = vunpack.c.l.b16 %v3426
    %v3466 = vunpack.c.l.b16 %v3427
    %v3467 = vunpack.c.l.b16 %v3428
    %v3468 = vunpack.c.l.b16 %v3429
    %v3469 = vunpack.c.l.b16 %v3430
    %v3470 = vunpack.c.l.b16 %v3431
    %v3471 = vunpack.c.l.b16 %v3432
    %v3472 = vunpack.c.l.b16 %v3433
    %v3473 = vpack.c.b16 %v3458, %v3457
    %v3474 = vpack.c.b16 %v3460, %v3459
    %v3475 = vpack.c.b16 %v3462, %v3461
    %v3476 = vpack.c.b16 %v3464, %v3463
    %v3477 = vpack.c.b16 %v3466, %v3465
    %v3478 = vpack.c.b16 %v3468, %v3467
    %v3479 = vpack.c.b16 %v3470, %v3469
    %v3480 = vpack.c.b16 %v3472, %v3471
    %3489 = vmatprep.subr.bf16.mxu0 0
    %3490 = vmatpush1.bf16.msra.mxu0 %v3473
    %3491 = vmatprep.subr.bf16.mxu0 0
    %3492 = vmatpush1.bf16.msra.mxu0 %v3474
    %3493 = vmatprep.subr.bf16.mxu0 0
    %3494 = vmatpush1.bf16.msra.mxu0 %v3475
    %3495 = vmatprep.subr.bf16.mxu0 0
    %3496 = vmatpush1.bf16.msra.mxu0 %v3476
    %3497 = vmatprep.subr.bf16.mxu0 0
    %3498 = vmatpush1.bf16.msra.mxu0 %v3477
    %3499 = vmatprep.subr.bf16.mxu0 0
    %3500 = vmatpush1.bf16.msra.mxu0 %v3478
    %3501 = vmatprep.subr.bf16.mxu0 0
    %3502 = vmatpush1.bf16.msra.mxu0 %v3479
    %3503 = vmatprep.subr.bf16.mxu0 0
    %3504 = vmatpush1.bf16.msra.mxu0 %v3480
    %3505 = vmatprep.subr.bf16.mxu0 0
    %3506 = vmatpush1.bf16.msra.mxu0 0
    %3507 = vmatprep.subr.bf16.mxu0 0
    %3508 = vmatpush1.bf16.msra.mxu0 0
    %3509 = vmatprep.subr.bf16.mxu0 0
    %3510 = vmatpush1.bf16.msra.mxu0 0
    %3511 = vmatprep.subr.bf16.mxu0 0
    %3512 = vmatpush1.bf16.msra.mxu0 0
    %3513 = vmatprep.subr.bf16.mxu0 0
    %3514 = vmatpush1.bf16.msra.mxu0 0
    %3515 = vmatprep.subr.bf16.mxu0 0
    %3516 = vmatpush1.bf16.msra.mxu0 0
    %3517 = vmatprep.subr.bf16.mxu0 0
    %3518 = vmatpush1.bf16.msra.mxu0 0
    %3519 = vmatprep.subr.bf16.mxu0 0
    %3520 = vmatpush1.bf16.msra.mxu0 0
    %3521 = vmatprep.mubr.bf16.mxu0 0
    %3522 = vmatmul.mubr.bf16.gmra.mrb[0].mxu0 %v3417
    %v3523 = vpop.f32.mrb[0].mxu0
    %v3524 = vadd.f32 %v3439, %v3523
    %v3525 = vpop.f32.mrb[0].mxu0
    %v3526 = vpop.f32.mrb[0].mxu0
    %v3527 = vpop.f32.mrb[0].mxu0
    %3528 = vdwg.mxu0
    %3529 = vst [vmem:[#allocation9] sm:$0xff] %v3524
    // Predicated region
    $region50: #{tpu_custom_call.1} parent=1 // pred_check
      _
    $region51: #{tpu_custom_call.1} parent=1 // pred_check_branch
      %3531 = sbr.rel (0) target = $region53
    $region52: #{tpu_custom_call.1} parent=1 // pred_region
      %s3533 = ssub.s32 128, 128
      %3534 = vsyncadd [#allocation5], %s3533
      %s3536 = sshll.u32 [#allocation9], 4
      %s3537 = int_to_ptr.vmem [resolvable:$true] %s3536
      %3539 = dma.vmem_to_hbm [thread:$0]  %s3537, 128, %s9, [#allocation5]
    $region53: #{tpu_custom_call.1} parent=1 // pred_fallthru
      _
    // Predicated region
    $region54: #{tpu_custom_call.1} parent=1 // pred_check
      _
    $region55: #{tpu_custom_call.1} parent=1 // pred_check_branch
      %3541 = sbr.rel (0) target = $region57
    $region56: #{tpu_custom_call.1} parent=1 // pred_region
      %3542 = dma.done [#allocation5], 128
    $region57: #{tpu_custom_call.1} parent=1 // pred_fallthru
      _
    %3543 = vsyncpa [#allocation4], 1
    %3544 = vsyncpa [#allocation7], 1
    %3545 = vsyncpa [#allocation5], 1

</llo_original>
